<compile_context>
chip_gen: v6e
topology: v6e:2x2x1
jax: 0.10.0
libtpu: 0.0.40
codegen_flags: <defaults>
</compile_context>

<pallas_src>
import functools
import math

import jax
import jax.numpy as jnp
from jax import lax
from jax.experimental import pallas as pl
from jax.experimental.pallas import tpu as pltpu


# -----------------------------------------------------------------------------
# Helpers
# -----------------------------------------------------------------------------
def _vmem_limit(nbytes):
    return int(min(max(2 * int(nbytes) + (2 << 20), 8 << 20), 64 << 20))


def _pick_row_tile(n):
    for r in (512, 256, 128, 64, 32, 16, 8):
        if n % r == 0:
            return r
    return n


# -----------------------------------------------------------------------------
# Fused bidirectional LSTM layer (one Pallas kernel per layer)
# -----------------------------------------------------------------------------
def _bilstm_kernel(*refs, residual_mode):
    """Fused forward+backward LSTM over a full sequence.

    x_ref:    (T, B, D)   time-major layer input
    wih_ref:  (D, 8H)     [fwd i,f,o,g | bwd i,f,o,g] input weights (bf16)
    whhf_ref: (H, 4H)     forward recurrent weights  (bf16)
    whhb_ref: (H, 4H)     backward recurrent weights (bf16)
    b_ref:    (1, 8H)     combined bias (b_ih + b_hh), both directions
    res_ref:  (T, B, 2H)  optional residual fused into the output store
    out_ref:  (T, B, 2H)  per-timestep hidden states [fwd | bwd]
    hN_ref:   (2, B, H)   final hidden states (fwd, bwd)
    cN_ref:   (2, B, H)   final cell states   (fwd, bwd)
    xf_ref:   (T, B, 4H)  scratch: fwd input projections (pre-activations)
    xb_ref:   (T, B, 4H)  scratch: bwd input projections (pre-activations)
    """
    if residual_mode == "external":
        (x_ref, wih_ref, whhf_ref, whhb_ref, b_ref, res_ref,
         out_ref, hN_ref, cN_ref, xf_ref, xb_ref) = refs
    else:
        (x_ref, wih_ref, whhf_ref, whhb_ref, b_ref,
         out_ref, hN_ref, cN_ref, xf_ref, xb_ref) = refs
        res_ref = x_ref if residual_mode == "input" else None

    T, B, D = x_ref.shape
    H4 = whhf_ref.shape[1]
    H = H4 // 4
    H2, H3 = 2 * H, 3 * H

    # ---- input projection for all timesteps / both directions: one MXU pass ----
    x_flat = x_ref[...].reshape(T * B, D).astype(wih_ref.dtype)
    xp = jnp.dot(x_flat, wih_ref[...], preferred_element_type=jnp.float32)
    xp = xp + b_ref[...]
    xf_ref[...] = xp[:, 0:H4].reshape(T, B, H4)
    xb_ref[...] = xp[:, H4:2 * H4].reshape(T, B, H4)

    # ---- recurrent weights hoisted out of the time loop (stay resident) ----
    whh_f = whhf_ref[...]
    whh_b = whhb_ref[...]
    wdt = whh_f.dtype

    def step(t, carry):
        h_f, c_f, h_b, c_b = carry                # each (B, H) f32
        tb = T - 1 - t
        gf = xf_ref[t] + jnp.dot(h_f.astype(wdt), whh_f,
                                 preferred_element_type=jnp.float32)   # (B, 4H)
        gb = xb_ref[tb] + jnp.dot(h_b.astype(wdt), whh_b,
                                  preferred_element_type=jnp.float32)  # (B, 4H)
        # gate order within each direction: [i, f, o, g]
        sf = jax.nn.sigmoid(gf[:, 0:H3])
        sb = jax.nn.sigmoid(gb[:, 0:H3])
        ggf = jnp.tanh(gf[:, H3:H4])
        ggb = jnp.tanh(gb[:, H3:H4])
        c_f = sf[:, H:H2] * c_f + sf[:, 0:H] * ggf
        c_b = sb[:, H:H2] * c_b + sb[:, 0:H] * ggb
        h_f = sf[:, H2:H3] * jnp.tanh(c_f)
        h_b = sb[:, H2:H3] * jnp.tanh(c_b)

        o_f = h_f
        o_b = h_b
        if residual_mode != "none":
            o_f = o_f + res_ref[t, :, 0:H]
            o_b = o_b + res_ref[tb, :, H:H2]
        out_ref[t, :, 0:H] = o_f.astype(out_ref.dtype)
        out_ref[tb, :, H:H2] = o_b.astype(out_ref.dtype)
        return (h_f, c_f, h_b, c_b)

    z = jnp.zeros((B, H), jnp.float32)
    h_f, c_f, h_b, c_b = lax.fori_loop(0, T, step, (z, z, z, z),
                                       unroll=(T <= 32))

    hN_ref[0] = h_f
    hN_ref[1] = h_b
    cN_ref[0] = c_f
    cN_ref[1] = c_b


def bilstm_layer(x_tbd, lp, res=None, residual_mode="none"):
    """x_tbd: (T, B, D) -> out (T, B, 2H), h_n (2, B, H), c_n (2, B, H)."""
    T, B, D = x_tbd.shape
    H = lp["whh_f"].shape[0]
    vmem = pl.BlockSpec(memory_space=pltpu.MemorySpace.VMEM)

    inputs = [x_tbd, lp["wih"], lp["whh_f"], lp["whh_b"], lp["b"]]
    if residual_mode == "external":
        inputs.append(res)

    nbytes = sum(int(a.size) * a.dtype.itemsize for a in inputs)
    nbytes += T * B * 2 * H * 4          # out
    nbytes += 2 * 2 * B * H * 4          # hN, cN
    nbytes += 2 * T * B * 4 * H * 4      # xf / xb scratches

    out_shape = (
        jax.ShapeDtypeStruct((T, B, 2 * H), jnp.float32),
        jax.ShapeDtypeStruct((2, B, H), jnp.float32),
        jax.ShapeDtypeStruct((2, B, H), jnp.float32),
    )
    kern = functools.partial(_bilstm_kernel, residual_mode=residual_mode)
    return pl.pallas_call(
        kern,
        out_shape=out_shape,
        in_specs=[vmem] * len(inputs),
        out_specs=(vmem, vmem, vmem),
        scratch_shapes=[pltpu.VMEM((T, B, 4 * H), jnp.float32),
                        pltpu.VMEM((T, B, 4 * H), jnp.float32)],
        compiler_params=pltpu.CompilerParams(vmem_limit_bytes=_vmem_limit(nbytes)),
    )(*inputs)


# -----------------------------------------------------------------------------
# Residual linear (only used by the ResidualChimeraBase path, layer 0)
# -----------------------------------------------------------------------------
def _linear_kernel(x_ref, w_ref, b_ref, o_ref):
    x = x_ref[...].astype(w_ref.dtype)
    o_ref[...] = (jnp.dot(x, w_ref[...], preferred_element_type=jnp.float32)
                  + b_ref[...]).astype(o_ref.dtype)


def linear_rows(x_rows, w, b):
    NT, Fin = x_rows.shape
    O = w.shape[1]
    R = _pick_row_tile(NT)
    nbytes = x_rows.size * 4 + w.size * w.dtype.itemsize + b.size * 4 + NT * O * 4
    return pl.pallas_call(
        _linear_kernel,
        grid=(NT // R,),
        out_shape=jax.ShapeDtypeStruct((NT, O), jnp.float32),
        in_specs=[pl.BlockSpec((R, Fin), lambda i: (i, 0)),
                  pl.BlockSpec((Fin, O), lambda i: (0, 0)),
                  pl.BlockSpec((1, O), lambda i: (0, 0))],
        out_specs=pl.BlockSpec((R, O), lambda i: (i, 0)),
        compiler_params=pltpu.CompilerParams(
            dimension_semantics=("parallel",),
            vmem_limit_bytes=_vmem_limit(nbytes)),
    )(x_rows, w, b)


# -----------------------------------------------------------------------------
# Fused heads kernel: embedding linear (+sigmoid) and mask-codebook linear
# -----------------------------------------------------------------------------
def _heads_kernel(x_ref, we_ref, be_ref, wm_ref, bm_ref, emb_ref, logit_ref):
    x = x_ref[...].astype(we_ref.dtype)                       # (R, 2H)
    e = jnp.dot(x, we_ref[...], preferred_element_type=jnp.float32) + be_ref[...]
    emb_ref[...] = jax.nn.sigmoid(e)
    logit_ref[...] = (jnp.dot(x, wm_ref[...], preferred_element_type=jnp.float32)
                      + bm_ref[...])


def heads_apply(rows, we, be, wm, bm):
    NT, H2 = rows.shape
    FD = we.shape[1]
    FM = wm.shape[1]
    R = _pick_row_tile(NT)
    nbytes = (R * H2 * 4 + we.size * we.dtype.itemsize + be.size * 4
              + wm.size * wm.dtype.itemsize + bm.size * 4
              + R * FD * 4 + R * FM * 4)
    out_shape = (jax.ShapeDtypeStruct((NT, FD), jnp.float32),
                 jax.ShapeDtypeStruct((NT, FM), jnp.float32))
    return pl.pallas_call(
        _heads_kernel,
        grid=(NT // R,),
        out_shape=out_shape,
        in_specs=[
            pl.BlockSpec((R, H2), lambda i: (i, 0)),
            pl.BlockSpec((H2, FD), lambda i: (0, 0)),
            pl.BlockSpec((1, FD), lambda i: (0, 0)),
            pl.BlockSpec((H2, FM), lambda i: (0, 0)),
            pl.BlockSpec((1, FM), lambda i: (0, 0)),
        ],
        out_specs=(pl.BlockSpec((R, FD), lambda i: (i, 0)),
                   pl.BlockSpec((R, FM), lambda i: (i, 0))),
        compiler_params=pltpu.CompilerParams(
            dimension_semantics=("parallel",),
            vmem_limit_bytes=_vmem_limit(nbytes)),
    )(rows, we, be, wm, bm)


# -----------------------------------------------------------------------------
# ChimeraCombook forward
# -----------------------------------------------------------------------------
def chimera_combook_forward(x_bft, params, residual_base=False):
    """x_bft: (B, F, T) -> (embedding (B, T*F, D), com_mask (B, C, F, T, 2),
                            (h_n (2L, B, N), c_n (2L, B, N)))."""
    Bb, Fb, Tt = x_bft.shape
    H = params["layers"][0]["whh_f"].shape[0]
    num_layers = len(params["layers"])

    # (B, F, T) -> time-major (T, B, F); stay time-major through the LSTM stack.
    x = jnp.transpose(x_bft, (2, 0, 1))

    h_list, c_list = [], []
    for i, lp in enumerate(params["layers"]):
        if residual_base and i < num_layers - 1:
            if i == 0 and params["lin_w"] is not None:
                res = linear_rows(x.reshape(Tt * Bb, Fb),
                                  params["lin_w"], params["lin_b"])
                res = res.reshape(Tt, Bb, 2 * H)
                out, hN, cN = bilstm_layer(x, lp, res=res, residual_mode="external")
            else:
                out, hN, cN = bilstm_layer(x, lp, residual_mode="input")
        else:
            out, hN, cN = bilstm_layer(x, lp, residual_mode="none")
        # TODO(synk): inter-layer dropout treated as identity (inference mode).
        x = out
        h_list.append(hN)
        c_list.append(cN)

    h_n = jnp.concatenate(h_list, axis=0)         # (2L, B, H)
    c_n = jnp.concatenate(c_list, axis=0)

    # ---- heads ----
    D_emb = params["we"].shape[1] // Fb
    cb = params["combook"].shape[1]
    C = params["wm"].shape[1] // (Fb * cb)

    rows = x.reshape(Tt * Bb, 2 * H)              # time-major rows of out_base
    emb_rows, logit_rows = heads_apply(rows, params["we"], params["be"],
                                       params["wm"], params["bm"])

    # EmbeddingHead: reshape to (B, T*F, D), L2 normalize with clamp(min=1e-12).
    emb = emb_rows.reshape(Tt, Bb, Fb, D_emb).transpose(1, 0, 2, 3)
    emb = emb.reshape(Bb, Tt * Fb, D_emb)
    norm = jnp.sqrt(jnp.sum(emb * emb, axis=-1, keepdims=True))
    emb = emb / jnp.maximum(norm, 1e-12)

    # BaseMaskHead: (B, T, F, C, cb) -> (B, C, F, T, cb), softmax over cb,
    # then TrainableCodebookMaskHead: (cb -> 2) linear, no bias.
    logits = logit_rows.reshape(Tt, Bb, Fb, C, cb).transpose(1, 3, 2, 0, 4)
    logits = logits - jnp.max(logits, axis=-1, keepdims=True)
    p = jnp.exp(logits)
    mask = p / jnp.sum(p, axis=-1, keepdims=True)
    com = jnp.einsum("bcftk,ok->bcfto", mask, params["combook"])   # (B,C,F,T,2)

    return emb, com, (h_n, c_n)


# -----------------------------------------------------------------------------
# Deterministic parameter construction (mirrors the PyTorch shapes / init style)
# Kernel gate layout per direction is [i, f, o, g]; converting real PyTorch
# weights ([i, f, g, o]) would need a one-time column permutation here.
# -----------------------------------------------------------------------------
def make_params(F, N, C, D_emb, num_layers=4, codebook_size=12,
                residual_base=False, seed=0, wdtype=jnp.bfloat16):
    key = jax.random.PRNGKey(seed)
    H = N

    def init(k, shape, fan_in):
        return jax.random.normal(k, shape, jnp.float32) / jnp.sqrt(jnp.float32(fan_in))

    layers = []
    for i in range(num_layers):
        Din = F if i == 0 else 2 * H
        key, k1, k2, k3, k4 = jax.random.split(key, 5)
        wih_f = init(k1, (Din, 4 * H), Din)
        whh_f = init(k2, (H, 4 * H), H)
        wih_b = init(k3, (Din, 4 * H), Din)
        whh_b = init(k4, (H, 4 * H), H)
        # fused input weight, columns = [fwd i,f,o,g | bwd i,f,o,g]
        wih = jnp.concatenate([wih_f, wih_b], axis=1).astype(wdtype)
        # combined bias b_ih + b_hh: forget gate filled with 1 in each -> 2
        b = jnp.zeros((8 * H,), jnp.float32)
        b = b.at[H:2 * H].set(2.0)
        b = b.at[5 * H:6 * H].set(2.0)
        layers.append({"wih": wih,
                       "whh_f": whh_f.astype(wdtype),
                       "whh_b": whh_b.astype(wdtype),
                       "b": b.reshape(1, 8 * H)})

    params = {"layers": layers}
    if residual_base and F != 2 * H:
        key, k = jax.random.split(key)
        params["lin_w"] = init(k, (F, 2 * H), F).astype(wdtype)
        params["lin_b"] = jnp.zeros((1, 2 * H), jnp.float32)
    else:
        params["lin_w"] = None
        params["lin_b"] = None

    key, ke, km = jax.random.split(key, 3)
    params["we"] = init(ke, (2 * H, F * D_emb), 2 * H).astype(wdtype)
    params["be"] = jnp.zeros((1, F * D_emb), jnp.float32)
    params["wm"] = init(km, (2 * H, F * C * codebook_size), 2 * H).astype(wdtype)
    params["bm"] = jnp.zeros((1, F * C * codebook_size), jnp.float32)

    # Default codebook init, mirroring the PyTorch constructor.
    cb = codebook_size
    n1 = math.ceil((cb - 1) / 2)
    n2 = (cb - 1) // 2
    t1 = jnp.linspace(-math.pi, math.pi, n1)
    t2 = jnp.linspace(-math.pi, math.pi, n2)
    cs1 = jnp.stack([jnp.cos(t1), jnp.sin(t1)])
    cs2 = jnp.stack([jnp.cos(t2), jnp.sin(t2)])
    params["combook"] = jnp.concatenate(
        [jnp.zeros((2, 1), jnp.float32), cs1, 2.0 * cs2], axis=-1)   # (2, cb)
    return params


# -----------------------------------------------------------------------------
# Main
# -----------------------------------------------------------------------------
if __name__ == "__main__":
    B = 2            # batch
    F = 16           # n_freq_bins
    T = 8            # sequence length
    N = 32           # n_hidden_states
    C = 2            # channels
    D_EMB = 8        # embedding dim
    CB = 12          # codebook size
    L = 4            # num LSTM layers

    key = jax.random.PRNGKey(0)
    x = jax.random.normal(key, (B, F, T), jnp.float32)   # same (B, F, T) as PyTorch

    # Default ChimeraCombook (residual_base=False -> ChimeraBase)
    params = make_params(F, N, C, D_EMB, num_layers=L, codebook_size=CB,
                         residual_base=False, seed=0)
    fwd = jax.jit(functools.partial(chimera_combook_forward, residual_base=False))
    emb, com, (h_n, c_n) = fwd(x, params)
    jax.block_until_ready((emb, com, h_n, c_n))

    assert emb.shape == (B, T * F, D_EMB), emb.shape
    assert com.shape == (B, C, F, T, 2), com.shape
    assert h_n.shape == (2 * L, B, N), h_n.shape
    assert c_n.shape == (2 * L, B, N), c_n.shape
    assert bool(jnp.all(jnp.isfinite(emb))) and bool(jnp.all(jnp.isfinite(com)))
    assert bool(jnp.all(jnp.isfinite(h_n))) and bool(jnp.all(jnp.isfinite(c_n)))

    # Also exercise the ResidualChimeraBase variant (fused residual add path).
    params_r = make_params(F, N, C, D_EMB, num_layers=L, codebook_size=CB,
                           residual_base=True, seed=1)
    fwd_r = jax.jit(functools.partial(chimera_combook_forward, residual_base=True))
    emb_r, com_r, (h_r, c_r) = fwd_r(x, params_r)
    jax.block_until_ready((emb_r, com_r, h_r, c_r))
    assert emb_r.shape == (B, T * F, D_EMB) and com_r.shape == (B, C, F, T, 2)
    assert h_r.shape == (2 * L, B, N) and c_r.shape == (2 * L, B, N)
    assert bool(jnp.all(jnp.isfinite(emb_r))) and bool(jnp.all(jnp.isfinite(com_r)))

    print("KERNEL_OK")
</pallas_src>

<mosaic_0001>
module attributes {stable_mosaic.version = 11 : i64} {
  func.func @_bilstm_kernel(%arg0: memref<8x2x16xf32, #tpu.memory_space<vmem>>, %arg1: memref<16x256xbf16, #tpu.memory_space<vmem>>, %arg2: memref<32x128xbf16, #tpu.memory_space<vmem>>, %arg3: memref<32x128xbf16, #tpu.memory_space<vmem>>, %arg4: memref<1x256xf32, #tpu.memory_space<vmem>>, %arg5: memref<8x2x64xf32, #tpu.memory_space<vmem>>, %arg6: memref<2x2x32xf32, #tpu.memory_space<vmem>>, %arg7: memref<2x2x32xf32, #tpu.memory_space<vmem>>, %arg8: memref<8x2x128xf32, #tpu.memory_space<vmem>>, %arg9: memref<8x2x128xf32, #tpu.memory_space<vmem>>) attributes {dimension_semantics = [], scalar_prefetch = 0 : i64, scratch_operands = 2 : i64, tpu.core_type = #tpu.core_type<tc>} {
    %c0 = arith.constant 0 : index
    %c0_0 = arith.constant 0 : index
    %c0_1 = arith.constant 0 : index
    %0 = vector.load %arg0[%c0, %c0_0, %c0_1] : memref<8x2x16xf32, #tpu.memory_space<vmem>>, vector<8x2x16xf32>
    %1 = vector.shape_cast %0 : vector<8x2x16xf32> to vector<16x16xf32>
    %2 = arith.truncf %1 : vector<16x16xf32> to vector<16x16xbf16>
    %c0_2 = arith.constant 0 : index
    %c0_3 = arith.constant 0 : index
    %3 = vector.load %arg1[%c0_2, %c0_3] : memref<16x256xbf16, #tpu.memory_space<vmem>>, vector<16x256xbf16>
    %cst = arith.constant dense<0.000000e+00> : vector<16x256xf32>
    %4 = tpu.matmul %2, %3, %cst {dimension_numbers = #tpu.dot_dimension_numbers<[1], [0], [0], [1], [0, 0, 1, 1], [], []>} : vector<16x16xbf16>, vector<16x256xbf16>, vector<16x256xf32> -> vector<16x256xf32>
    %c0_4 = arith.constant 0 : index
    %c0_5 = arith.constant 0 : index
    %5 = vector.load %arg4[%c0_4, %c0_5] : memref<1x256xf32, #tpu.memory_space<vmem>>, vector<1x256xf32>
    %6 = vector.broadcast %5 : vector<1x256xf32> to vector<16x256xf32>
    %7 = arith.addf %4, %6 : vector<16x256xf32>
    %8 = vector.extract_strided_slice %7 {offsets = [0, 0], sizes = [16, 128], strides = [1, 1]} : vector<16x256xf32> to vector<16x128xf32>
    %9 = vector.shape_cast %8 : vector<16x128xf32> to vector<8x2x128xf32>
    %c0_6 = arith.constant 0 : index
    %c0_7 = arith.constant 0 : index
    %c0_8 = arith.constant 0 : index
    %10 = vector.load %arg8[%c0_6, %c0_7, %c0_8] : memref<8x2x128xf32, #tpu.memory_space<vmem>>, vector<8x2x128xf32>
    tpu.vector_store %arg8[%c0_6, %c0_7, %c0_8], %9 {strides = array<i32>} : memref<8x2x128xf32, #tpu.memory_space<vmem>>, vector<8x2x128xf32>,
    %11 = vector.extract_strided_slice %7 {offsets = [0, 128], sizes = [16, 128], strides = [1, 1]} : vector<16x256xf32> to vector<16x128xf32>
    %12 = vector.shape_cast %11 : vector<16x128xf32> to vector<8x2x128xf32>
    %c0_9 = arith.constant 0 : index
    %c0_10 = arith.constant 0 : index
    %c0_11 = arith.constant 0 : index
    %13 = vector.load %arg9[%c0_9, %c0_10, %c0_11] : memref<8x2x128xf32, #tpu.memory_space<vmem>>, vector<8x2x128xf32>
    tpu.vector_store %arg9[%c0_9, %c0_10, %c0_11], %12 {strides = array<i32>} : memref<8x2x128xf32, #tpu.memory_space<vmem>>, vector<8x2x128xf32>,
    %c0_12 = arith.constant 0 : index
    %c0_13 = arith.constant 0 : index
    %14 = vector.load %arg2[%c0_12, %c0_13] : memref<32x128xbf16, #tpu.memory_space<vmem>>, vector<32x128xbf16>
    %c0_14 = arith.constant 0 : index
    %c0_15 = arith.constant 0 : index
    %15 = vector.load %arg3[%c0_14, %c0_15] : memref<32x128xbf16, #tpu.memory_space<vmem>>, vector<32x128xbf16>
    %cst_16 = arith.constant 0.000000e+00 : f32
    %16 = vector.broadcast %cst_16 : f32 to vector<2x32xf32>
    %c0_i32 = arith.constant 0 : i32
    %c7_i32 = arith.constant 7 : i32
    %17 = arith.subi %c7_i32, %c0_i32 : i32
    %18 = arith.index_cast %c0_i32 : i32 to index
    %c0_17 = arith.constant 0 : index
    %c0_18 = arith.constant 0 : index
    %19 = vector.load %arg8[%18, %c0_17, %c0_18] : memref<8x2x128xf32, #tpu.memory_space<vmem>>, vector<1x2x128xf32>
    %20 = vector.shape_cast %19 : vector<1x2x128xf32> to vector<2x128xf32>
    %21 = arith.truncf %16 : vector<2x32xf32> to vector<2x32xbf16>
    %cst_19 = arith.constant dense<0.000000e+00> : vector<2x128xf32>
    %22 = tpu.matmul %21, %14, %cst_19 {dimension_numbers = #tpu.dot_dimension_numbers<[1], [0], [0], [1], [0, 0, 1, 1], [], []>} : vector<2x32xbf16>, vector<32x128xbf16>, vector<2x128xf32> -> vector<2x128xf32>
    %23 = arith.addf %20, %22 : vector<2x128xf32>
    %24 = arith.index_cast %17 : i32 to index
    %c0_20 = arith.constant 0 : index
    %c0_21 = arith.constant 0 : index
    %25 = vector.load %arg9[%24, %c0_20, %c0_21] : memref<8x2x128xf32, #tpu.memory_space<vmem>>, vector<1x2x128xf32>
    %26 = vector.shape_cast %25 : vector<1x2x128xf32> to vector<2x128xf32>
    %27 = arith.truncf %16 : vector<2x32xf32> to vector<2x32xbf16>
    %cst_22 = arith.constant dense<0.000000e+00> : vector<2x128xf32>
    %28 = tpu.matmul %27, %15, %cst_22 {dimension_numbers = #tpu.dot_dimension_numbers<[1], [0], [0], [1], [0, 0, 1, 1], [], []>} : vector<2x32xbf16>, vector<32x128xbf16>, vector<2x128xf32> -> vector<2x128xf32>
    %29 = arith.addf %26, %28 : vector<2x128xf32>
    %30 = vector.extract_strided_slice %23 {offsets = [0, 0], sizes = [2, 96], strides = [1, 1]} : vector<2x128xf32> to vector<2x96xf32>
    %31 = arith.negf %30 : vector<2x96xf32>
    %32 = math.exp %31 : vector<2x96xf32>
    %cst_23 = arith.constant 1.000000e+00 : f32
    %33 = vector.broadcast %cst_23 : f32 to vector<2x96xf32>
    %34 = arith.addf %33, %32 : vector<2x96xf32>
    %35 = arith.divf %33, %34 : vector<2x96xf32>
    %36 = vector.extract_strided_slice %29 {offsets = [0, 0], sizes = [2, 96], strides = [1, 1]} : vector<2x128xf32> to vector<2x96xf32>
    %37 = arith.negf %36 : vector<2x96xf32>
    %38 = math.exp %37 : vector<2x96xf32>
    %cst_24 = arith.constant 1.000000e+00 : f32
    %39 = vector.broadcast %cst_24 : f32 to vector<2x96xf32>
    %40 = arith.addf %39, %38 : vector<2x96xf32>
    %41 = arith.divf %39, %40 : vector<2x96xf32>
    %42 = vector.extract_strided_slice %23 {offsets = [0, 96], sizes = [2, 32], strides = [1, 1]} : vector<2x128xf32> to vector<2x32xf32>
    %43 = math.tanh %42 : vector<2x32xf32>
    %44 = vector.extract_strided_slice %29 {offsets = [0, 96], sizes = [2, 32], strides = [1, 1]} : vector<2x128xf32> to vector<2x32xf32>
    %45 = math.tanh %44 : vector<2x32xf32>
    %46 = vector.extract_strided_slice %35 {offsets = [0, 32], sizes = [2, 32], strides = [1, 1]} : vector<2x96xf32> to vector<2x32xf32>
    %47 = arith.mulf %46, %16 : vector<2x32xf32>
    %48 = vector.extract_strided_slice %35 {offsets = [0, 0], sizes = [2, 32], strides = [1, 1]} : vector<2x96xf32> to vector<2x32xf32>
    %49 = arith.mulf %48, %43 : vector<2x32xf32>
    %50 = arith.addf %47, %49 : vector<2x32xf32>
    %51 = vector.extract_strided_slice %41 {offsets = [0, 32], sizes = [2, 32], strides = [1, 1]} : vector<2x96xf32> to vector<2x32xf32>
    %52 = arith.mulf %51, %16 : vector<2x32xf32>
    %53 = vector.extract_strided_slice %41 {offsets = [0, 0], sizes = [2, 32], strides = [1, 1]} : vector<2x96xf32> to vector<2x32xf32>
    %54 = arith.mulf %53, %45 : vector<2x32xf32>
    %55 = arith.addf %52, %54 : vector<2x32xf32>
    %56 = vector.extract_strided_slice %35 {offsets = [0, 64], sizes = [2, 32], strides = [1, 1]} : vector<2x96xf32> to vector<2x32xf32>
    %57 = math.tanh %50 : vector<2x32xf32>
    %58 = arith.mulf %56, %57 : vector<2x32xf32>
    %59 = vector.extract_strided_slice %41 {offsets = [0, 64], sizes = [2, 32], strides = [1, 1]} : vector<2x96xf32> to vector<2x32xf32>
    %60 = math.tanh %55 : vector<2x32xf32>
    %61 = arith.mulf %59, %60 : vector<2x32xf32>
    %62 = arith.index_cast %c0_i32 : i32 to index
    %c0_25 = arith.constant 0 : index
    %c0_26 = arith.constant 0 : index
    %63 = vector.load %arg5[%62, %c0_25, %c0_26] : memref<8x2x64xf32, #tpu.memory_space<vmem>>, vector<1x2x32xf32>
    %64 = vector.shape_cast %63 : vector<1x2x32xf32> to vector<2x32xf32>
    %65 = vector.shape_cast %58 : vector<2x32xf32> to vector<1x2x32xf32>
    tpu.vector_store %arg5[%62, %c0_25, %c0_26], %65 {strides = array<i32>} : memref<8x2x64xf32, #tpu.memory_space<vmem>>, vector<1x2x32xf32>,
    %66 = arith.index_cast %17 : i32 to index
    %c0_27 = arith.constant 0 : index
    %c32 = arith.constant 32 : index
    %67 = vector.load %arg5[%66, %c0_27, %c32] : memref<8x2x64xf32, #tpu.memory_space<vmem>>, vector<1x2x32xf32>
    %68 = vector.shape_cast %67 : vector<1x2x32xf32> to vector<2x32xf32>
    %69 = vector.shape_cast %61 : vector<2x32xf32> to vector<1x2x32xf32>
    tpu.vector_store %arg5[%66, %c0_27, %c32], %69 {strides = array<i32>} : memref<8x2x64xf32, #tpu.memory_space<vmem>>, vector<1x2x32xf32>,
    %c1_i32 = arith.constant 1 : i32
    %c7_i32_28 = arith.constant 7 : i32
    %70 = arith.subi %c7_i32_28, %c1_i32 : i32
    %71 = arith.index_cast %c1_i32 : i32 to index
    %c0_29 = arith.constant 0 : index
    %c0_30 = arith.constant 0 : index
    %72 = vector.load %arg8[%71, %c0_29, %c0_30] : memref<8x2x128xf32, #tpu.memory_space<vmem>>, vector<1x2x128xf32>
    %73 = vector.shape_cast %72 : vector<1x2x128xf32> to vector<2x128xf32>
    %74 = arith.truncf %58 : vector<2x32xf32> to vector<2x32xbf16>
    %cst_31 = arith.constant dense<0.000000e+00> : vector<2x128xf32>
    %75 = tpu.matmul %74, %14, %cst_31 {dimension_numbers = #tpu.dot_dimension_numbers<[1], [0], [0], [1], [0, 0, 1, 1], [], []>} : vector<2x32xbf16>, vector<32x128xbf16>, vector<2x128xf32> -> vector<2x128xf32>
    %76 = arith.addf %73, %75 : vector<2x128xf32>
    %77 = arith.index_cast %70 : i32 to index
    %c0_32 = arith.constant 0 : index
    %c0_33 = arith.constant 0 : index
    %78 = vector.load %arg9[%77, %c0_32, %c0_33] : memref<8x2x128xf32, #tpu.memory_space<vmem>>, vector<1x2x128xf32>
    %79 = vector.shape_cast %78 : vector<1x2x128xf32> to vector<2x128xf32>
    %80 = arith.truncf %61 : vector<2x32xf32> to vector<2x32xbf16>
    %cst_34 = arith.constant dense<0.000000e+00> : vector<2x128xf32>
    %81 = tpu.matmul %80, %15, %cst_34 {dimension_numbers = #tpu.dot_dimension_numbers<[1], [0], [0], [1], [0, 0, 1, 1], [], []>} : vector<2x32xbf16>, vector<32x128xbf16>, vector<2x128xf32> -> vector<2x128xf32>
    %82 = arith.addf %79, %81 : vector<2x128xf32>
    %83 = vector.extract_strided_slice %76 {offsets = [0, 0], sizes = [2, 96], strides = [1, 1]} : vector<2x128xf32> to vector<2x96xf32>
    %84 = arith.negf %83 : vector<2x96xf32>
    %85 = math.exp %84 : vector<2x96xf32>
    %cst_35 = arith.constant 1.000000e+00 : f32
    %86 = vector.broadcast %cst_35 : f32 to vector<2x96xf32>
    %87 = arith.addf %86, %85 : vector<2x96xf32>
    %88 = arith.divf %86, %87 : vector<2x96xf32>
    %89 = vector.extract_strided_slice %82 {offsets = [0, 0], sizes = [2, 96], strides = [1, 1]} : vector<2x128xf32> to vector<2x96xf32>
    %90 = arith.negf %89 : vector<2x96xf32>
    %91 = math.exp %90 : vector<2x96xf32>
    %cst_36 = arith.constant 1.000000e+00 : f32
    %92 = vector.broadcast %cst_36 : f32 to vector<2x96xf32>
    %93 = arith.addf %92, %91 : vector<2x96xf32>
    %94 = arith.divf %92, %93 : vector<2x96xf32>
    %95 = vector.extract_strided_slice %76 {offsets = [0, 96], sizes = [2, 32], strides = [1, 1]} : vector<2x128xf32> to vector<2x32xf32>
    %96 = math.tanh %95 : vector<2x32xf32>
    %97 = vector.extract_strided_slice %82 {offsets = [0, 96], sizes = [2, 32], strides = [1, 1]} : vector<2x128xf32> to vector<2x32xf32>
    %98 = math.tanh %97 : vector<2x32xf32>
    %99 = vector.extract_strided_slice %88 {offsets = [0, 32], sizes = [2, 32], strides = [1, 1]} : vector<2x96xf32> to vector<2x32xf32>
    %100 = arith.mulf %99, %50 : vector<2x32xf32>
    %101 = vector.extract_strided_slice %88 {offsets = [0, 0], sizes = [2, 32], strides = [1, 1]} : vector<2x96xf32> to vector<2x32xf32>
    %102 = arith.mulf %101, %96 : vector<2x32xf32>
    %103 = arith.addf %100, %102 : vector<2x32xf32>
    %104 = vector.extract_strided_slice %94 {offsets = [0, 32], sizes = [2, 32], strides = [1, 1]} : vector<2x96xf32> to vector<2x32xf32>
    %105 = arith.mulf %104, %55 : vector<2x32xf32>
    %106 = vector.extract_strided_slice %94 {offsets = [0, 0], sizes = [2, 32], strides = [1, 1]} : vector<2x96xf32> to vector<2x32xf32>
    %107 = arith.mulf %106, %98 : vector<2x32xf32>
    %108 = arith.addf %105, %107 : vector<2x32xf32>
    %109 = vector.extract_strided_slice %88 {offsets = [0, 64], sizes = [2, 32], strides = [1, 1]} : vector<2x96xf32> to vector<2x32xf32>
    %110 = math.tanh %103 : vector<2x32xf32>
    %111 = arith.mulf %109, %110 : vector<2x32xf32>
    %112 = vector.extract_strided_slice %94 {offsets = [0, 64], sizes = [2, 32], strides = [1, 1]} : vector<2x96xf32> to vector<2x32xf32>
    %113 = math.tanh %108 : vector<2x32xf32>
    %114 = arith.mulf %112, %113 : vector<2x32xf32>
    %115 = arith.index_cast %c1_i32 : i32 to index
    %c0_37 = arith.constant 0 : index
    %c0_38 = arith.constant 0 : index
    %116 = vector.load %arg5[%115, %c0_37, %c0_38] : memref<8x2x64xf32, #tpu.memory_space<vmem>>, vector<1x2x32xf32>
    %117 = vector.shape_cast %116 : vector<1x2x32xf32> to vector<2x32xf32>
    %118 = vector.shape_cast %111 : vector<2x32xf32> to vector<1x2x32xf32>
    tpu.vector_store %arg5[%115, %c0_37, %c0_38], %118 {strides = array<i32>} : memref<8x2x64xf32, #tpu.memory_space<vmem>>, vector<1x2x32xf32>,
    %119 = arith.index_cast %70 : i32 to index
    %c0_39 = arith.constant 0 : index
    %c32_40 = arith.constant 32 : index
    %120 = vector.load %arg5[%119, %c0_39, %c32_40] : memref<8x2x64xf32, #tpu.memory_space<vmem>>, vector<1x2x32xf32>
    %121 = vector.shape_cast %120 : vector<1x2x32xf32> to vector<2x32xf32>
    %122 = vector.shape_cast %114 : vector<2x32xf32> to vector<1x2x32xf32>
    tpu.vector_store %arg5[%119, %c0_39, %c32_40], %122 {strides = array<i32>} : memref<8x2x64xf32, #tpu.memory_space<vmem>>, vector<1x2x32xf32>,
    %c2_i32 = arith.constant 2 : i32
    %c7_i32_41 = arith.constant 7 : i32
    %123 = arith.subi %c7_i32_41, %c2_i32 : i32
    %124 = arith.index_cast %c2_i32 : i32 to index
    %c0_42 = arith.constant 0 : index
    %c0_43 = arith.constant 0 : index
    %125 = vector.load %arg8[%124, %c0_42, %c0_43] : memref<8x2x128xf32, #tpu.memory_space<vmem>>, vector<1x2x128xf32>
    %126 = vector.shape_cast %125 : vector<1x2x128xf32> to vector<2x128xf32>
    %127 = arith.truncf %111 : vector<2x32xf32> to vector<2x32xbf16>
    %cst_44 = arith.constant dense<0.000000e+00> : vector<2x128xf32>
    %128 = tpu.matmul %127, %14, %cst_44 {dimension_numbers = #tpu.dot_dimension_numbers<[1], [0], [0], [1], [0, 0, 1, 1], [], []>} : vector<2x32xbf16>, vector<32x128xbf16>, vector<2x128xf32> -> vector<2x128xf32>
    %129 = arith.addf %126, %128 : vector<2x128xf32>
    %130 = arith.index_cast %123 : i32 to index
    %c0_45 = arith.constant 0 : index
    %c0_46 = arith.constant 0 : index
    %131 = vector.load %arg9[%130, %c0_45, %c0_46] : memref<8x2x128xf32, #tpu.memory_space<vmem>>, vector<1x2x128xf32>
    %132 = vector.shape_cast %131 : vector<1x2x128xf32> to vector<2x128xf32>
    %133 = arith.truncf %114 : vector<2x32xf32> to vector<2x32xbf16>
    %cst_47 = arith.constant dense<0.000000e+00> : vector<2x128xf32>
    %134 = tpu.matmul %133, %15, %cst_47 {dimension_numbers = #tpu.dot_dimension_numbers<[1], [0], [0], [1], [0, 0, 1, 1], [], []>} : vector<2x32xbf16>, vector<32x128xbf16>, vector<2x128xf32> -> vector<2x128xf32>
    %135 = arith.addf %132, %134 : vector<2x128xf32>
    %136 = vector.extract_strided_slice %129 {offsets = [0, 0], sizes = [2, 96], strides = [1, 1]} : vector<2x128xf32> to vector<2x96xf32>
    %137 = arith.negf %136 : vector<2x96xf32>
    %138 = math.exp %137 : vector<2x96xf32>
    %cst_48 = arith.constant 1.000000e+00 : f32
    %139 = vector.broadcast %cst_48 : f32 to vector<2x96xf32>
    %140 = arith.addf %139, %138 : vector<2x96xf32>
    %141 = arith.divf %139, %140 : vector<2x96xf32>
    %142 = vector.extract_strided_slice %135 {offsets = [0, 0], sizes = [2, 96], strides = [1, 1]} : vector<2x128xf32> to vector<2x96xf32>
    %143 = arith.negf %142 : vector<2x96xf32>
    %144 = math.exp %143 : vector<2x96xf32>
    %cst_49 = arith.constant 1.000000e+00 : f32
    %145 = vector.broadcast %cst_49 : f32 to vector<2x96xf32>
    %146 = arith.addf %145, %144 : vector<2x96xf32>
    %147 = arith.divf %145, %146 : vector<2x96xf32>
    %148 = vector.extract_strided_slice %129 {offsets = [0, 96], sizes = [2, 32], strides = [1, 1]} : vector<2x128xf32> to vector<2x32xf32>
    %149 = math.tanh %148 : vector<2x32xf32>
    %150 = vector.extract_strided_slice %135 {offsets = [0, 96], sizes = [2, 32], strides = [1, 1]} : vector<2x128xf32> to vector<2x32xf32>
    %151 = math.tanh %150 : vector<2x32xf32>
    %152 = vector.extract_strided_slice %141 {offsets = [0, 32], sizes = [2, 32], strides = [1, 1]} : vector<2x96xf32> to vector<2x32xf32>
    %153 = arith.mulf %152, %103 : vector<2x32xf32>
    %154 = vector.extract_strided_slice %141 {offsets = [0, 0], sizes = [2, 32], strides = [1, 1]} : vector<2x96xf32> to vector<2x32xf32>
    %155 = arith.mulf %154, %149 : vector<2x32xf32>
    %156 = arith.addf %153, %155 : vector<2x32xf32>
    %157 = vector.extract_strided_slice %147 {offsets = [0, 32], sizes = [2, 32], strides = [1, 1]} : vector<2x96xf32> to vector<2x32xf32>
    %158 = arith.mulf %157, %108 : vector<2x32xf32>
    %159 = vector.extract_strided_slice %147 {offsets = [0, 0], sizes = [2, 32], strides = [1, 1]} : vector<2x96xf32> to vector<2x32xf32>
    %160 = arith.mulf %159, %151 : vector<2x32xf32>
    %161 = arith.addf %158, %160 : vector<2x32xf32>
    %162 = vector.extract_strided_slice %141 {offsets = [0, 64], sizes = [2, 32], strides = [1, 1]} : vector<2x96xf32> to vector<2x32xf32>
    %163 = math.tanh %156 : vector<2x32xf32>
    %164 = arith.mulf %162, %163 : vector<2x32xf32>
    %165 = vector.extract_strided_slice %147 {offsets = [0, 64], sizes = [2, 32], strides = [1, 1]} : vector<2x96xf32> to vector<2x32xf32>
    %166 = math.tanh %161 : vector<2x32xf32>
    %167 = arith.mulf %165, %166 : vector<2x32xf32>
    %168 = arith.index_cast %c2_i32 : i32 to index
    %c0_50 = arith.constant 0 : index
    %c0_51 = arith.constant 0 : index
    %169 = vector.load %arg5[%168, %c0_50, %c0_51] : memref<8x2x64xf32, #tpu.memory_space<vmem>>, vector<1x2x32xf32>
    %170 = vector.shape_cast %169 : vector<1x2x32xf32> to vector<2x32xf32>
    %171 = vector.shape_cast %164 : vector<2x32xf32> to vector<1x2x32xf32>
    tpu.vector_store %arg5[%168, %c0_50, %c0_51], %171 {strides = array<i32>} : memref<8x2x64xf32, #tpu.memory_space<vmem>>, vector<1x2x32xf32>,
    %172 = arith.index_cast %123 : i32 to index
    %c0_52 = arith.constant 0 : index
    %c32_53 = arith.constant 32 : index
    %173 = vector.load %arg5[%172, %c0_52, %c32_53] : memref<8x2x64xf32, #tpu.memory_space<vmem>>, vector<1x2x32xf32>
    %174 = vector.shape_cast %173 : vector<1x2x32xf32> to vector<2x32xf32>
    %175 = vector.shape_cast %167 : vector<2x32xf32> to vector<1x2x32xf32>
    tpu.vector_store %arg5[%172, %c0_52, %c32_53], %175 {strides = array<i32>} : memref<8x2x64xf32, #tpu.memory_space<vmem>>, vector<1x2x32xf32>,
    %c3_i32 = arith.constant 3 : i32
    %c7_i32_54 = arith.constant 7 : i32
    %176 = arith.subi %c7_i32_54, %c3_i32 : i32
    %177 = arith.index_cast %c3_i32 : i32 to index
    %c0_55 = arith.constant 0 : index
    %c0_56 = arith.constant 0 : index
    %178 = vector.load %arg8[%177, %c0_55, %c0_56] : memref<8x2x128xf32, #tpu.memory_space<vmem>>, vector<1x2x128xf32>
    %179 = vector.shape_cast %178 : vector<1x2x128xf32> to vector<2x128xf32>
    %180 = arith.truncf %164 : vector<2x32xf32> to vector<2x32xbf16>
    %cst_57 = arith.constant dense<0.000000e+00> : vector<2x128xf32>
    %181 = tpu.matmul %180, %14, %cst_57 {dimension_numbers = #tpu.dot_dimension_numbers<[1], [0], [0], [1], [0, 0, 1, 1], [], []>} : vector<2x32xbf16>, vector<32x128xbf16>, vector<2x128xf32> -> vector<2x128xf32>
    %182 = arith.addf %179, %181 : vector<2x128xf32>
    %183 = arith.index_cast %176 : i32 to index
    %c0_58 = arith.constant 0 : index
    %c0_59 = arith.constant 0 : index
    %184 = vector.load %arg9[%183, %c0_58, %c0_59] : memref<8x2x128xf32, #tpu.memory_space<vmem>>, vector<1x2x128xf32>
    %185 = vector.shape_cast %184 : vector<1x2x128xf32> to vector<2x128xf32>
    %186 = arith.truncf %167 : vector<2x32xf32> to vector<2x32xbf16>
    %cst_60 = arith.constant dense<0.000000e+00> : vector<2x128xf32>
    %187 = tpu.matmul %186, %15, %cst_60 {dimension_numbers = #tpu.dot_dimension_numbers<[1], [0], [0], [1], [0, 0, 1, 1], [], []>} : vector<2x32xbf16>, vector<32x128xbf16>, vector<2x128xf32> -> vector<2x128xf32>
    %188 = arith.addf %185, %187 : vector<2x128xf32>
    %189 = vector.extract_strided_slice %182 {offsets = [0, 0], sizes = [2, 96], strides = [1, 1]} : vector<2x128xf32> to vector<2x96xf32>
    %190 = arith.negf %189 : vector<2x96xf32>
    %191 = math.exp %190 : vector<2x96xf32>
    %cst_61 = arith.constant 1.000000e+00 : f32
    %192 = vector.broadcast %cst_61 : f32 to vector<2x96xf32>
    %193 = arith.addf %192, %191 : vector<2x96xf32>
    %194 = arith.divf %192, %193 : vector<2x96xf32>
    %195 = vector.extract_strided_slice %188 {offsets = [0, 0], sizes = [2, 96], strides = [1, 1]} : vector<2x128xf32> to vector<2x96xf32>
    %196 = arith.negf %195 : vector<2x96xf32>
    %197 = math.exp %196 : vector<2x96xf32>
    %cst_62 = arith.constant 1.000000e+00 : f32
    %198 = vector.broadcast %cst_62 : f32 to vector<2x96xf32>
    %199 = arith.addf %198, %197 : vector<2x96xf32>
    %200 = arith.divf %198, %199 : vector<2x96xf32>
    %201 = vector.extract_strided_slice %182 {offsets = [0, 96], sizes = [2, 32], strides = [1, 1]} : vector<2x128xf32> to vector<2x32xf32>
    %202 = math.tanh %201 : vector<2x32xf32>
    %203 = vector.extract_strided_slice %188 {offsets = [0, 96], sizes = [2, 32], strides = [1, 1]} : vector<2x128xf32> to vector<2x32xf32>
    %204 = math.tanh %203 : vector<2x32xf32>
    %205 = vector.extract_strided_slice %194 {offsets = [0, 32], sizes = [2, 32], strides = [1, 1]} : vector<2x96xf32> to vector<2x32xf32>
    %206 = arith.mulf %205, %156 : vector<2x32xf32>
    %207 = vector.extract_strided_slice %194 {offsets = [0, 0], sizes = [2, 32], strides = [1, 1]} : vector<2x96xf32> to vector<2x32xf32>
    %208 = arith.mulf %207, %202 : vector<2x32xf32>
    %209 = arith.addf %206, %208 : vector<2x32xf32>
    %210 = vector.extract_strided_slice %200 {offsets = [0, 32], sizes = [2, 32], strides = [1, 1]} : vector<2x96xf32> to vector<2x32xf32>
    %211 = arith.mulf %210, %161 : vector<2x32xf32>
    %212 = vector.extract_strided_slice %200 {offsets = [0, 0], sizes = [2, 32], strides = [1, 1]} : vector<2x96xf32> to vector<2x32xf32>
    %213 = arith.mulf %212, %204 : vector<2x32xf32>
    %214 = arith.addf %211, %213 : vector<2x32xf32>
    %215 = vector.extract_strided_slice %194 {offsets = [0, 64], sizes = [2, 32], strides = [1, 1]} : vector<2x96xf32> to vector<2x32xf32>
    %216 = math.tanh %209 : vector<2x32xf32>
    %217 = arith.mulf %215, %216 : vector<2x32xf32>
    %218 = vector.extract_strided_slice %200 {offsets = [0, 64], sizes = [2, 32], strides = [1, 1]} : vector<2x96xf32> to vector<2x32xf32>
    %219 = math.tanh %214 : vector<2x32xf32>
    %220 = arith.mulf %218, %219 : vector<2x32xf32>
    %221 = arith.index_cast %c3_i32 : i32 to index
    %c0_63 = arith.constant 0 : index
    %c0_64 = arith.constant 0 : index
    %222 = vector.load %arg5[%221, %c0_63, %c0_64] : memref<8x2x64xf32, #tpu.memory_space<vmem>>, vector<1x2x32xf32>
    %223 = vector.shape_cast %222 : vector<1x2x32xf32> to vector<2x32xf32>
    %224 = vector.shape_cast %217 : vector<2x32xf32> to vector<1x2x32xf32>
    tpu.vector_store %arg5[%221, %c0_63, %c0_64], %224 {strides = array<i32>} : memref<8x2x64xf32, #tpu.memory_space<vmem>>, vector<1x2x32xf32>,
    %225 = arith.index_cast %176 : i32 to index
    %c0_65 = arith.constant 0 : index
    %c32_66 = arith.constant 32 : index
    %226 = vector.load %arg5[%225, %c0_65, %c32_66] : memref<8x2x64xf32, #tpu.memory_space<vmem>>, vector<1x2x32xf32>
    %227 = vector.shape_cast %226 : vector<1x2x32xf32> to vector<2x32xf32>
    %228 = vector.shape_cast %220 : vector<2x32xf32> to vector<1x2x32xf32>
    tpu.vector_store %arg5[%225, %c0_65, %c32_66], %228 {strides = array<i32>} : memref<8x2x64xf32, #tpu.memory_space<vmem>>, vector<1x2x32xf32>,
    %c4_i32 = arith.constant 4 : i32
    %c7_i32_67 = arith.constant 7 : i32
    %229 = arith.subi %c7_i32_67, %c4_i32 : i32
    %230 = arith.index_cast %c4_i32 : i32 to index
    %c0_68 = arith.constant 0 : index
    %c0_69 = arith.constant 0 : index
    %231 = vector.load %arg8[%230, %c0_68, %c0_69] : memref<8x2x128xf32, #tpu.memory_space<vmem>>, vector<1x2x128xf32>
    %232 = vector.shape_cast %231 : vector<1x2x128xf32> to vector<2x128xf32>
    %233 = arith.truncf %217 : vector<2x32xf32> to vector<2x32xbf16>
    %cst_70 = arith.constant dense<0.000000e+00> : vector<2x128xf32>
    %234 = tpu.matmul %233, %14, %cst_70 {dimension_numbers = #tpu.dot_dimension_numbers<[1], [0], [0], [1], [0, 0, 1, 1], [], []>} : vector<2x32xbf16>, vector<32x128xbf16>, vector<2x128xf32> -> vector<2x128xf32>
    %235 = arith.addf %232, %234 : vector<2x128xf32>
    %236 = arith.index_cast %229 : i32 to index
    %c0_71 = arith.constant 0 : index
    %c0_72 = arith.constant 0 : index
    %237 = vector.load %arg9[%236, %c0_71, %c0_72] : memref<8x2x128xf32, #tpu.memory_space<vmem>>, vector<1x2x128xf32>
    %238 = vector.shape_cast %237 : vector<1x2x128xf32> to vector<2x128xf32>
    %239 = arith.truncf %220 : vector<2x32xf32> to vector<2x32xbf16>
    %cst_73 = arith.constant dense<0.000000e+00> : vector<2x128xf32>
    %240 = tpu.matmul %239, %15, %cst_73 {dimension_numbers = #tpu.dot_dimension_numbers<[1], [0], [0], [1], [0, 0, 1, 1], [], []>} : vector<2x32xbf16>, vector<32x128xbf16>, vector<2x128xf32> -> vector<2x128xf32>
    %241 = arith.addf %238, %240 : vector<2x128xf32>
    %242 = vector.extract_strided_slice %235 {offsets = [0, 0], sizes = [2, 96], strides = [1, 1]} : vector<2x128xf32> to vector<2x96xf32>
    %243 = arith.negf %242 : vector<2x96xf32>
    %244 = math.exp %243 : vector<2x96xf32>
    %cst_74 = arith.constant 1.000000e+00 : f32
    %245 = vector.broadcast %cst_74 : f32 to vector<2x96xf32>
    %246 = arith.addf %245, %244 : vector<2x96xf32>
    %247 = arith.divf %245, %246 : vector<2x96xf32>
    %248 = vector.extract_strided_slice %241 {offsets = [0, 0], sizes = [2, 96], strides = [1, 1]} : vector<2x128xf32> to vector<2x96xf32>
    %249 = arith.negf %248 : vector<2x96xf32>
    %250 = math.exp %249 : vector<2x96xf32>
    %cst_75 = arith.constant 1.000000e+00 : f32
    %251 = vector.broadcast %cst_75 : f32 to vector<2x96xf32>
    %252 = arith.addf %251, %250 : vector<2x96xf32>
    %253 = arith.divf %251, %252 : vector<2x96xf32>
    %254 = vector.extract_strided_slice %235 {offsets = [0, 96], sizes = [2, 32], strides = [1, 1]} : vector<2x128xf32> to vector<2x32xf32>
    %255 = math.tanh %254 : vector<2x32xf32>
    %256 = vector.extract_strided_slice %241 {offsets = [0, 96], sizes = [2, 32], strides = [1, 1]} : vector<2x128xf32> to vector<2x32xf32>
    %257 = math.tanh %256 : vector<2x32xf32>
    %258 = vector.extract_strided_slice %247 {offsets = [0, 32], sizes = [2, 32], strides = [1, 1]} : vector<2x96xf32> to vector<2x32xf32>
    %259 = arith.mulf %258, %209 : vector<2x32xf32>
    %260 = vector.extract_strided_slice %247 {offsets = [0, 0], sizes = [2, 32], strides = [1, 1]} : vector<2x96xf32> to vector<2x32xf32>
    %261 = arith.mulf %260, %255 : vector<2x32xf32>
    %262 = arith.addf %259, %261 : vector<2x32xf32>
    %263 = vector.extract_strided_slice %253 {offsets = [0, 32], sizes = [2, 32], strides = [1, 1]} : vector<2x96xf32> to vector<2x32xf32>
    %264 = arith.mulf %263, %214 : vector<2x32xf32>
    %265 = vector.extract_strided_slice %253 {offsets = [0, 0], sizes = [2, 32], strides = [1, 1]} : vector<2x96xf32> to vector<2x32xf32>
    %266 = arith.mulf %265, %257 : vector<2x32xf32>
    %267 = arith.addf %264, %266 : vector<2x32xf32>
    %268 = vector.extract_strided_slice %247 {offsets = [0, 64], sizes = [2, 32], strides = [1, 1]} : vector<2x96xf32> to vector<2x32xf32>
    %269 = math.tanh %262 : vector<2x32xf32>
    %270 = arith.mulf %268, %269 : vector<2x32xf32>
    %271 = vector.extract_strided_slice %253 {offsets = [0, 64], sizes = [2, 32], strides = [1, 1]} : vector<2x96xf32> to vector<2x32xf32>
    %272 = math.tanh %267 : vector<2x32xf32>
    %273 = arith.mulf %271, %272 : vector<2x32xf32>
    %274 = arith.index_cast %c4_i32 : i32 to index
    %c0_76 = arith.constant 0 : index
    %c0_77 = arith.constant 0 : index
    %275 = vector.load %arg5[%274, %c0_76, %c0_77] : memref<8x2x64xf32, #tpu.memory_space<vmem>>, vector<1x2x32xf32>
    %276 = vector.shape_cast %275 : vector<1x2x32xf32> to vector<2x32xf32>
    %277 = vector.shape_cast %270 : vector<2x32xf32> to vector<1x2x32xf32>
    tpu.vector_store %arg5[%274, %c0_76, %c0_77], %277 {strides = array<i32>} : memref<8x2x64xf32, #tpu.memory_space<vmem>>, vector<1x2x32xf32>,
    %278 = arith.index_cast %229 : i32 to index
    %c0_78 = arith.constant 0 : index
    %c32_79 = arith.constant 32 : index
    %279 = vector.load %arg5[%278, %c0_78, %c32_79] : memref<8x2x64xf32, #tpu.memory_space<vmem>>, vector<1x2x32xf32>
    %280 = vector.shape_cast %279 : vector<1x2x32xf32> to vector<2x32xf32>
    %281 = vector.shape_cast %273 : vector<2x32xf32> to vector<1x2x32xf32>
    tpu.vector_store %arg5[%278, %c0_78, %c32_79], %281 {strides = array<i32>} : memref<8x2x64xf32, #tpu.memory_space<vmem>>, vector<1x2x32xf32>,
    %c5_i32 = arith.constant 5 : i32
    %c7_i32_80 = arith.constant 7 : i32
    %282 = arith.subi %c7_i32_80, %c5_i32 : i32
    %283 = arith.index_cast %c5_i32 : i32 to index
    %c0_81 = arith.constant 0 : index
    %c0_82 = arith.constant 0 : index
    %284 = vector.load %arg8[%283, %c0_81, %c0_82] : memref<8x2x128xf32, #tpu.memory_space<vmem>>, vector<1x2x128xf32>
    %285 = vector.shape_cast %284 : vector<1x2x128xf32> to vector<2x128xf32>
    %286 = arith.truncf %270 : vector<2x32xf32> to vector<2x32xbf16>
    %cst_83 = arith.constant dense<0.000000e+00> : vector<2x128xf32>
    %287 = tpu.matmul %286, %14, %cst_83 {dimension_numbers = #tpu.dot_dimension_numbers<[1], [0], [0], [1], [0, 0, 1, 1], [], []>} : vector<2x32xbf16>, vector<32x128xbf16>, vector<2x128xf32> -> vector<2x128xf32>
    %288 = arith.addf %285, %287 : vector<2x128xf32>
    %289 = arith.index_cast %282 : i32 to index
    %c0_84 = arith.constant 0 : index
    %c0_85 = arith.constant 0 : index
    %290 = vector.load %arg9[%289, %c0_84, %c0_85] : memref<8x2x128xf32, #tpu.memory_space<vmem>>, vector<1x2x128xf32>
    %291 = vector.shape_cast %290 : vector<1x2x128xf32> to vector<2x128xf32>
    %292 = arith.truncf %273 : vector<2x32xf32> to vector<2x32xbf16>
    %cst_86 = arith.constant dense<0.000000e+00> : vector<2x128xf32>
    %293 = tpu.matmul %292, %15, %cst_86 {dimension_numbers = #tpu.dot_dimension_numbers<[1], [0], [0], [1], [0, 0, 1, 1], [], []>} : vector<2x32xbf16>, vector<32x128xbf16>, vector<2x128xf32> -> vector<2x128xf32>
    %294 = arith.addf %291, %293 : vector<2x128xf32>
    %295 = vector.extract_strided_slice %288 {offsets = [0, 0], sizes = [2, 96], strides = [1, 1]} : vector<2x128xf32> to vector<2x96xf32>
    %296 = arith.negf %295 : vector<2x96xf32>
    %297 = math.exp %296 : vector<2x96xf32>
    %cst_87 = arith.constant 1.000000e+00 : f32
    %298 = vector.broadcast %cst_87 : f32 to vector<2x96xf32>
    %299 = arith.addf %298, %297 : vector<2x96xf32>
    %300 = arith.divf %298, %299 : vector<2x96xf32>
    %301 = vector.extract_strided_slice %294 {offsets = [0, 0], sizes = [2, 96], strides = [1, 1]} : vector<2x128xf32> to vector<2x96xf32>
    %302 = arith.negf %301 : vector<2x96xf32>
    %303 = math.exp %302 : vector<2x96xf32>
    %cst_88 = arith.constant 1.000000e+00 : f32
    %304 = vector.broadcast %cst_88 : f32 to vector<2x96xf32>
    %305 = arith.addf %304, %303 : vector<2x96xf32>
    %306 = arith.divf %304, %305 : vector<2x96xf32>
    %307 = vector.extract_strided_slice %288 {offsets = [0, 96], sizes = [2, 32], strides = [1, 1]} : vector<2x128xf32> to vector<2x32xf32>
    %308 = math.tanh %307 : vector<2x32xf32>
    %309 = vector.extract_strided_slice %294 {offsets = [0, 96], sizes = [2, 32], strides = [1, 1]} : vector<2x128xf32> to vector<2x32xf32>
    %310 = math.tanh %309 : vector<2x32xf32>
    %311 = vector.extract_strided_slice %300 {offsets = [0, 32], sizes = [2, 32], strides = [1, 1]} : vector<2x96xf32> to vector<2x32xf32>
    %312 = arith.mulf %311, %262 : vector<2x32xf32>
    %313 = vector.extract_strided_slice %300 {offsets = [0, 0], sizes = [2, 32], strides = [1, 1]} : vector<2x96xf32> to vector<2x32xf32>
    %314 = arith.mulf %313, %308 : vector<2x32xf32>
    %315 = arith.addf %312, %314 : vector<2x32xf32>
    %316 = vector.extract_strided_slice %306 {offsets = [0, 32], sizes = [2, 32], strides = [1, 1]} : vector<2x96xf32> to vector<2x32xf32>
    %317 = arith.mulf %316, %267 : vector<2x32xf32>
    %318 = vector.extract_strided_slice %306 {offsets = [0, 0], sizes = [2, 32], strides = [1, 1]} : vector<2x96xf32> to vector<2x32xf32>
    %319 = arith.mulf %318, %310 : vector<2x32xf32>
    %320 = arith.addf %317, %319 : vector<2x32xf32>
    %321 = vector.extract_strided_slice %300 {offsets = [0, 64], sizes = [2, 32], strides = [1, 1]} : vector<2x96xf32> to vector<2x32xf32>
    %322 = math.tanh %315 : vector<2x32xf32>
    %323 = arith.mulf %321, %322 : vector<2x32xf32>
    %324 = vector.extract_strided_slice %306 {offsets = [0, 64], sizes = [2, 32], strides = [1, 1]} : vector<2x96xf32> to vector<2x32xf32>
    %325 = math.tanh %320 : vector<2x32xf32>
    %326 = arith.mulf %324, %325 : vector<2x32xf32>
    %327 = arith.index_cast %c5_i32 : i32 to index
    %c0_89 = arith.constant 0 : index
    %c0_90 = arith.constant 0 : index
    %328 = vector.load %arg5[%327, %c0_89, %c0_90] : memref<8x2x64xf32, #tpu.memory_space<vmem>>, vector<1x2x32xf32>
    %329 = vector.shape_cast %328 : vector<1x2x32xf32> to vector<2x32xf32>
    %330 = vector.shape_cast %323 : vector<2x32xf32> to vector<1x2x32xf32>
    tpu.vector_store %arg5[%327, %c0_89, %c0_90], %330 {strides = array<i32>} : memref<8x2x64xf32, #tpu.memory_space<vmem>>, vector<1x2x32xf32>,
    %331 = arith.index_cast %282 : i32 to index
    %c0_91 = arith.constant 0 : index
    %c32_92 = arith.constant 32 : index
    %332 = vector.load %arg5[%331, %c0_91, %c32_92] : memref<8x2x64xf32, #tpu.memory_space<vmem>>, vector<1x2x32xf32>
    %333 = vector.shape_cast %332 : vector<1x2x32xf32> to vector<2x32xf32>
    %334 = vector.shape_cast %326 : vector<2x32xf32> to vector<1x2x32xf32>
    tpu.vector_store %arg5[%331, %c0_91, %c32_92], %334 {strides = array<i32>} : memref<8x2x64xf32, #tpu.memory_space<vmem>>, vector<1x2x32xf32>,
    %c6_i32 = arith.constant 6 : i32
    %c7_i32_93 = arith.constant 7 : i32
    %335 = arith.subi %c7_i32_93, %c6_i32 : i32
    %336 = arith.index_cast %c6_i32 : i32 to index
    %c0_94 = arith.constant 0 : index
    %c0_95 = arith.constant 0 : index
    %337 = vector.load %arg8[%336, %c0_94, %c0_95] : memref<8x2x128xf32, #tpu.memory_space<vmem>>, vector<1x2x128xf32>
    %338 = vector.shape_cast %337 : vector<1x2x128xf32> to vector<2x128xf32>
    %339 = arith.truncf %323 : vector<2x32xf32> to vector<2x32xbf16>
    %cst_96 = arith.constant dense<0.000000e+00> : vector<2x128xf32>
    %340 = tpu.matmul %339, %14, %cst_96 {dimension_numbers = #tpu.dot_dimension_numbers<[1], [0], [0], [1], [0, 0, 1, 1], [], []>} : vector<2x32xbf16>, vector<32x128xbf16>, vector<2x128xf32> -> vector<2x128xf32>
    %341 = arith.addf %338, %340 : vector<2x128xf32>
    %342 = arith.index_cast %335 : i32 to index
    %c0_97 = arith.constant 0 : index
    %c0_98 = arith.constant 0 : index
    %343 = vector.load %arg9[%342, %c0_97, %c0_98] : memref<8x2x128xf32, #tpu.memory_space<vmem>>, vector<1x2x128xf32>
    %344 = vector.shape_cast %343 : vector<1x2x128xf32> to vector<2x128xf32>
    %345 = arith.truncf %326 : vector<2x32xf32> to vector<2x32xbf16>
    %cst_99 = arith.constant dense<0.000000e+00> : vector<2x128xf32>
    %346 = tpu.matmul %345, %15, %cst_99 {dimension_numbers = #tpu.dot_dimension_numbers<[1], [0], [0], [1], [0, 0, 1, 1], [], []>} : vector<2x32xbf16>, vector<32x128xbf16>, vector<2x128xf32> -> vector<2x128xf32>
    %347 = arith.addf %344, %346 : vector<2x128xf32>
    %348 = vector.extract_strided_slice %341 {offsets = [0, 0], sizes = [2, 96], strides = [1, 1]} : vector<2x128xf32> to vector<2x96xf32>
    %349 = arith.negf %348 : vector<2x96xf32>
    %350 = math.exp %349 : vector<2x96xf32>
    %cst_100 = arith.constant 1.000000e+00 : f32
    %351 = vector.broadcast %cst_100 : f32 to vector<2x96xf32>
    %352 = arith.addf %351, %350 : vector<2x96xf32>
    %353 = arith.divf %351, %352 : vector<2x96xf32>
    %354 = vector.extract_strided_slice %347 {offsets = [0, 0], sizes = [2, 96], strides = [1, 1]} : vector<2x128xf32> to vector<2x96xf32>
    %355 = arith.negf %354 : vector<2x96xf32>
    %356 = math.exp %355 : vector<2x96xf32>
    %cst_101 = arith.constant 1.000000e+00 : f32
    %357 = vector.broadcast %cst_101 : f32 to vector<2x96xf32>
    %358 = arith.addf %357, %356 : vector<2x96xf32>
    %359 = arith.divf %357, %358 : vector<2x96xf32>
    %360 = vector.extract_strided_slice %341 {offsets = [0, 96], sizes = [2, 32], strides = [1, 1]} : vector<2x128xf32> to vector<2x32xf32>
    %361 = math.tanh %360 : vector<2x32xf32>
    %362 = vector.extract_strided_slice %347 {offsets = [0, 96], sizes = [2, 32], strides = [1, 1]} : vector<2x128xf32> to vector<2x32xf32>
    %363 = math.tanh %362 : vector<2x32xf32>
    %364 = vector.extract_strided_slice %353 {offsets = [0, 32], sizes = [2, 32], strides = [1, 1]} : vector<2x96xf32> to vector<2x32xf32>
    %365 = arith.mulf %364, %315 : vector<2x32xf32>
    %366 = vector.extract_strided_slice %353 {offsets = [0, 0], sizes = [2, 32], strides = [1, 1]} : vector<2x96xf32> to vector<2x32xf32>
    %367 = arith.mulf %366, %361 : vector<2x32xf32>
    %368 = arith.addf %365, %367 : vector<2x32xf32>
    %369 = vector.extract_strided_slice %359 {offsets = [0, 32], sizes = [2, 32], strides = [1, 1]} : vector<2x96xf32> to vector<2x32xf32>
    %370 = arith.mulf %369, %320 : vector<2x32xf32>
    %371 = vector.extract_strided_slice %359 {offsets = [0, 0], sizes = [2, 32], strides = [1, 1]} : vector<2x96xf32> to vector<2x32xf32>
    %372 = arith.mulf %371, %363 : vector<2x32xf32>
    %373 = arith.addf %370, %372 : vector<2x32xf32>
    %374 = vector.extract_strided_slice %353 {offsets = [0, 64], sizes = [2, 32], strides = [1, 1]} : vector<2x96xf32> to vector<2x32xf32>
    %375 = math.tanh %368 : vector<2x32xf32>
    %376 = arith.mulf %374, %375 : vector<2x32xf32>
    %377 = vector.extract_strided_slice %359 {offsets = [0, 64], sizes = [2, 32], strides = [1, 1]} : vector<2x96xf32> to vector<2x32xf32>
    %378 = math.tanh %373 : vector<2x32xf32>
    %379 = arith.mulf %377, %378 : vector<2x32xf32>
    %380 = arith.index_cast %c6_i32 : i32 to index
    %c0_102 = arith.constant 0 : index
    %c0_103 = arith.constant 0 : index
    %381 = vector.load %arg5[%380, %c0_102, %c0_103] : memref<8x2x64xf32, #tpu.memory_space<vmem>>, vector<1x2x32xf32>
    %382 = vector.shape_cast %381 : vector<1x2x32xf32> to vector<2x32xf32>
    %383 = vector.shape_cast %376 : vector<2x32xf32> to vector<1x2x32xf32>
    tpu.vector_store %arg5[%380, %c0_102, %c0_103], %383 {strides = array<i32>} : memref<8x2x64xf32, #tpu.memory_space<vmem>>, vector<1x2x32xf32>,
    %384 = arith.index_cast %335 : i32 to index
    %c0_104 = arith.constant 0 : index
    %c32_105 = arith.constant 32 : index
    %385 = vector.load %arg5[%384, %c0_104, %c32_105] : memref<8x2x64xf32, #tpu.memory_space<vmem>>, vector<1x2x32xf32>
    %386 = vector.shape_cast %385 : vector<1x2x32xf32> to vector<2x32xf32>
    %387 = vector.shape_cast %379 : vector<2x32xf32> to vector<1x2x32xf32>
    tpu.vector_store %arg5[%384, %c0_104, %c32_105], %387 {strides = array<i32>} : memref<8x2x64xf32, #tpu.memory_space<vmem>>, vector<1x2x32xf32>,
    %c7_i32_106 = arith.constant 7 : i32
    %c7_i32_107 = arith.constant 7 : i32
    %388 = arith.subi %c7_i32_107, %c7_i32_106 : i32
    %389 = arith.index_cast %c7_i32_106 : i32 to index
    %c0_108 = arith.constant 0 : index
    %c0_109 = arith.constant 0 : index
    %390 = vector.load %arg8[%389, %c0_108, %c0_109] : memref<8x2x128xf32, #tpu.memory_space<vmem>>, vector<1x2x128xf32>
    %391 = vector.shape_cast %390 : vector<1x2x128xf32> to vector<2x128xf32>
    %392 = arith.truncf %376 : vector<2x32xf32> to vector<2x32xbf16>
    %cst_110 = arith.constant dense<0.000000e+00> : vector<2x128xf32>
    %393 = tpu.matmul %392, %14, %cst_110 {dimension_numbers = #tpu.dot_dimension_numbers<[1], [0], [0], [1], [0, 0, 1, 1], [], []>} : vector<2x32xbf16>, vector<32x128xbf16>, vector<2x128xf32> -> vector<2x128xf32>
    %394 = arith.addf %391, %393 : vector<2x128xf32>
    %395 = arith.index_cast %388 : i32 to index
    %c0_111 = arith.constant 0 : index
    %c0_112 = arith.constant 0 : index
    %396 = vector.load %arg9[%395, %c0_111, %c0_112] : memref<8x2x128xf32, #tpu.memory_space<vmem>>, vector<1x2x128xf32>
    %397 = vector.shape_cast %396 : vector<1x2x128xf32> to vector<2x128xf32>
    %398 = arith.truncf %379 : vector<2x32xf32> to vector<2x32xbf16>
    %cst_113 = arith.constant dense<0.000000e+00> : vector<2x128xf32>
    %399 = tpu.matmul %398, %15, %cst_113 {dimension_numbers = #tpu.dot_dimension_numbers<[1], [0], [0], [1], [0, 0, 1, 1], [], []>} : vector<2x32xbf16>, vector<32x128xbf16>, vector<2x128xf32> -> vector<2x128xf32>
    %400 = arith.addf %397, %399 : vector<2x128xf32>
    %401 = vector.extract_strided_slice %394 {offsets = [0, 0], sizes = [2, 96], strides = [1, 1]} : vector<2x128xf32> to vector<2x96xf32>
    %402 = arith.negf %401 : vector<2x96xf32>
    %403 = math.exp %402 : vector<2x96xf32>
    %cst_114 = arith.constant 1.000000e+00 : f32
    %404 = vector.broadcast %cst_114 : f32 to vector<2x96xf32>
    %405 = arith.addf %404, %403 : vector<2x96xf32>
    %406 = arith.divf %404, %405 : vector<2x96xf32>
    %407 = vector.extract_strided_slice %400 {offsets = [0, 0], sizes = [2, 96], strides = [1, 1]} : vector<2x128xf32> to vector<2x96xf32>
    %408 = arith.negf %407 : vector<2x96xf32>
    %409 = math.exp %408 : vector<2x96xf32>
    %cst_115 = arith.constant 1.000000e+00 : f32
    %410 = vector.broadcast %cst_115 : f32 to vector<2x96xf32>
    %411 = arith.addf %410, %409 : vector<2x96xf32>
    %412 = arith.divf %410, %411 : vector<2x96xf32>
    %413 = vector.extract_strided_slice %394 {offsets = [0, 96], sizes = [2, 32], strides = [1, 1]} : vector<2x128xf32> to vector<2x32xf32>
    %414 = math.tanh %413 : vector<2x32xf32>
    %415 = vector.extract_strided_slice %400 {offsets = [0, 96], sizes = [2, 32], strides = [1, 1]} : vector<2x128xf32> to vector<2x32xf32>
    %416 = math.tanh %415 : vector<2x32xf32>
    %417 = vector.extract_strided_slice %406 {offsets = [0, 32], sizes = [2, 32], strides = [1, 1]} : vector<2x96xf32> to vector<2x32xf32>
    %418 = arith.mulf %417, %368 : vector<2x32xf32>
    %419 = vector.extract_strided_slice %406 {offsets = [0, 0], sizes = [2, 32], strides = [1, 1]} : vector<2x96xf32> to vector<2x32xf32>
    %420 = arith.mulf %419, %414 : vector<2x32xf32>
    %421 = arith.addf %418, %420 : vector<2x32xf32>
    %422 = vector.extract_strided_slice %412 {offsets = [0, 32], sizes = [2, 32], strides = [1, 1]} : vector<2x96xf32> to vector<2x32xf32>
    %423 = arith.mulf %422, %373 : vector<2x32xf32>
    %424 = vector.extract_strided_slice %412 {offsets = [0, 0], sizes = [2, 32], strides = [1, 1]} : vector<2x96xf32> to vector<2x32xf32>
    %425 = arith.mulf %424, %416 : vector<2x32xf32>
    %426 = arith.addf %423, %425 : vector<2x32xf32>
    %427 = vector.extract_strided_slice %406 {offsets = [0, 64], sizes = [2, 32], strides = [1, 1]} : vector<2x96xf32> to vector<2x32xf32>
    %428 = math.tanh %421 : vector<2x32xf32>
    %429 = arith.mulf %427, %428 : vector<2x32xf32>
    %430 = vector.extract_strided_slice %412 {offsets = [0, 64], sizes = [2, 32], strides = [1, 1]} : vector<2x96xf32> to vector<2x32xf32>
    %431 = math.tanh %426 : vector<2x32xf32>
    %432 = arith.mulf %430, %431 : vector<2x32xf32>
    %433 = arith.index_cast %c7_i32_106 : i32 to index
    %c0_116 = arith.constant 0 : index
    %c0_117 = arith.constant 0 : index
    %434 = vector.load %arg5[%433, %c0_116, %c0_117] : memref<8x2x64xf32, #tpu.memory_space<vmem>>, vector<1x2x32xf32>
    %435 = vector.shape_cast %434 : vector<1x2x32xf32> to vector<2x32xf32>
    %436 = vector.shape_cast %429 : vector<2x32xf32> to vector<1x2x32xf32>
    tpu.vector_store %arg5[%433, %c0_116, %c0_117], %436 {strides = array<i32>} : memref<8x2x64xf32, #tpu.memory_space<vmem>>, vector<1x2x32xf32>,
    %437 = arith.index_cast %388 : i32 to index
    %c0_118 = arith.constant 0 : index
    %c32_119 = arith.constant 32 : index
    %438 = vector.load %arg5[%437, %c0_118, %c32_119] : memref<8x2x64xf32, #tpu.memory_space<vmem>>, vector<1x2x32xf32>
    %439 = vector.shape_cast %438 : vector<1x2x32xf32> to vector<2x32xf32>
    %440 = vector.shape_cast %432 : vector<2x32xf32> to vector<1x2x32xf32>
    tpu.vector_store %arg5[%437, %c0_118, %c32_119], %440 {strides = array<i32>} : memref<8x2x64xf32, #tpu.memory_space<vmem>>, vector<1x2x32xf32>,
    %c8_i32 = arith.constant 8 : i32
    %c0_120 = arith.constant 0 : index
    %c0_121 = arith.constant 0 : index
    %c0_122 = arith.constant 0 : index
    %441 = vector.load %arg6[%c0_120, %c0_121, %c0_122] : memref<2x2x32xf32, #tpu.memory_space<vmem>>, vector<1x2x32xf32>
    %442 = vector.shape_cast %441 : vector<1x2x32xf32> to vector<2x32xf32>
    %443 = vector.shape_cast %429 : vector<2x32xf32> to vector<1x2x32xf32>
    tpu.vector_store %arg6[%c0_120, %c0_121, %c0_122], %443 {strides = array<i32>} : memref<2x2x32xf32, #tpu.memory_space<vmem>>, vector<1x2x32xf32>,
    %c1 = arith.constant 1 : index
    %c0_123 = arith.constant 0 : index
    %c0_124 = arith.constant 0 : index
    %444 = vector.load %arg6[%c1, %c0_123, %c0_124] : memref<2x2x32xf32, #tpu.memory_space<vmem>>, vector<1x2x32xf32>
    %445 = vector.shape_cast %444 : vector<1x2x32xf32> to vector<2x32xf32>
    %446 = vector.shape_cast %432 : vector<2x32xf32> to vector<1x2x32xf32>
    tpu.vector_store %arg6[%c1, %c0_123, %c0_124], %446 {strides = array<i32>} : memref<2x2x32xf32, #tpu.memory_space<vmem>>, vector<1x2x32xf32>,
    %c0_125 = arith.constant 0 : index
    %c0_126 = arith.constant 0 : index
    %c0_127 = arith.constant 0 : index
    %447 = vector.load %arg7[%c0_125, %c0_126, %c0_127] : memref<2x2x32xf32, #tpu.memory_space<vmem>>, vector<1x2x32xf32>
    %448 = vector.shape_cast %447 : vector<1x2x32xf32> to vector<2x32xf32>
    %449 = vector.shape_cast %421 : vector<2x32xf32> to vector<1x2x32xf32>
    tpu.vector_store %arg7[%c0_125, %c0_126, %c0_127], %449 {strides = array<i32>} : memref<2x2x32xf32, #tpu.memory_space<vmem>>, vector<1x2x32xf32>,
    %c1_128 = arith.constant 1 : index
    %c0_129 = arith.constant 0 : index
    %c0_130 = arith.constant 0 : index
    %450 = vector.load %arg7[%c1_128, %c0_129, %c0_130] : memref<2x2x32xf32, #tpu.memory_space<vmem>>, vector<1x2x32xf32>
    %451 = vector.shape_cast %450 : vector<1x2x32xf32> to vector<2x32xf32>
    %452 = vector.shape_cast %426 : vector<2x32xf32> to vector<1x2x32xf32>
    tpu.vector_store %arg7[%c1_128, %c0_129, %c0_130], %452 {strides = array<i32>} : memref<2x2x32xf32, #tpu.memory_space<vmem>>, vector<1x2x32xf32>,
    return
  }
}

module attributes {stable_mosaic.version = 11 : i64} {
  func.func @_bilstm_kernel(%arg0: memref<8x2x64xf32, #tpu.memory_space<vmem>>, %arg1: memref<64x256xbf16, #tpu.memory_space<vmem>>, %arg2: memref<32x128xbf16, #tpu.memory_space<vmem>>, %arg3: memref<32x128xbf16, #tpu.memory_space<vmem>>, %arg4: memref<1x256xf32, #tpu.memory_space<vmem>>, %arg5: memref<8x2x64xf32, #tpu.memory_space<vmem>>, %arg6: memref<2x2x32xf32, #tpu.memory_space<vmem>>, %arg7: memref<2x2x32xf32, #tpu.memory_space<vmem>>, %arg8: memref<8x2x128xf32, #tpu.memory_space<vmem>>, %arg9: memref<8x2x128xf32, #tpu.memory_space<vmem>>) attributes {dimension_semantics = [], scalar_prefetch = 0 : i64, scratch_operands = 2 : i64, tpu.core_type = #tpu.core_type<tc>} {
    %c0 = arith.constant 0 : index
    %c0_0 = arith.constant 0 : index
    %c0_1 = arith.constant 0 : index
    %0 = vector.load %arg0[%c0, %c0_0, %c0_1] : memref<8x2x64xf32, #tpu.memory_space<vmem>>, vector<8x2x64xf32>
    %1 = vector.shape_cast %0 : vector<8x2x64xf32> to vector<16x64xf32>
    %2 = arith.truncf %1 : vector<16x64xf32> to vector<16x64xbf16>
    %c0_2 = arith.constant 0 : index
    %c0_3 = arith.constant 0 : index
    %3 = vector.load %arg1[%c0_2, %c0_3] : memref<64x256xbf16, #tpu.memory_space<vmem>>, vector<64x256xbf16>
    %cst = arith.constant dense<0.000000e+00> : vector<16x256xf32>
    %4 = tpu.matmul %2, %3, %cst {dimension_numbers = #tpu.dot_dimension_numbers<[1], [0], [0], [1], [0, 0, 1, 1], [], []>} : vector<16x64xbf16>, vector<64x256xbf16>, vector<16x256xf32> -> vector<16x256xf32>
    %c0_4 = arith.constant 0 : index
    %c0_5 = arith.constant 0 : index
    %5 = vector.load %arg4[%c0_4, %c0_5] : memref<1x256xf32, #tpu.memory_space<vmem>>, vector<1x256xf32>
    %6 = vector.broadcast %5 : vector<1x256xf32> to vector<16x256xf32>
    %7 = arith.addf %4, %6 : vector<16x256xf32>
    %8 = vector.extract_strided_slice %7 {offsets = [0, 0], sizes = [16, 128], strides = [1, 1]} : vector<16x256xf32> to vector<16x128xf32>
    %9 = vector.shape_cast %8 : vector<16x128xf32> to vector<8x2x128xf32>
    %c0_6 = arith.constant 0 : index
    %c0_7 = arith.constant 0 : index
    %c0_8 = arith.constant 0 : index
    %10 = vector.load %arg8[%c0_6, %c0_7, %c0_8] : memref<8x2x128xf32, #tpu.memory_space<vmem>>, vector<8x2x128xf32>
    tpu.vector_store %arg8[%c0_6, %c0_7, %c0_8], %9 {strides = array<i32>} : memref<8x2x128xf32, #tpu.memory_space<vmem>>, vector<8x2x128xf32>,
    %11 = vector.extract_strided_slice %7 {offsets = [0, 128], sizes = [16, 128], strides = [1, 1]} : vector<16x256xf32> to vector<16x128xf32>
    %12 = vector.shape_cast %11 : vector<16x128xf32> to vector<8x2x128xf32>
    %c0_9 = arith.constant 0 : index
    %c0_10 = arith.constant 0 : index
    %c0_11 = arith.constant 0 : index
    %13 = vector.load %arg9[%c0_9, %c0_10, %c0_11] : memref<8x2x128xf32, #tpu.memory_space<vmem>>, vector<8x2x128xf32>
    tpu.vector_store %arg9[%c0_9, %c0_10, %c0_11], %12 {strides = array<i32>} : memref<8x2x128xf32, #tpu.memory_space<vmem>>, vector<8x2x128xf32>,
    %c0_12 = arith.constant 0 : index
    %c0_13 = arith.constant 0 : index
    %14 = vector.load %arg2[%c0_12, %c0_13] : memref<32x128xbf16, #tpu.memory_space<vmem>>, vector<32x128xbf16>
    %c0_14 = arith.constant 0 : index
    %c0_15 = arith.constant 0 : index
    %15 = vector.load %arg3[%c0_14, %c0_15] : memref<32x128xbf16, #tpu.memory_space<vmem>>, vector<32x128xbf16>
    %cst_16 = arith.constant 0.000000e+00 : f32
    %16 = vector.broadcast %cst_16 : f32 to vector<2x32xf32>
    %c0_i32 = arith.constant 0 : i32
    %c7_i32 = arith.constant 7 : i32
    %17 = arith.subi %c7_i32, %c0_i32 : i32
    %18 = arith.index_cast %c0_i32 : i32 to index
    %c0_17 = arith.constant 0 : index
    %c0_18 = arith.constant 0 : index
    %19 = vector.load %arg8[%18, %c0_17, %c0_18] : memref<8x2x128xf32, #tpu.memory_space<vmem>>, vector<1x2x128xf32>
    %20 = vector.shape_cast %19 : vector<1x2x128xf32> to vector<2x128xf32>
    %21 = arith.truncf %16 : vector<2x32xf32> to vector<2x32xbf16>
    %cst_19 = arith.constant dense<0.000000e+00> : vector<2x128xf32>
    %22 = tpu.matmul %21, %14, %cst_19 {dimension_numbers = #tpu.dot_dimension_numbers<[1], [0], [0], [1], [0, 0, 1, 1], [], []>} : vector<2x32xbf16>, vector<32x128xbf16>, vector<2x128xf32> -> vector<2x128xf32>
    %23 = arith.addf %20, %22 : vector<2x128xf32>
    %24 = arith.index_cast %17 : i32 to index
    %c0_20 = arith.constant 0 : index
    %c0_21 = arith.constant 0 : index
    %25 = vector.load %arg9[%24, %c0_20, %c0_21] : memref<8x2x128xf32, #tpu.memory_space<vmem>>, vector<1x2x128xf32>
    %26 = vector.shape_cast %25 : vector<1x2x128xf32> to vector<2x128xf32>
    %27 = arith.truncf %16 : vector<2x32xf32> to vector<2x32xbf16>
    %cst_22 = arith.constant dense<0.000000e+00> : vector<2x128xf32>
    %28 = tpu.matmul %27, %15, %cst_22 {dimension_numbers = #tpu.dot_dimension_numbers<[1], [0], [0], [1], [0, 0, 1, 1], [], []>} : vector<2x32xbf16>, vector<32x128xbf16>, vector<2x128xf32> -> vector<2x128xf32>
    %29 = arith.addf %26, %28 : vector<2x128xf32>
    %30 = vector.extract_strided_slice %23 {offsets = [0, 0], sizes = [2, 96], strides = [1, 1]} : vector<2x128xf32> to vector<2x96xf32>
    %31 = arith.negf %30 : vector<2x96xf32>
    %32 = math.exp %31 : vector<2x96xf32>
    %cst_23 = arith.constant 1.000000e+00 : f32
    %33 = vector.broadcast %cst_23 : f32 to vector<2x96xf32>
    %34 = arith.addf %33, %32 : vector<2x96xf32>
    %35 = arith.divf %33, %34 : vector<2x96xf32>
    %36 = vector.extract_strided_slice %29 {offsets = [0, 0], sizes = [2, 96], strides = [1, 1]} : vector<2x128xf32> to vector<2x96xf32>
    %37 = arith.negf %36 : vector<2x96xf32>
    %38 = math.exp %37 : vector<2x96xf32>
    %cst_24 = arith.constant 1.000000e+00 : f32
    %39 = vector.broadcast %cst_24 : f32 to vector<2x96xf32>
    %40 = arith.addf %39, %38 : vector<2x96xf32>
    %41 = arith.divf %39, %40 : vector<2x96xf32>
    %42 = vector.extract_strided_slice %23 {offsets = [0, 96], sizes = [2, 32], strides = [1, 1]} : vector<2x128xf32> to vector<2x32xf32>
    %43 = math.tanh %42 : vector<2x32xf32>
    %44 = vector.extract_strided_slice %29 {offsets = [0, 96], sizes = [2, 32], strides = [1, 1]} : vector<2x128xf32> to vector<2x32xf32>
    %45 = math.tanh %44 : vector<2x32xf32>
    %46 = vector.extract_strided_slice %35 {offsets = [0, 32], sizes = [2, 32], strides = [1, 1]} : vector<2x96xf32> to vector<2x32xf32>
    %47 = arith.mulf %46, %16 : vector<2x32xf32>
    %48 = vector.extract_strided_slice %35 {offsets = [0, 0], sizes = [2, 32], strides = [1, 1]} : vector<2x96xf32> to vector<2x32xf32>
    %49 = arith.mulf %48, %43 : vector<2x32xf32>
    %50 = arith.addf %47, %49 : vector<2x32xf32>
    %51 = vector.extract_strided_slice %41 {offsets = [0, 32], sizes = [2, 32], strides = [1, 1]} : vector<2x96xf32> to vector<2x32xf32>
    %52 = arith.mulf %51, %16 : vector<2x32xf32>
    %53 = vector.extract_strided_slice %41 {offsets = [0, 0], sizes = [2, 32], strides = [1, 1]} : vector<2x96xf32> to vector<2x32xf32>
    %54 = arith.mulf %53, %45 : vector<2x32xf32>
    %55 = arith.addf %52, %54 : vector<2x32xf32>
    %56 = vector.extract_strided_slice %35 {offsets = [0, 64], sizes = [2, 32], strides = [1, 1]} : vector<2x96xf32> to vector<2x32xf32>
    %57 = math.tanh %50 : vector<2x32xf32>
    %58 = arith.mulf %56, %57 : vector<2x32xf32>
    %59 = vector.extract_strided_slice %41 {offsets = [0, 64], sizes = [2, 32], strides = [1, 1]} : vector<2x96xf32> to vector<2x32xf32>
    %60 = math.tanh %55 : vector<2x32xf32>
    %61 = arith.mulf %59, %60 : vector<2x32xf32>
    %62 = arith.index_cast %c0_i32 : i32 to index
    %c0_25 = arith.constant 0 : index
    %c0_26 = arith.constant 0 : index
    %63 = vector.load %arg5[%62, %c0_25, %c0_26] : memref<8x2x64xf32, #tpu.memory_space<vmem>>, vector<1x2x32xf32>
    %64 = vector.shape_cast %63 : vector<1x2x32xf32> to vector<2x32xf32>
    %65 = vector.shape_cast %58 : vector<2x32xf32> to vector<1x2x32xf32>
    tpu.vector_store %arg5[%62, %c0_25, %c0_26], %65 {strides = array<i32>} : memref<8x2x64xf32, #tpu.memory_space<vmem>>, vector<1x2x32xf32>,
    %66 = arith.index_cast %17 : i32 to index
    %c0_27 = arith.constant 0 : index
    %c32 = arith.constant 32 : index
    %67 = vector.load %arg5[%66, %c0_27, %c32] : memref<8x2x64xf32, #tpu.memory_space<vmem>>, vector<1x2x32xf32>
    %68 = vector.shape_cast %67 : vector<1x2x32xf32> to vector<2x32xf32>
    %69 = vector.shape_cast %61 : vector<2x32xf32> to vector<1x2x32xf32>
    tpu.vector_store %arg5[%66, %c0_27, %c32], %69 {strides = array<i32>} : memref<8x2x64xf32, #tpu.memory_space<vmem>>, vector<1x2x32xf32>,
    %c1_i32 = arith.constant 1 : i32
    %c7_i32_28 = arith.constant 7 : i32
    %70 = arith.subi %c7_i32_28, %c1_i32 : i32
    %71 = arith.index_cast %c1_i32 : i32 to index
    %c0_29 = arith.constant 0 : index
    %c0_30 = arith.constant 0 : index
    %72 = vector.load %arg8[%71, %c0_29, %c0_30] : memref<8x2x128xf32, #tpu.memory_space<vmem>>, vector<1x2x128xf32>
    %73 = vector.shape_cast %72 : vector<1x2x128xf32> to vector<2x128xf32>
    %74 = arith.truncf %58 : vector<2x32xf32> to vector<2x32xbf16>
    %cst_31 = arith.constant dense<0.000000e+00> : vector<2x128xf32>
    %75 = tpu.matmul %74, %14, %cst_31 {dimension_numbers = #tpu.dot_dimension_numbers<[1], [0], [0], [1], [0, 0, 1, 1], [], []>} : vector<2x32xbf16>, vector<32x128xbf16>, vector<2x128xf32> -> vector<2x128xf32>
    %76 = arith.addf %73, %75 : vector<2x128xf32>
    %77 = arith.index_cast %70 : i32 to index
    %c0_32 = arith.constant 0 : index
    %c0_33 = arith.constant 0 : index
    %78 = vector.load %arg9[%77, %c0_32, %c0_33] : memref<8x2x128xf32, #tpu.memory_space<vmem>>, vector<1x2x128xf32>
    %79 = vector.shape_cast %78 : vector<1x2x128xf32> to vector<2x128xf32>
    %80 = arith.truncf %61 : vector<2x32xf32> to vector<2x32xbf16>
    %cst_34 = arith.constant dense<0.000000e+00> : vector<2x128xf32>
    %81 = tpu.matmul %80, %15, %cst_34 {dimension_numbers = #tpu.dot_dimension_numbers<[1], [0], [0], [1], [0, 0, 1, 1], [], []>} : vector<2x32xbf16>, vector<32x128xbf16>, vector<2x128xf32> -> vector<2x128xf32>
    %82 = arith.addf %79, %81 : vector<2x128xf32>
    %83 = vector.extract_strided_slice %76 {offsets = [0, 0], sizes = [2, 96], strides = [1, 1]} : vector<2x128xf32> to vector<2x96xf32>
    %84 = arith.negf %83 : vector<2x96xf32>
    %85 = math.exp %84 : vector<2x96xf32>
    %cst_35 = arith.constant 1.000000e+00 : f32
    %86 = vector.broadcast %cst_35 : f32 to vector<2x96xf32>
    %87 = arith.addf %86, %85 : vector<2x96xf32>
    %88 = arith.divf %86, %87 : vector<2x96xf32>
    %89 = vector.extract_strided_slice %82 {offsets = [0, 0], sizes = [2, 96], strides = [1, 1]} : vector<2x128xf32> to vector<2x96xf32>
    %90 = arith.negf %89 : vector<2x96xf32>
    %91 = math.exp %90 : vector<2x96xf32>
    %cst_36 = arith.constant 1.000000e+00 : f32
    %92 = vector.broadcast %cst_36 : f32 to vector<2x96xf32>
    %93 = arith.addf %92, %91 : vector<2x96xf32>
    %94 = arith.divf %92, %93 : vector<2x96xf32>
    %95 = vector.extract_strided_slice %76 {offsets = [0, 96], sizes = [2, 32], strides = [1, 1]} : vector<2x128xf32> to vector<2x32xf32>
    %96 = math.tanh %95 : vector<2x32xf32>
    %97 = vector.extract_strided_slice %82 {offsets = [0, 96], sizes = [2, 32], strides = [1, 1]} : vector<2x128xf32> to vector<2x32xf32>
    %98 = math.tanh %97 : vector<2x32xf32>
    %99 = vector.extract_strided_slice %88 {offsets = [0, 32], sizes = [2, 32], strides = [1, 1]} : vector<2x96xf32> to vector<2x32xf32>
    %100 = arith.mulf %99, %50 : vector<2x32xf32>
    %101 = vector.extract_strided_slice %88 {offsets = [0, 0], sizes = [2, 32], strides = [1, 1]} : vector<2x96xf32> to vector<2x32xf32>
    %102 = arith.mulf %101, %96 : vector<2x32xf32>
    %103 = arith.addf %100, %102 : vector<2x32xf32>
    %104 = vector.extract_strided_slice %94 {offsets = [0, 32], sizes = [2, 32], strides = [1, 1]} : vector<2x96xf32> to vector<2x32xf32>
    %105 = arith.mulf %104, %55 : vector<2x32xf32>
    %106 = vector.extract_strided_slice %94 {offsets = [0, 0], sizes = [2, 32], strides = [1, 1]} : vector<2x96xf32> to vector<2x32xf32>
    %107 = arith.mulf %106, %98 : vector<2x32xf32>
    %108 = arith.addf %105, %107 : vector<2x32xf32>
    %109 = vector.extract_strided_slice %88 {offsets = [0, 64], sizes = [2, 32], strides = [1, 1]} : vector<2x96xf32> to vector<2x32xf32>
    %110 = math.tanh %103 : vector<2x32xf32>
    %111 = arith.mulf %109, %110 : vector<2x32xf32>
    %112 = vector.extract_strided_slice %94 {offsets = [0, 64], sizes = [2, 32], strides = [1, 1]} : vector<2x96xf32> to vector<2x32xf32>
    %113 = math.tanh %108 : vector<2x32xf32>
    %114 = arith.mulf %112, %113 : vector<2x32xf32>
    %115 = arith.index_cast %c1_i32 : i32 to index
    %c0_37 = arith.constant 0 : index
    %c0_38 = arith.constant 0 : index
    %116 = vector.load %arg5[%115, %c0_37, %c0_38] : memref<8x2x64xf32, #tpu.memory_space<vmem>>, vector<1x2x32xf32>
    %117 = vector.shape_cast %116 : vector<1x2x32xf32> to vector<2x32xf32>
    %118 = vector.shape_cast %111 : vector<2x32xf32> to vector<1x2x32xf32>
    tpu.vector_store %arg5[%115, %c0_37, %c0_38], %118 {strides = array<i32>} : memref<8x2x64xf32, #tpu.memory_space<vmem>>, vector<1x2x32xf32>,
    %119 = arith.index_cast %70 : i32 to index
    %c0_39 = arith.constant 0 : index
    %c32_40 = arith.constant 32 : index
    %120 = vector.load %arg5[%119, %c0_39, %c32_40] : memref<8x2x64xf32, #tpu.memory_space<vmem>>, vector<1x2x32xf32>
    %121 = vector.shape_cast %120 : vector<1x2x32xf32> to vector<2x32xf32>
    %122 = vector.shape_cast %114 : vector<2x32xf32> to vector<1x2x32xf32>
    tpu.vector_store %arg5[%119, %c0_39, %c32_40], %122 {strides = array<i32>} : memref<8x2x64xf32, #tpu.memory_space<vmem>>, vector<1x2x32xf32>,
    %c2_i32 = arith.constant 2 : i32
    %c7_i32_41 = arith.constant 7 : i32
    %123 = arith.subi %c7_i32_41, %c2_i32 : i32
    %124 = arith.index_cast %c2_i32 : i32 to index
    %c0_42 = arith.constant 0 : index
    %c0_43 = arith.constant 0 : index
    %125 = vector.load %arg8[%124, %c0_42, %c0_43] : memref<8x2x128xf32, #tpu.memory_space<vmem>>, vector<1x2x128xf32>
    %126 = vector.shape_cast %125 : vector<1x2x128xf32> to vector<2x128xf32>
    %127 = arith.truncf %111 : vector<2x32xf32> to vector<2x32xbf16>
    %cst_44 = arith.constant dense<0.000000e+00> : vector<2x128xf32>
    %128 = tpu.matmul %127, %14, %cst_44 {dimension_numbers = #tpu.dot_dimension_numbers<[1], [0], [0], [1], [0, 0, 1, 1], [], []>} : vector<2x32xbf16>, vector<32x128xbf16>, vector<2x128xf32> -> vector<2x128xf32>
    %129 = arith.addf %126, %128 : vector<2x128xf32>
    %130 = arith.index_cast %123 : i32 to index
    %c0_45 = arith.constant 0 : index
    %c0_46 = arith.constant 0 : index
    %131 = vector.load %arg9[%130, %c0_45, %c0_46] : memref<8x2x128xf32, #tpu.memory_space<vmem>>, vector<1x2x128xf32>
    %132 = vector.shape_cast %131 : vector<1x2x128xf32> to vector<2x128xf32>
    %133 = arith.truncf %114 : vector<2x32xf32> to vector<2x32xbf16>
    %cst_47 = arith.constant dense<0.000000e+00> : vector<2x128xf32>
    %134 = tpu.matmul %133, %15, %cst_47 {dimension_numbers = #tpu.dot_dimension_numbers<[1], [0], [0], [1], [0, 0, 1, 1], [], []>} : vector<2x32xbf16>, vector<32x128xbf16>, vector<2x128xf32> -> vector<2x128xf32>
    %135 = arith.addf %132, %134 : vector<2x128xf32>
    %136 = vector.extract_strided_slice %129 {offsets = [0, 0], sizes = [2, 96], strides = [1, 1]} : vector<2x128xf32> to vector<2x96xf32>
    %137 = arith.negf %136 : vector<2x96xf32>
    %138 = math.exp %137 : vector<2x96xf32>
    %cst_48 = arith.constant 1.000000e+00 : f32
    %139 = vector.broadcast %cst_48 : f32 to vector<2x96xf32>
    %140 = arith.addf %139, %138 : vector<2x96xf32>
    %141 = arith.divf %139, %140 : vector<2x96xf32>
    %142 = vector.extract_strided_slice %135 {offsets = [0, 0], sizes = [2, 96], strides = [1, 1]} : vector<2x128xf32> to vector<2x96xf32>
    %143 = arith.negf %142 : vector<2x96xf32>
    %144 = math.exp %143 : vector<2x96xf32>
    %cst_49 = arith.constant 1.000000e+00 : f32
    %145 = vector.broadcast %cst_49 : f32 to vector<2x96xf32>
    %146 = arith.addf %145, %144 : vector<2x96xf32>
    %147 = arith.divf %145, %146 : vector<2x96xf32>
    %148 = vector.extract_strided_slice %129 {offsets = [0, 96], sizes = [2, 32], strides = [1, 1]} : vector<2x128xf32> to vector<2x32xf32>
    %149 = math.tanh %148 : vector<2x32xf32>
    %150 = vector.extract_strided_slice %135 {offsets = [0, 96], sizes = [2, 32], strides = [1, 1]} : vector<2x128xf32> to vector<2x32xf32>
    %151 = math.tanh %150 : vector<2x32xf32>
    %152 = vector.extract_strided_slice %141 {offsets = [0, 32], sizes = [2, 32], strides = [1, 1]} : vector<2x96xf32> to vector<2x32xf32>
    %153 = arith.mulf %152, %103 : vector<2x32xf32>
    %154 = vector.extract_strided_slice %141 {offsets = [0, 0], sizes = [2, 32], strides = [1, 1]} : vector<2x96xf32> to vector<2x32xf32>
    %155 = arith.mulf %154, %149 : vector<2x32xf32>
    %156 = arith.addf %153, %155 : vector<2x32xf32>
    %157 = vector.extract_strided_slice %147 {offsets = [0, 32], sizes = [2, 32], strides = [1, 1]} : vector<2x96xf32> to vector<2x32xf32>
    %158 = arith.mulf %157, %108 : vector<2x32xf32>
    %159 = vector.extract_strided_slice %147 {offsets = [0, 0], sizes = [2, 32], strides = [1, 1]} : vector<2x96xf32> to vector<2x32xf32>
    %160 = arith.mulf %159, %151 : vector<2x32xf32>
    %161 = arith.addf %158, %160 : vector<2x32xf32>
    %162 = vector.extract_strided_slice %141 {offsets = [0, 64], sizes = [2, 32], strides = [1, 1]} : vector<2x96xf32> to vector<2x32xf32>
    %163 = math.tanh %156 : vector<2x32xf32>
    %164 = arith.mulf %162, %163 : vector<2x32xf32>
    %165 = vector.extract_strided_slice %147 {offsets = [0, 64], sizes = [2, 32], strides = [1, 1]} : vector<2x96xf32> to vector<2x32xf32>
    %166 = math.tanh %161 : vector<2x32xf32>
    %167 = arith.mulf %165, %166 : vector<2x32xf32>
    %168 = arith.index_cast %c2_i32 : i32 to index
    %c0_50 = arith.constant 0 : index
    %c0_51 = arith.constant 0 : index
    %169 = vector.load %arg5[%168, %c0_50, %c0_51] : memref<8x2x64xf32, #tpu.memory_space<vmem>>, vector<1x2x32xf32>
    %170 = vector.shape_cast %169 : vector<1x2x32xf32> to vector<2x32xf32>
    %171 = vector.shape_cast %164 : vector<2x32xf32> to vector<1x2x32xf32>
    tpu.vector_store %arg5[%168, %c0_50, %c0_51], %171 {strides = array<i32>} : memref<8x2x64xf32, #tpu.memory_space<vmem>>, vector<1x2x32xf32>,
    %172 = arith.index_cast %123 : i32 to index
    %c0_52 = arith.constant 0 : index
    %c32_53 = arith.constant 32 : index
    %173 = vector.load %arg5[%172, %c0_52, %c32_53] : memref<8x2x64xf32, #tpu.memory_space<vmem>>, vector<1x2x32xf32>
    %174 = vector.shape_cast %173 : vector<1x2x32xf32> to vector<2x32xf32>
    %175 = vector.shape_cast %167 : vector<2x32xf32> to vector<1x2x32xf32>
    tpu.vector_store %arg5[%172, %c0_52, %c32_53], %175 {strides = array<i32>} : memref<8x2x64xf32, #tpu.memory_space<vmem>>, vector<1x2x32xf32>,
    %c3_i32 = arith.constant 3 : i32
    %c7_i32_54 = arith.constant 7 : i32
    %176 = arith.subi %c7_i32_54, %c3_i32 : i32
    %177 = arith.index_cast %c3_i32 : i32 to index
    %c0_55 = arith.constant 0 : index
    %c0_56 = arith.constant 0 : index
    %178 = vector.load %arg8[%177, %c0_55, %c0_56] : memref<8x2x128xf32, #tpu.memory_space<vmem>>, vector<1x2x128xf32>
    %179 = vector.shape_cast %178 : vector<1x2x128xf32> to vector<2x128xf32>
    %180 = arith.truncf %164 : vector<2x32xf32> to vector<2x32xbf16>
    %cst_57 = arith.constant dense<0.000000e+00> : vector<2x128xf32>
    %181 = tpu.matmul %180, %14, %cst_57 {dimension_numbers = #tpu.dot_dimension_numbers<[1], [0], [0], [1], [0, 0, 1, 1], [], []>} : vector<2x32xbf16>, vector<32x128xbf16>, vector<2x128xf32> -> vector<2x128xf32>
    %182 = arith.addf %179, %181 : vector<2x128xf32>
    %183 = arith.index_cast %176 : i32 to index
    %c0_58 = arith.constant 0 : index
    %c0_59 = arith.constant 0 : index
    %184 = vector.load %arg9[%183, %c0_58, %c0_59] : memref<8x2x128xf32, #tpu.memory_space<vmem>>, vector<1x2x128xf32>
    %185 = vector.shape_cast %184 : vector<1x2x128xf32> to vector<2x128xf32>
    %186 = arith.truncf %167 : vector<2x32xf32> to vector<2x32xbf16>
    %cst_60 = arith.constant dense<0.000000e+00> : vector<2x128xf32>
    %187 = tpu.matmul %186, %15, %cst_60 {dimension_numbers = #tpu.dot_dimension_numbers<[1], [0], [0], [1], [0, 0, 1, 1], [], []>} : vector<2x32xbf16>, vector<32x128xbf16>, vector<2x128xf32> -> vector<2x128xf32>
    %188 = arith.addf %185, %187 : vector<2x128xf32>
    %189 = vector.extract_strided_slice %182 {offsets = [0, 0], sizes = [2, 96], strides = [1, 1]} : vector<2x128xf32> to vector<2x96xf32>
    %190 = arith.negf %189 : vector<2x96xf32>
    %191 = math.exp %190 : vector<2x96xf32>
    %cst_61 = arith.constant 1.000000e+00 : f32
    %192 = vector.broadcast %cst_61 : f32 to vector<2x96xf32>
    %193 = arith.addf %192, %191 : vector<2x96xf32>
    %194 = arith.divf %192, %193 : vector<2x96xf32>
    %195 = vector.extract_strided_slice %188 {offsets = [0, 0], sizes = [2, 96], strides = [1, 1]} : vector<2x128xf32> to vector<2x96xf32>
    %196 = arith.negf %195 : vector<2x96xf32>
    %197 = math.exp %196 : vector<2x96xf32>
    %cst_62 = arith.constant 1.000000e+00 : f32
    %198 = vector.broadcast %cst_62 : f32 to vector<2x96xf32>
    %199 = arith.addf %198, %197 : vector<2x96xf32>
    %200 = arith.divf %198, %199 : vector<2x96xf32>
    %201 = vector.extract_strided_slice %182 {offsets = [0, 96], sizes = [2, 32], strides = [1, 1]} : vector<2x128xf32> to vector<2x32xf32>
    %202 = math.tanh %201 : vector<2x32xf32>
    %203 = vector.extract_strided_slice %188 {offsets = [0, 96], sizes = [2, 32], strides = [1, 1]} : vector<2x128xf32> to vector<2x32xf32>
    %204 = math.tanh %203 : vector<2x32xf32>
    %205 = vector.extract_strided_slice %194 {offsets = [0, 32], sizes = [2, 32], strides = [1, 1]} : vector<2x96xf32> to vector<2x32xf32>
    %206 = arith.mulf %205, %156 : vector<2x32xf32>
    %207 = vector.extract_strided_slice %194 {offsets = [0, 0], sizes = [2, 32], strides = [1, 1]} : vector<2x96xf32> to vector<2x32xf32>
    %208 = arith.mulf %207, %202 : vector<2x32xf32>
    %209 = arith.addf %206, %208 : vector<2x32xf32>
    %210 = vector.extract_strided_slice %200 {offsets = [0, 32], sizes = [2, 32], strides = [1, 1]} : vector<2x96xf32> to vector<2x32xf32>
    %211 = arith.mulf %210, %161 : vector<2x32xf32>
    %212 = vector.extract_strided_slice %200 {offsets = [0, 0], sizes = [2, 32], strides = [1, 1]} : vector<2x96xf32> to vector<2x32xf32>
    %213 = arith.mulf %212, %204 : vector<2x32xf32>
    %214 = arith.addf %211, %213 : vector<2x32xf32>
    %215 = vector.extract_strided_slice %194 {offsets = [0, 64], sizes = [2, 32], strides = [1, 1]} : vector<2x96xf32> to vector<2x32xf32>
    %216 = math.tanh %209 : vector<2x32xf32>
    %217 = arith.mulf %215, %216 : vector<2x32xf32>
    %218 = vector.extract_strided_slice %200 {offsets = [0, 64], sizes = [2, 32], strides = [1, 1]} : vector<2x96xf32> to vector<2x32xf32>
    %219 = math.tanh %214 : vector<2x32xf32>
    %220 = arith.mulf %218, %219 : vector<2x32xf32>
    %221 = arith.index_cast %c3_i32 : i32 to index
    %c0_63 = arith.constant 0 : index
    %c0_64 = arith.constant 0 : index
    %222 = vector.load %arg5[%221, %c0_63, %c0_64] : memref<8x2x64xf32, #tpu.memory_space<vmem>>, vector<1x2x32xf32>
    %223 = vector.shape_cast %222 : vector<1x2x32xf32> to vector<2x32xf32>
    %224 = vector.shape_cast %217 : vector<2x32xf32> to vector<1x2x32xf32>
    tpu.vector_store %arg5[%221, %c0_63, %c0_64], %224 {strides = array<i32>} : memref<8x2x64xf32, #tpu.memory_space<vmem>>, vector<1x2x32xf32>,
    %225 = arith.index_cast %176 : i32 to index
    %c0_65 = arith.constant 0 : index
    %c32_66 = arith.constant 32 : index
    %226 = vector.load %arg5[%225, %c0_65, %c32_66] : memref<8x2x64xf32, #tpu.memory_space<vmem>>, vector<1x2x32xf32>
    %227 = vector.shape_cast %226 : vector<1x2x32xf32> to vector<2x32xf32>
    %228 = vector.shape_cast %220 : vector<2x32xf32> to vector<1x2x32xf32>
    tpu.vector_store %arg5[%225, %c0_65, %c32_66], %228 {strides = array<i32>} : memref<8x2x64xf32, #tpu.memory_space<vmem>>, vector<1x2x32xf32>,
    %c4_i32 = arith.constant 4 : i32
    %c7_i32_67 = arith.constant 7 : i32
    %229 = arith.subi %c7_i32_67, %c4_i32 : i32
    %230 = arith.index_cast %c4_i32 : i32 to index
    %c0_68 = arith.constant 0 : index
    %c0_69 = arith.constant 0 : index
    %231 = vector.load %arg8[%230, %c0_68, %c0_69] : memref<8x2x128xf32, #tpu.memory_space<vmem>>, vector<1x2x128xf32>
    %232 = vector.shape_cast %231 : vector<1x2x128xf32> to vector<2x128xf32>
    %233 = arith.truncf %217 : vector<2x32xf32> to vector<2x32xbf16>
    %cst_70 = arith.constant dense<0.000000e+00> : vector<2x128xf32>
    %234 = tpu.matmul %233, %14, %cst_70 {dimension_numbers = #tpu.dot_dimension_numbers<[1], [0], [0], [1], [0, 0, 1, 1], [], []>} : vector<2x32xbf16>, vector<32x128xbf16>, vector<2x128xf32> -> vector<2x128xf32>
    %235 = arith.addf %232, %234 : vector<2x128xf32>
    %236 = arith.index_cast %229 : i32 to index
    %c0_71 = arith.constant 0 : index
    %c0_72 = arith.constant 0 : index
    %237 = vector.load %arg9[%236, %c0_71, %c0_72] : memref<8x2x128xf32, #tpu.memory_space<vmem>>, vector<1x2x128xf32>
    %238 = vector.shape_cast %237 : vector<1x2x128xf32> to vector<2x128xf32>
    %239 = arith.truncf %220 : vector<2x32xf32> to vector<2x32xbf16>
    %cst_73 = arith.constant dense<0.000000e+00> : vector<2x128xf32>
    %240 = tpu.matmul %239, %15, %cst_73 {dimension_numbers = #tpu.dot_dimension_numbers<[1], [0], [0], [1], [0, 0, 1, 1], [], []>} : vector<2x32xbf16>, vector<32x128xbf16>, vector<2x128xf32> -> vector<2x128xf32>
    %241 = arith.addf %238, %240 : vector<2x128xf32>
    %242 = vector.extract_strided_slice %235 {offsets = [0, 0], sizes = [2, 96], strides = [1, 1]} : vector<2x128xf32> to vector<2x96xf32>
    %243 = arith.negf %242 : vector<2x96xf32>
    %244 = math.exp %243 : vector<2x96xf32>
    %cst_74 = arith.constant 1.000000e+00 : f32
    %245 = vector.broadcast %cst_74 : f32 to vector<2x96xf32>
    %246 = arith.addf %245, %244 : vector<2x96xf32>
    %247 = arith.divf %245, %246 : vector<2x96xf32>
    %248 = vector.extract_strided_slice %241 {offsets = [0, 0], sizes = [2, 96], strides = [1, 1]} : vector<2x128xf32> to vector<2x96xf32>
    %249 = arith.negf %248 : vector<2x96xf32>
    %250 = math.exp %249 : vector<2x96xf32>
    %cst_75 = arith.constant 1.000000e+00 : f32
    %251 = vector.broadcast %cst_75 : f32 to vector<2x96xf32>
    %252 = arith.addf %251, %250 : vector<2x96xf32>
    %253 = arith.divf %251, %252 : vector<2x96xf32>
    %254 = vector.extract_strided_slice %235 {offsets = [0, 96], sizes = [2, 32], strides = [1, 1]} : vector<2x128xf32> to vector<2x32xf32>
    %255 = math.tanh %254 : vector<2x32xf32>
    %256 = vector.extract_strided_slice %241 {offsets = [0, 96], sizes = [2, 32], strides = [1, 1]} : vector<2x128xf32> to vector<2x32xf32>
    %257 = math.tanh %256 : vector<2x32xf32>
    %258 = vector.extract_strided_slice %247 {offsets = [0, 32], sizes = [2, 32], strides = [1, 1]} : vector<2x96xf32> to vector<2x32xf32>
    %259 = arith.mulf %258, %209 : vector<2x32xf32>
    %260 = vector.extract_strided_slice %247 {offsets = [0, 0], sizes = [2, 32], strides = [1, 1]} : vector<2x96xf32> to vector<2x32xf32>
    %261 = arith.mulf %260, %255 : vector<2x32xf32>
    %262 = arith.addf %259, %261 : vector<2x32xf32>
    %263 = vector.extract_strided_slice %253 {offsets = [0, 32], sizes = [2, 32], strides = [1, 1]} : vector<2x96xf32> to vector<2x32xf32>
    %264 = arith.mulf %263, %214 : vector<2x32xf32>
    %265 = vector.extract_strided_slice %253 {offsets = [0, 0], sizes = [2, 32], strides = [1, 1]} : vector<2x96xf32> to vector<2x32xf32>
    %266 = arith.mulf %265, %257 : vector<2x32xf32>
    %267 = arith.addf %264, %266 : vector<2x32xf32>
    %268 = vector.extract_strided_slice %247 {offsets = [0, 64], sizes = [2, 32], strides = [1, 1]} : vector<2x96xf32> to vector<2x32xf32>
    %269 = math.tanh %262 : vector<2x32xf32>
    %270 = arith.mulf %268, %269 : vector<2x32xf32>
    %271 = vector.extract_strided_slice %253 {offsets = [0, 64], sizes = [2, 32], strides = [1, 1]} : vector<2x96xf32> to vector<2x32xf32>
    %272 = math.tanh %267 : vector<2x32xf32>
    %273 = arith.mulf %271, %272 : vector<2x32xf32>
    %274 = arith.index_cast %c4_i32 : i32 to index
    %c0_76 = arith.constant 0 : index
    %c0_77 = arith.constant 0 : index
    %275 = vector.load %arg5[%274, %c0_76, %c0_77] : memref<8x2x64xf32, #tpu.memory_space<vmem>>, vector<1x2x32xf32>
    %276 = vector.shape_cast %275 : vector<1x2x32xf32> to vector<2x32xf32>
    %277 = vector.shape_cast %270 : vector<2x32xf32> to vector<1x2x32xf32>
    tpu.vector_store %arg5[%274, %c0_76, %c0_77], %277 {strides = array<i32>} : memref<8x2x64xf32, #tpu.memory_space<vmem>>, vector<1x2x32xf32>,
    %278 = arith.index_cast %229 : i32 to index
    %c0_78 = arith.constant 0 : index
    %c32_79 = arith.constant 32 : index
    %279 = vector.load %arg5[%278, %c0_78, %c32_79] : memref<8x2x64xf32, #tpu.memory_space<vmem>>, vector<1x2x32xf32>
    %280 = vector.shape_cast %279 : vector<1x2x32xf32> to vector<2x32xf32>
    %281 = vector.shape_cast %273 : vector<2x32xf32> to vector<1x2x32xf32>
    tpu.vector_store %arg5[%278, %c0_78, %c32_79], %281 {strides = array<i32>} : memref<8x2x64xf32, #tpu.memory_space<vmem>>, vector<1x2x32xf32>,
    %c5_i32 = arith.constant 5 : i32
    %c7_i32_80 = arith.constant 7 : i32
    %282 = arith.subi %c7_i32_80, %c5_i32 : i32
    %283 = arith.index_cast %c5_i32 : i32 to index
    %c0_81 = arith.constant 0 : index
    %c0_82 = arith.constant 0 : index
    %284 = vector.load %arg8[%283, %c0_81, %c0_82] : memref<8x2x128xf32, #tpu.memory_space<vmem>>, vector<1x2x128xf32>
    %285 = vector.shape_cast %284 : vector<1x2x128xf32> to vector<2x128xf32>
    %286 = arith.truncf %270 : vector<2x32xf32> to vector<2x32xbf16>
    %cst_83 = arith.constant dense<0.000000e+00> : vector<2x128xf32>
    %287 = tpu.matmul %286, %14, %cst_83 {dimension_numbers = #tpu.dot_dimension_numbers<[1], [0], [0], [1], [0, 0, 1, 1], [], []>} : vector<2x32xbf16>, vector<32x128xbf16>, vector<2x128xf32> -> vector<2x128xf32>
    %288 = arith.addf %285, %287 : vector<2x128xf32>
    %289 = arith.index_cast %282 : i32 to index
    %c0_84 = arith.constant 0 : index
    %c0_85 = arith.constant 0 : index
    %290 = vector.load %arg9[%289, %c0_84, %c0_85] : memref<8x2x128xf32, #tpu.memory_space<vmem>>, vector<1x2x128xf32>
    %291 = vector.shape_cast %290 : vector<1x2x128xf32> to vector<2x128xf32>
    %292 = arith.truncf %273 : vector<2x32xf32> to vector<2x32xbf16>
    %cst_86 = arith.constant dense<0.000000e+00> : vector<2x128xf32>
    %293 = tpu.matmul %292, %15, %cst_86 {dimension_numbers = #tpu.dot_dimension_numbers<[1], [0], [0], [1], [0, 0, 1, 1], [], []>} : vector<2x32xbf16>, vector<32x128xbf16>, vector<2x128xf32> -> vector<2x128xf32>
    %294 = arith.addf %291, %293 : vector<2x128xf32>
    %295 = vector.extract_strided_slice %288 {offsets = [0, 0], sizes = [2, 96], strides = [1, 1]} : vector<2x128xf32> to vector<2x96xf32>
    %296 = arith.negf %295 : vector<2x96xf32>
    %297 = math.exp %296 : vector<2x96xf32>
    %cst_87 = arith.constant 1.000000e+00 : f32
    %298 = vector.broadcast %cst_87 : f32 to vector<2x96xf32>
    %299 = arith.addf %298, %297 : vector<2x96xf32>
    %300 = arith.divf %298, %299 : vector<2x96xf32>
    %301 = vector.extract_strided_slice %294 {offsets = [0, 0], sizes = [2, 96], strides = [1, 1]} : vector<2x128xf32> to vector<2x96xf32>
    %302 = arith.negf %301 : vector<2x96xf32>
    %303 = math.exp %302 : vector<2x96xf32>
    %cst_88 = arith.constant 1.000000e+00 : f32
    %304 = vector.broadcast %cst_88 : f32 to vector<2x96xf32>
    %305 = arith.addf %304, %303 : vector<2x96xf32>
    %306 = arith.divf %304, %305 : vector<2x96xf32>
    %307 = vector.extract_strided_slice %288 {offsets = [0, 96], sizes = [2, 32], strides = [1, 1]} : vector<2x128xf32> to vector<2x32xf32>
    %308 = math.tanh %307 : vector<2x32xf32>
    %309 = vector.extract_strided_slice %294 {offsets = [0, 96], sizes = [2, 32], strides = [1, 1]} : vector<2x128xf32> to vector<2x32xf32>
    %310 = math.tanh %309 : vector<2x32xf32>
    %311 = vector.extract_strided_slice %300 {offsets = [0, 32], sizes = [2, 32], strides = [1, 1]} : vector<2x96xf32> to vector<2x32xf32>
    %312 = arith.mulf %311, %262 : vector<2x32xf32>
    %313 = vector.extract_strided_slice %300 {offsets = [0, 0], sizes = [2, 32], strides = [1, 1]} : vector<2x96xf32> to vector<2x32xf32>
    %314 = arith.mulf %313, %308 : vector<2x32xf32>
    %315 = arith.addf %312, %314 : vector<2x32xf32>
    %316 = vector.extract_strided_slice %306 {offsets = [0, 32], sizes = [2, 32], strides = [1, 1]} : vector<2x96xf32> to vector<2x32xf32>
    %317 = arith.mulf %316, %267 : vector<2x32xf32>
    %318 = vector.extract_strided_slice %306 {offsets = [0, 0], sizes = [2, 32], strides = [1, 1]} : vector<2x96xf32> to vector<2x32xf32>
    %319 = arith.mulf %318, %310 : vector<2x32xf32>
    %320 = arith.addf %317, %319 : vector<2x32xf32>
    %321 = vector.extract_strided_slice %300 {offsets = [0, 64], sizes = [2, 32], strides = [1, 1]} : vector<2x96xf32> to vector<2x32xf32>
    %322 = math.tanh %315 : vector<2x32xf32>
    %323 = arith.mulf %321, %322 : vector<2x32xf32>
    %324 = vector.extract_strided_slice %306 {offsets = [0, 64], sizes = [2, 32], strides = [1, 1]} : vector<2x96xf32> to vector<2x32xf32>
    %325 = math.tanh %320 : vector<2x32xf32>
    %326 = arith.mulf %324, %325 : vector<2x32xf32>
    %327 = arith.index_cast %c5_i32 : i32 to index
    %c0_89 = arith.constant 0 : index
    %c0_90 = arith.constant 0 : index
    %328 = vector.load %arg5[%327, %c0_89, %c0_90] : memref<8x2x64xf32, #tpu.memory_space<vmem>>, vector<1x2x32xf32>
    %329 = vector.shape_cast %328 : vector<1x2x32xf32> to vector<2x32xf32>
    %330 = vector.shape_cast %323 : vector<2x32xf32> to vector<1x2x32xf32>
    tpu.vector_store %arg5[%327, %c0_89, %c0_90], %330 {strides = array<i32>} : memref<8x2x64xf32, #tpu.memory_space<vmem>>, vector<1x2x32xf32>,
    %331 = arith.index_cast %282 : i32 to index
    %c0_91 = arith.constant 0 : index
    %c32_92 = arith.constant 32 : index
    %332 = vector.load %arg5[%331, %c0_91, %c32_92] : memref<8x2x64xf32, #tpu.memory_space<vmem>>, vector<1x2x32xf32>
    %333 = vector.shape_cast %332 : vector<1x2x32xf32> to vector<2x32xf32>
    %334 = vector.shape_cast %326 : vector<2x32xf32> to vector<1x2x32xf32>
    tpu.vector_store %arg5[%331, %c0_91, %c32_92], %334 {strides = array<i32>} : memref<8x2x64xf32, #tpu.memory_space<vmem>>, vector<1x2x32xf32>,
    %c6_i32 = arith.constant 6 : i32
    %c7_i32_93 = arith.constant 7 : i32
    %335 = arith.subi %c7_i32_93, %c6_i32 : i32
    %336 = arith.index_cast %c6_i32 : i32 to index
    %c0_94 = arith.constant 0 : index
    %c0_95 = arith.constant 0 : index
    %337 = vector.load %arg8[%336, %c0_94, %c0_95] : memref<8x2x128xf32, #tpu.memory_space<vmem>>, vector<1x2x128xf32>
    %338 = vector.shape_cast %337 : vector<1x2x128xf32> to vector<2x128xf32>
    %339 = arith.truncf %323 : vector<2x32xf32> to vector<2x32xbf16>
    %cst_96 = arith.constant dense<0.000000e+00> : vector<2x128xf32>
    %340 = tpu.matmul %339, %14, %cst_96 {dimension_numbers = #tpu.dot_dimension_numbers<[1], [0], [0], [1], [0, 0, 1, 1], [], []>} : vector<2x32xbf16>, vector<32x128xbf16>, vector<2x128xf32> -> vector<2x128xf32>
    %341 = arith.addf %338, %340 : vector<2x128xf32>
    %342 = arith.index_cast %335 : i32 to index
    %c0_97 = arith.constant 0 : index
    %c0_98 = arith.constant 0 : index
    %343 = vector.load %arg9[%342, %c0_97, %c0_98] : memref<8x2x128xf32, #tpu.memory_space<vmem>>, vector<1x2x128xf32>
    %344 = vector.shape_cast %343 : vector<1x2x128xf32> to vector<2x128xf32>
    %345 = arith.truncf %326 : vector<2x32xf32> to vector<2x32xbf16>
    %cst_99 = arith.constant dense<0.000000e+00> : vector<2x128xf32>
    %346 = tpu.matmul %345, %15, %cst_99 {dimension_numbers = #tpu.dot_dimension_numbers<[1], [0], [0], [1], [0, 0, 1, 1], [], []>} : vector<2x32xbf16>, vector<32x128xbf16>, vector<2x128xf32> -> vector<2x128xf32>
    %347 = arith.addf %344, %346 : vector<2x128xf32>
    %348 = vector.extract_strided_slice %341 {offsets = [0, 0], sizes = [2, 96], strides = [1, 1]} : vector<2x128xf32> to vector<2x96xf32>
    %349 = arith.negf %348 : vector<2x96xf32>
    %350 = math.exp %349 : vector<2x96xf32>
    %cst_100 = arith.constant 1.000000e+00 : f32
    %351 = vector.broadcast %cst_100 : f32 to vector<2x96xf32>
    %352 = arith.addf %351, %350 : vector<2x96xf32>
    %353 = arith.divf %351, %352 : vector<2x96xf32>
    %354 = vector.extract_strided_slice %347 {offsets = [0, 0], sizes = [2, 96], strides = [1, 1]} : vector<2x128xf32> to vector<2x96xf32>
    %355 = arith.negf %354 : vector<2x96xf32>
    %356 = math.exp %355 : vector<2x96xf32>
    %cst_101 = arith.constant 1.000000e+00 : f32
    %357 = vector.broadcast %cst_101 : f32 to vector<2x96xf32>
    %358 = arith.addf %357, %356 : vector<2x96xf32>
    %359 = arith.divf %357, %358 : vector<2x96xf32>
    %360 = vector.extract_strided_slice %341 {offsets = [0, 96], sizes = [2, 32], strides = [1, 1]} : vector<2x128xf32> to vector<2x32xf32>
    %361 = math.tanh %360 : vector<2x32xf32>
    %362 = vector.extract_strided_slice %347 {offsets = [0, 96], sizes = [2, 32], strides = [1, 1]} : vector<2x128xf32> to vector<2x32xf32>
    %363 = math.tanh %362 : vector<2x32xf32>
    %364 = vector.extract_strided_slice %353 {offsets = [0, 32], sizes = [2, 32], strides = [1, 1]} : vector<2x96xf32> to vector<2x32xf32>
    %365 = arith.mulf %364, %315 : vector<2x32xf32>
    %366 = vector.extract_strided_slice %353 {offsets = [0, 0], sizes = [2, 32], strides = [1, 1]} : vector<2x96xf32> to vector<2x32xf32>
    %367 = arith.mulf %366, %361 : vector<2x32xf32>
    %368 = arith.addf %365, %367 : vector<2x32xf32>
    %369 = vector.extract_strided_slice %359 {offsets = [0, 32], sizes = [2, 32], strides = [1, 1]} : vector<2x96xf32> to vector<2x32xf32>
    %370 = arith.mulf %369, %320 : vector<2x32xf32>
    %371 = vector.extract_strided_slice %359 {offsets = [0, 0], sizes = [2, 32], strides = [1, 1]} : vector<2x96xf32> to vector<2x32xf32>
    %372 = arith.mulf %371, %363 : vector<2x32xf32>
    %373 = arith.addf %370, %372 : vector<2x32xf32>
    %374 = vector.extract_strided_slice %353 {offsets = [0, 64], sizes = [2, 32], strides = [1, 1]} : vector<2x96xf32> to vector<2x32xf32>
    %375 = math.tanh %368 : vector<2x32xf32>
    %376 = arith.mulf %374, %375 : vector<2x32xf32>
    %377 = vector.extract_strided_slice %359 {offsets = [0, 64], sizes = [2, 32], strides = [1, 1]} : vector<2x96xf32> to vector<2x32xf32>
    %378 = math.tanh %373 : vector<2x32xf32>
    %379 = arith.mulf %377, %378 : vector<2x32xf32>
    %380 = arith.index_cast %c6_i32 : i32 to index
    %c0_102 = arith.constant 0 : index
    %c0_103 = arith.constant 0 : index
    %381 = vector.load %arg5[%380, %c0_102, %c0_103] : memref<8x2x64xf32, #tpu.memory_space<vmem>>, vector<1x2x32xf32>
    %382 = vector.shape_cast %381 : vector<1x2x32xf32> to vector<2x32xf32>
    %383 = vector.shape_cast %376 : vector<2x32xf32> to vector<1x2x32xf32>
    tpu.vector_store %arg5[%380, %c0_102, %c0_103], %383 {strides = array<i32>} : memref<8x2x64xf32, #tpu.memory_space<vmem>>, vector<1x2x32xf32>,
    %384 = arith.index_cast %335 : i32 to index
    %c0_104 = arith.constant 0 : index
    %c32_105 = arith.constant 32 : index
    %385 = vector.load %arg5[%384, %c0_104, %c32_105] : memref<8x2x64xf32, #tpu.memory_space<vmem>>, vector<1x2x32xf32>
    %386 = vector.shape_cast %385 : vector<1x2x32xf32> to vector<2x32xf32>
    %387 = vector.shape_cast %379 : vector<2x32xf32> to vector<1x2x32xf32>
    tpu.vector_store %arg5[%384, %c0_104, %c32_105], %387 {strides = array<i32>} : memref<8x2x64xf32, #tpu.memory_space<vmem>>, vector<1x2x32xf32>,
    %c7_i32_106 = arith.constant 7 : i32
    %c7_i32_107 = arith.constant 7 : i32
    %388 = arith.subi %c7_i32_107, %c7_i32_106 : i32
    %389 = arith.index_cast %c7_i32_106 : i32 to index
    %c0_108 = arith.constant 0 : index
    %c0_109 = arith.constant 0 : index
    %390 = vector.load %arg8[%389, %c0_108, %c0_109] : memref<8x2x128xf32, #tpu.memory_space<vmem>>, vector<1x2x128xf32>
    %391 = vector.shape_cast %390 : vector<1x2x128xf32> to vector<2x128xf32>
    %392 = arith.truncf %376 : vector<2x32xf32> to vector<2x32xbf16>
    %cst_110 = arith.constant dense<0.000000e+00> : vector<2x128xf32>
    %393 = tpu.matmul %392, %14, %cst_110 {dimension_numbers = #tpu.dot_dimension_numbers<[1], [0], [0], [1], [0, 0, 1, 1], [], []>} : vector<2x32xbf16>, vector<32x128xbf16>, vector<2x128xf32> -> vector<2x128xf32>
    %394 = arith.addf %391, %393 : vector<2x128xf32>
    %395 = arith.index_cast %388 : i32 to index
    %c0_111 = arith.constant 0 : index
    %c0_112 = arith.constant 0 : index
    %396 = vector.load %arg9[%395, %c0_111, %c0_112] : memref<8x2x128xf32, #tpu.memory_space<vmem>>, vector<1x2x128xf32>
    %397 = vector.shape_cast %396 : vector<1x2x128xf32> to vector<2x128xf32>
    %398 = arith.truncf %379 : vector<2x32xf32> to vector<2x32xbf16>
    %cst_113 = arith.constant dense<0.000000e+00> : vector<2x128xf32>
    %399 = tpu.matmul %398, %15, %cst_113 {dimension_numbers = #tpu.dot_dimension_numbers<[1], [0], [0], [1], [0, 0, 1, 1], [], []>} : vector<2x32xbf16>, vector<32x128xbf16>, vector<2x128xf32> -> vector<2x128xf32>
    %400 = arith.addf %397, %399 : vector<2x128xf32>
    %401 = vector.extract_strided_slice %394 {offsets = [0, 0], sizes = [2, 96], strides = [1, 1]} : vector<2x128xf32> to vector<2x96xf32>
    %402 = arith.negf %401 : vector<2x96xf32>
    %403 = math.exp %402 : vector<2x96xf32>
    %cst_114 = arith.constant 1.000000e+00 : f32
    %404 = vector.broadcast %cst_114 : f32 to vector<2x96xf32>
    %405 = arith.addf %404, %403 : vector<2x96xf32>
    %406 = arith.divf %404, %405 : vector<2x96xf32>
    %407 = vector.extract_strided_slice %400 {offsets = [0, 0], sizes = [2, 96], strides = [1, 1]} : vector<2x128xf32> to vector<2x96xf32>
    %408 = arith.negf %407 : vector<2x96xf32>
    %409 = math.exp %408 : vector<2x96xf32>
    %cst_115 = arith.constant 1.000000e+00 : f32
    %410 = vector.broadcast %cst_115 : f32 to vector<2x96xf32>
    %411 = arith.addf %410, %409 : vector<2x96xf32>
    %412 = arith.divf %410, %411 : vector<2x96xf32>
    %413 = vector.extract_strided_slice %394 {offsets = [0, 96], sizes = [2, 32], strides = [1, 1]} : vector<2x128xf32> to vector<2x32xf32>
    %414 = math.tanh %413 : vector<2x32xf32>
    %415 = vector.extract_strided_slice %400 {offsets = [0, 96], sizes = [2, 32], strides = [1, 1]} : vector<2x128xf32> to vector<2x32xf32>
    %416 = math.tanh %415 : vector<2x32xf32>
    %417 = vector.extract_strided_slice %406 {offsets = [0, 32], sizes = [2, 32], strides = [1, 1]} : vector<2x96xf32> to vector<2x32xf32>
    %418 = arith.mulf %417, %368 : vector<2x32xf32>
    %419 = vector.extract_strided_slice %406 {offsets = [0, 0], sizes = [2, 32], strides = [1, 1]} : vector<2x96xf32> to vector<2x32xf32>
    %420 = arith.mulf %419, %414 : vector<2x32xf32>
    %421 = arith.addf %418, %420 : vector<2x32xf32>
    %422 = vector.extract_strided_slice %412 {offsets = [0, 32], sizes = [2, 32], strides = [1, 1]} : vector<2x96xf32> to vector<2x32xf32>
    %423 = arith.mulf %422, %373 : vector<2x32xf32>
    %424 = vector.extract_strided_slice %412 {offsets = [0, 0], sizes = [2, 32], strides = [1, 1]} : vector<2x96xf32> to vector<2x32xf32>
    %425 = arith.mulf %424, %416 : vector<2x32xf32>
    %426 = arith.addf %423, %425 : vector<2x32xf32>
    %427 = vector.extract_strided_slice %406 {offsets = [0, 64], sizes = [2, 32], strides = [1, 1]} : vector<2x96xf32> to vector<2x32xf32>
    %428 = math.tanh %421 : vector<2x32xf32>
    %429 = arith.mulf %427, %428 : vector<2x32xf32>
    %430 = vector.extract_strided_slice %412 {offsets = [0, 64], sizes = [2, 32], strides = [1, 1]} : vector<2x96xf32> to vector<2x32xf32>
    %431 = math.tanh %426 : vector<2x32xf32>
    %432 = arith.mulf %430, %431 : vector<2x32xf32>
    %433 = arith.index_cast %c7_i32_106 : i32 to index
    %c0_116 = arith.constant 0 : index
    %c0_117 = arith.constant 0 : index
    %434 = vector.load %arg5[%433, %c0_116, %c0_117] : memref<8x2x64xf32, #tpu.memory_space<vmem>>, vector<1x2x32xf32>
    %435 = vector.shape_cast %434 : vector<1x2x32xf32> to vector<2x32xf32>
    %436 = vector.shape_cast %429 : vector<2x32xf32> to vector<1x2x32xf32>
    tpu.vector_store %arg5[%433, %c0_116, %c0_117], %436 {strides = array<i32>} : memref<8x2x64xf32, #tpu.memory_space<vmem>>, vector<1x2x32xf32>,
    %437 = arith.index_cast %388 : i32 to index
    %c0_118 = arith.constant 0 : index
    %c32_119 = arith.constant 32 : index
    %438 = vector.load %arg5[%437, %c0_118, %c32_119] : memref<8x2x64xf32, #tpu.memory_space<vmem>>, vector<1x2x32xf32>
    %439 = vector.shape_cast %438 : vector<1x2x32xf32> to vector<2x32xf32>
    %440 = vector.shape_cast %432 : vector<2x32xf32> to vector<1x2x32xf32>
    tpu.vector_store %arg5[%437, %c0_118, %c32_119], %440 {strides = array<i32>} : memref<8x2x64xf32, #tpu.memory_space<vmem>>, vector<1x2x32xf32>,
    %c8_i32 = arith.constant 8 : i32
    %c0_120 = arith.constant 0 : index
    %c0_121 = arith.constant 0 : index
    %c0_122 = arith.constant 0 : index
    %441 = vector.load %arg6[%c0_120, %c0_121, %c0_122] : memref<2x2x32xf32, #tpu.memory_space<vmem>>, vector<1x2x32xf32>
    %442 = vector.shape_cast %441 : vector<1x2x32xf32> to vector<2x32xf32>
    %443 = vector.shape_cast %429 : vector<2x32xf32> to vector<1x2x32xf32>
    tpu.vector_store %arg6[%c0_120, %c0_121, %c0_122], %443 {strides = array<i32>} : memref<2x2x32xf32, #tpu.memory_space<vmem>>, vector<1x2x32xf32>,
    %c1 = arith.constant 1 : index
    %c0_123 = arith.constant 0 : index
    %c0_124 = arith.constant 0 : index
    %444 = vector.load %arg6[%c1, %c0_123, %c0_124] : memref<2x2x32xf32, #tpu.memory_space<vmem>>, vector<1x2x32xf32>
    %445 = vector.shape_cast %444 : vector<1x2x32xf32> to vector<2x32xf32>
    %446 = vector.shape_cast %432 : vector<2x32xf32> to vector<1x2x32xf32>
    tpu.vector_store %arg6[%c1, %c0_123, %c0_124], %446 {strides = array<i32>} : memref<2x2x32xf32, #tpu.memory_space<vmem>>, vector<1x2x32xf32>,
    %c0_125 = arith.constant 0 : index
    %c0_126 = arith.constant 0 : index
    %c0_127 = arith.constant 0 : index
    %447 = vector.load %arg7[%c0_125, %c0_126, %c0_127] : memref<2x2x32xf32, #tpu.memory_space<vmem>>, vector<1x2x32xf32>
    %448 = vector.shape_cast %447 : vector<1x2x32xf32> to vector<2x32xf32>
    %449 = vector.shape_cast %421 : vector<2x32xf32> to vector<1x2x32xf32>
    tpu.vector_store %arg7[%c0_125, %c0_126, %c0_127], %449 {strides = array<i32>} : memref<2x2x32xf32, #tpu.memory_space<vmem>>, vector<1x2x32xf32>,
    %c1_128 = arith.constant 1 : index
    %c0_129 = arith.constant 0 : index
    %c0_130 = arith.constant 0 : index
    %450 = vector.load %arg7[%c1_128, %c0_129, %c0_130] : memref<2x2x32xf32, #tpu.memory_space<vmem>>, vector<1x2x32xf32>
    %451 = vector.shape_cast %450 : vector<1x2x32xf32> to vector<2x32xf32>
    %452 = vector.shape_cast %426 : vector<2x32xf32> to vector<1x2x32xf32>
    tpu.vector_store %arg7[%c1_128, %c0_129, %c0_130], %452 {strides = array<i32>} : memref<2x2x32xf32, #tpu.memory_space<vmem>>, vector<1x2x32xf32>,
    return
  }
}

module attributes {stable_mosaic.version = 11 : i64} {
  func.func @_heads_kernel(%arg0: i32, %arg1: memref<16x64xf32, #tpu.memory_space<vmem>>, %arg2: memref<64x128xbf16, #tpu.memory_space<vmem>>, %arg3: memref<1x128xf32, #tpu.memory_space<vmem>>, %arg4: memref<64x384xbf16, #tpu.memory_space<vmem>>, %arg5: memref<1x384xf32, #tpu.memory_space<vmem>>, %arg6: memref<16x128xf32, #tpu.memory_space<vmem>>, %arg7: memref<16x384xf32, #tpu.memory_space<vmem>>) attributes {dimension_semantics = [#tpu.dimension_semantics<parallel>], iteration_bounds = array<i64: 1>, scalar_prefetch = 0 : i64, scratch_operands = 0 : i64, tpu.core_type = #tpu.core_type<tc>, window_params = [{transform_indices = @transform_0, window_bounds = array<i64: 16, 64>}, {pipeline_mode = #tpu.pipeline_mode<synchronous>, transform_indices = @transform_1, window_bounds = array<i64: 64, 128>}, {pipeline_mode = #tpu.pipeline_mode<synchronous>, transform_indices = @transform_2, window_bounds = array<i64: 1, 128>}, {pipeline_mode = #tpu.pipeline_mode<synchronous>, transform_indices = @transform_3, window_bounds = array<i64: 64, 384>}, {pipeline_mode = #tpu.pipeline_mode<synchronous>, transform_indices = @transform_4, window_bounds = array<i64: 1, 384>}, {transform_indices = @transform_5, window_bounds = array<i64: 16, 128>}, {transform_indices = @transform_6, window_bounds = array<i64: 16, 384>}]} {
    %c0 = arith.constant 0 : index
    %c0_0 = arith.constant 0 : index
    %0 = vector.load %arg1[%c0, %c0_0] : memref<16x64xf32, #tpu.memory_space<vmem>>, vector<16x64xf32>
    %1 = arith.truncf %0 : vector<16x64xf32> to vector<16x64xbf16>
    %c0_1 = arith.constant 0 : index
    %c0_2 = arith.constant 0 : index
    %2 = vector.load %arg2[%c0_1, %c0_2] : memref<64x128xbf16, #tpu.memory_space<vmem>>, vector<64x128xbf16>
    %cst = arith.constant dense<0.000000e+00> : vector<16x128xf32>
    %3 = tpu.matmul %1, %2, %cst {dimension_numbers = #tpu.dot_dimension_numbers<[1], [0], [0], [1], [0, 0, 1, 1], [], []>} : vector<16x64xbf16>, vector<64x128xbf16>, vector<16x128xf32> -> vector<16x128xf32>
    %c0_3 = arith.constant 0 : index
    %c0_4 = arith.constant 0 : index
    %4 = vector.load %arg3[%c0_3, %c0_4] : memref<1x128xf32, #tpu.memory_space<vmem>>, vector<1x128xf32>
    %5 = vector.broadcast %4 : vector<1x128xf32> to vector<16x128xf32>
    %6 = arith.addf %3, %5 : vector<16x128xf32>
    %7 = arith.negf %6 : vector<16x128xf32>
    %8 = math.exp %7 : vector<16x128xf32>
    %cst_5 = arith.constant 1.000000e+00 : f32
    %9 = vector.broadcast %cst_5 : f32 to vector<16x128xf32>
    %10 = arith.addf %9, %8 : vector<16x128xf32>
    %11 = arith.divf %9, %10 : vector<16x128xf32>
    %c0_6 = arith.constant 0 : index
    %c0_7 = arith.constant 0 : index
    %12 = vector.load %arg6[%c0_6, %c0_7] : memref<16x128xf32, #tpu.memory_space<vmem>>, vector<16x128xf32>
    tpu.vector_store %arg6[%c0_6, %c0_7], %11 {strides = array<i32>} : memref<16x128xf32, #tpu.memory_space<vmem>>, vector<16x128xf32>,
    %c0_8 = arith.constant 0 : index
    %c0_9 = arith.constant 0 : index
    %13 = vector.load %arg4[%c0_8, %c0_9] : memref<64x384xbf16, #tpu.memory_space<vmem>>, vector<64x384xbf16>
    %cst_10 = arith.constant dense<0.000000e+00> : vector<16x384xf32>
    %14 = tpu.matmul %1, %13, %cst_10 {dimension_numbers = #tpu.dot_dimension_numbers<[1], [0], [0], [1], [0, 0, 1, 1], [], []>} : vector<16x64xbf16>, vector<64x384xbf16>, vector<16x384xf32> -> vector<16x384xf32>
    %c0_11 = arith.constant 0 : index
    %c0_12 = arith.constant 0 : index
    %15 = vector.load %arg5[%c0_11, %c0_12] : memref<1x384xf32, #tpu.memory_space<vmem>>, vector<1x384xf32>
    %16 = vector.broadcast %15 : vector<1x384xf32> to vector<16x384xf32>
    %17 = arith.addf %14, %16 : vector<16x384xf32>
    %c0_13 = arith.constant 0 : index
    %c0_14 = arith.constant 0 : index
    %18 = vector.load %arg7[%c0_13, %c0_14] : memref<16x384xf32, #tpu.memory_space<vmem>>, vector<16x384xf32>
    tpu.vector_store %arg7[%c0_13, %c0_14], %17 {strides = array<i32>} : memref<16x384xf32, #tpu.memory_space<vmem>>, vector<16x384xf32>,
    return
  }
  func.func @transform_0(%arg0: i32) -> (i32, i32) {
    %c0_i32 = arith.constant 0 : i32
    %c0_i32_0 = arith.constant 0 : i32
    return %arg0, %c0_i32 : i32, i32
  }
  func.func @transform_1(%arg0: i32) -> (i32, i32) {
    %c0_i32 = arith.constant 0 : i32
    %c0_i32_0 = arith.constant 0 : i32
    %c0_i32_1 = arith.constant 0 : i32
    return %c0_i32, %c0_i32_0 : i32, i32
  }
  func.func @transform_2(%arg0: i32) -> (i32, i32) {
    %c0_i32 = arith.constant 0 : i32
    %c0_i32_0 = arith.constant 0 : i32
    %c0_i32_1 = arith.constant 0 : i32
    return %c0_i32, %c0_i32_0 : i32, i32
  }
  func.func @transform_3(%arg0: i32) -> (i32, i32) {
    %c0_i32 = arith.constant 0 : i32
    %c0_i32_0 = arith.constant 0 : i32
    %c0_i32_1 = arith.constant 0 : i32
    return %c0_i32, %c0_i32_0 : i32, i32
  }
  func.func @transform_4(%arg0: i32) -> (i32, i32) {
    %c0_i32 = arith.constant 0 : i32
    %c0_i32_0 = arith.constant 0 : i32
    %c0_i32_1 = arith.constant 0 : i32
    return %c0_i32, %c0_i32_0 : i32, i32
  }
  func.func @transform_5(%arg0: i32) -> (i32, i32) {
    %c0_i32 = arith.constant 0 : i32
    %c0_i32_0 = arith.constant 0 : i32
    return %arg0, %c0_i32 : i32, i32
  }
  func.func @transform_6(%arg0: i32) -> (i32, i32) {
    %c0_i32 = arith.constant 0 : i32
    %c0_i32_0 = arith.constant 0 : i32
    return %arg0, %c0_i32 : i32, i32
  }
}

</mosaic_0001>

<llo_original>
// kernel: chimera_combook_forward.9
$region0: #{chimera_combook_forward.9}
  #allocation0 [shape = 'u32[]', space=smem, size = 0x4, offset = 0x4, fixed_abs, tag = 'smem constant byte address 0x4 - core index']
  #allocation1 [shape = 'u32[144,128]{1,0:T(1,128)}', space=vmem, size = 0x12000, scoped, tag = 'internal scratch']
  %s0 = inlined_call_operand.vmem [shape: f32[16,64], index: 0, kind: input, shape index: {}]
  %s1 = inlined_call_operand.vmem [shape: bf16[64,128], index: 1, kind: input, shape index: {}]
  %s2 = inlined_call_operand.vmem [shape: f32[1,128], index: 2, kind: input, shape index: {}]
  %s3 = inlined_call_operand.vmem [shape: bf16[64,384], index: 3, kind: input, shape index: {}]
  %s4 = inlined_call_operand.vmem [shape: f32[1,384], index: 4, kind: input, shape index: {}]
  %s5 = inlined_call_operand.vmem [shape: f32[16,128], index: 5, kind: output, shape index: {0}]
  %s6 = inlined_call_operand.vmem [shape: f32[16,384], index: 6, kind: output, shape index: {1}]
  %7 = xla_tuple %s5, %s6
  %s8 = sld [smem:[#allocation0]]
  $region38: #{chimera_combook_forward.9} parent=0
    _
  %s10 = ssub.s32 1, %s8
  %s11 = scalar_select 0, %s10, %s8
  // Predicated region
  $region2: #{chimera_combook_forward.9} parent=0 // pred_check
    _
  $region3: #{chimera_combook_forward.9} parent=0 // pred_check_branch
    %13 = sbr.rel (0) target = $region5
  $region4: #{chimera_combook_forward.9} parent=0 // pred_region
    _
  $region5: #{chimera_combook_forward.9} parent=0 // pred_fallthru
    _
  // Predicated region
  $region6: #{chimera_combook_forward.9} parent=0 // pred_check
    _
  $region7: #{chimera_combook_forward.9} parent=0 // pred_check_branch
    %15 = sbr.rel (0) target = $region9
  $region8: #{chimera_combook_forward.9} parent=0 // pred_region
    _
  $region9: #{chimera_combook_forward.9} parent=0 // pred_fallthru
    _
  // Predicated region
  $region10: #{chimera_combook_forward.9} parent=0 // pred_check
    _
  $region11: #{chimera_combook_forward.9} parent=0 // pred_check_branch
    %17 = sbr.rel (0) target = $region13
  $region12: #{chimera_combook_forward.9} parent=0 // pred_region
    _
  $region13: #{chimera_combook_forward.9} parent=0 // pred_fallthru
    _
  // Predicated region
  $region14: #{chimera_combook_forward.9} parent=0 // pred_check
    _
  $region15: #{chimera_combook_forward.9} parent=0 // pred_check_branch
    %19 = sbr.rel (0) target = $region17
  $region16: #{chimera_combook_forward.9} parent=0 // pred_region
    _
  $region17: #{chimera_combook_forward.9} parent=0 // pred_fallthru
    _
  // Predicated region
  $region18: #{chimera_combook_forward.9} parent=0 // pred_check
    _
  $region19: #{chimera_combook_forward.9} parent=0 // pred_check_branch
    %21 = sbr.rel (0) target = $region21
  $region20: #{chimera_combook_forward.9} parent=0 // pred_region
    _
  $region21: #{chimera_combook_forward.9} parent=0 // pred_fallthru
    _
  %v23 = vld [vmem:[%s0] sm:$0xff]
  %v24 = vld [vmem:[%s0 + $0x8] sm:$0xff]
  %v25 = vpack.c.bf16 %v24, %v23
  %v26 = vld [vmem:[%s1] sm:$0xf]
  %v27 = vld [vmem:[%s1 + $0x4] sm:$0xf]
  %v28 = vld [vmem:[%s1 + $0x8] sm:$0xf]
  %v29 = vld [vmem:[%s1 + $0xc] sm:$0xf]
  %v30 = vld [vmem:[%s1 + $0x10] sm:$0xf]
  %v31 = vld [vmem:[%s1 + $0x14] sm:$0xf]
  %v32 = vld [vmem:[%s1 + $0x18] sm:$0xf]
  %v33 = vld [vmem:[%s1 + $0x1c] sm:$0xf]
  %v34 = vld [vmem:[%s2] sm:$0x1]
  %v36 = vlaneseq
  %v37 = vshrl.u32 %v36, 7
  %v38 = vsub.s32 0, %v37
  %v39 = vrot.slane %v34, %v38
  %v49 = vunpack.c.l.b16 %v26
  %v50 = vunpack.c.l.b16 %v27
  %v51 = vunpack.c.l.b16 %v28
  %v52 = vunpack.c.l.b16 %v29
  %v53 = vunpack.c.l.b16 %v30
  %v54 = vunpack.c.l.b16 %v31
  %v55 = vunpack.c.l.b16 %v32
  %v56 = vunpack.c.l.b16 %v33
  %v57 = vpack.c.b16 %v50, %v49
  %v58 = vpack.c.b16 %v52, %v51
  %v59 = vpack.c.b16 %v54, %v53
  %v60 = vpack.c.b16 %v56, %v55
  %vm65 = vcmask 523264
  %v67 = vsel %vm65, %v25, 0
  %69 = vmatprep.subr.bf16.mxu0 0
  %70 = vmatpush1.bf16.msra.mxu0 0
  %71 = vmatprep.subr.bf16.mxu0 0
  %72 = vmatpush1.bf16.msra.mxu0 0
  %73 = vmatprep.subr.bf16.mxu0 0
  %74 = vmatpush1.bf16.msra.mxu0 0
  %75 = vmatprep.subr.bf16.mxu0 0
  %76 = vmatpush1.bf16.msra.mxu0 0
  %77 = vmatprep.subr.bf16.mxu0 0
  %78 = vmatpush1.bf16.msra.mxu0 %v60
  %79 = vmatprep.subr.bf16.mxu0 0
  %80 = vmatpush1.bf16.msra.mxu0 %v59
  %81 = vmatprep.subr.bf16.mxu0 0
  %82 = vmatpush1.bf16.msra.mxu0 %v58
  %83 = vmatprep.subr.bf16.mxu0 0
  %84 = vmatpush1.bf16.msra.mxu0 %v57
  %85 = vmatprep.subr.bf16.mxu0 0
  %86 = vmatpush2.bf16.msra.mxu0 0
  %87 = vmatprep.subr.bf16.mxu0 0
  %88 = vmatpush2.bf16.msra.mxu0 0
  %89 = vmatprep.subr.bf16.mxu0 0
  %90 = vmatpush2.bf16.msra.mxu0 0
  %91 = vmatprep.subr.bf16.mxu0 0
  %92 = vmatpush2.bf16.msra.mxu0 0
  %93 = vmatprep.subr.bf16.mxu0 0
  %94 = vmatpush2.bf16.msra.mxu0 0
  %95 = vmatprep.subr.bf16.mxu0 0
  %96 = vmatpush2.bf16.msra.mxu0 0
  %97 = vmatprep.subr.bf16.mxu0 0
  %98 = vmatpush2.bf16.msra.mxu0 0
  %99 = vmatprep.subr.bf16.mxu0 0
  %100 = vmatpush2.bf16.msra.mxu0 0
  %101 = vmatprep.mubr.bf16.mxu0 0
  %102 = vmatmul.mubr.bf16.gmra.mxu0 %v67
  %v103 = vpop.f32.mrf.mxu0
  %v104 = vadd.f32 %v39, %v103
  %v105 = vpop.f32.mrf.mxu0
  %v106 = vpop.f32.mrf.mxu0
  %v107 = vadd.f32 %v39, %v106
  %v108 = vpop.f32.mrf.mxu0
  %109 = vdwg.mxu0
  %v110 = vxor.u32 %v104, 2147483648
  %v111 = vxor.u32 %v107, 2147483648
  %v112 = vmul.f32 %v110, 1.442695
  %v113 = vpow.pop %v112
  %v114 = vmul.f32 %v111, 1.442695
  %v115 = vpow.pop %v114
  %v116 = vadd.f32 %v113, 1.0
  %v117 = vadd.f32 %v115, 1.0
  %v118 = vrcp.pop %v116
  %v119 = vmul.f32 1.0, %v118
  %v120 = vrcp.pop %v117
  %v121 = vmul.f32 1.0, %v120
  %122 = vst [vmem:[%s5] sm:$0xff] %v119
  %123 = vst [vmem:[%s5 + $0x8] sm:$0xff] %v121
  %v124 = vld [vmem:[%s3] sm:$0xff]
  %v125 = vld [vmem:[%s3 + $0x8] sm:$0xf]
  %v126 = vld [vmem:[%s3 + $0xc] sm:$0xff]
  %v127 = vld [vmem:[%s3 + $0x14] sm:$0xf]
  %v128 = vld [vmem:[%s3 + $0x18] sm:$0xff]
  %v129 = vld [vmem:[%s3 + $0x20] sm:$0xf]
  %v130 = vld [vmem:[%s3 + $0x24] sm:$0xff]
  %v131 = vld [vmem:[%s3 + $0x2c] sm:$0xf]
  %v132 = vld [vmem:[%s3 + $0x30] sm:$0xff]
  %v133 = vld [vmem:[%s3 + $0x38] sm:$0xf]
  %v134 = vld [vmem:[%s3 + $0x3c] sm:$0xff]
  %v135 = vld [vmem:[%s3 + $0x44] sm:$0xf]
  %v136 = vld [vmem:[%s3 + $0x48] sm:$0xff]
  %v137 = vld [vmem:[%s3 + $0x50] sm:$0xf]
  %v138 = vld [vmem:[%s3 + $0x54] sm:$0xff]
  %v139 = vld [vmem:[%s3 + $0x5c] sm:$0xf]
  %v140 = vld [vmem:[%s4] sm:$0x7]
  %v142 = vlaneseq
  %v143 = vshrl.u32 %v142, 7
  %v144 = vsub.s32 0, %v143
  %v145 = vrot.slane %v140, %v144
  %v146 = vlaneseq
  %v147 = vshrl.u32 %v146, 7
  %v148 = vsub.s32 1, %v147
  %v149 = vrot.slane %v140, %v148
  %v150 = vlaneseq
  %v151 = vshrl.u32 %v150, 7
  %v152 = vsub.s32 2, %v151
  %v153 = vrot.slane %v140, %v152
  %v173 = vunpack.c.l.b16 %v124
  %v174 = vunpack.c.h.b16 %v124
  %v175 = vunpack.c.l.b16 %v125
  %v176 = vunpack.c.l.b16 %v126
  %v177 = vunpack.c.h.b16 %v126
  %v178 = vunpack.c.l.b16 %v127
  %v179 = vunpack.c.l.b16 %v128
  %v180 = vunpack.c.h.b16 %v128
  %v181 = vunpack.c.l.b16 %v129
  %v182 = vunpack.c.l.b16 %v130
  %v183 = vunpack.c.h.b16 %v130
  %v184 = vunpack.c.l.b16 %v131
  %v185 = vunpack.c.l.b16 %v132
  %v186 = vunpack.c.h.b16 %v132
  %v187 = vunpack.c.l.b16 %v133
  %v188 = vunpack.c.l.b16 %v134
  %v189 = vunpack.c.h.b16 %v134
  %v190 = vunpack.c.l.b16 %v135
  %v191 = vunpack.c.l.b16 %v136
  %v192 = vunpack.c.h.b16 %v136
  %v193 = vunpack.c.l.b16 %v137
  %v194 = vunpack.c.l.b16 %v138
  %v195 = vunpack.c.h.b16 %v138
  %v196 = vunpack.c.l.b16 %v139
  %v197 = vpack.c.b16 %v176, %v173
  %v198 = vpack.c.b16 %v177, %v174
  %v199 = vpack.c.b16 %v178, %v175
  %v200 = vpack.c.b16 %v182, %v179
  %v201 = vpack.c.b16 %v183, %v180
  %v202 = vpack.c.b16 %v184, %v181
  %v203 = vpack.c.b16 %v188, %v185
  %v204 = vpack.c.b16 %v189, %v186
  %v205 = vpack.c.b16 %v190, %v187
  %v206 = vpack.c.b16 %v194, %v191
  %v207 = vpack.c.b16 %v195, %v192
  %v208 = vpack.c.b16 %v196, %v193
  %221 = vmatprep.subr.bf16.mxu0 0
  %222 = vmatpush1.bf16.msra.mxu0 0
  %223 = vmatprep.subr.bf16.mxu0 0
  %224 = vmatpush1.bf16.msra.mxu0 0
  %225 = vmatprep.subr.bf16.mxu0 0
  %226 = vmatpush1.bf16.msra.mxu0 0
  %227 = vmatprep.subr.bf16.mxu0 0
  %228 = vmatpush1.bf16.msra.mxu0 0
  %229 = vmatprep.subr.bf16.mxu0 %v207
  %230 = vmatpush1.bf16.msra.mxu0 %v206
  %231 = vmatprep.subr.bf16.mxu0 %v204
  %232 = vmatpush1.bf16.msra.mxu0 %v203
  %233 = vmatprep.subr.bf16.mxu0 %v201
  %234 = vmatpush1.bf16.msra.mxu0 %v200
  %235 = vmatprep.subr.bf16.mxu0 %v198
  %236 = vmatpush1.bf16.msra.mxu0 %v197
  %237 = vmatprep.subr.bf16.mxu0 0
  %238 = vmatpush2.bf16.msra.mxu0 0
  %239 = vmatprep.subr.bf16.mxu0 0
  %240 = vmatpush2.bf16.msra.mxu0 0
  %241 = vmatprep.subr.bf16.mxu0 0
  %242 = vmatpush2.bf16.msra.mxu0 0
  %243 = vmatprep.subr.bf16.mxu0 0
  %244 = vmatpush2.bf16.msra.mxu0 0
  %245 = vmatprep.subr.bf16.mxu0 0
  %246 = vmatpush2.bf16.msra.mxu0 0
  %247 = vmatprep.subr.bf16.mxu0 0
  %248 = vmatpush2.bf16.msra.mxu0 0
  %249 = vmatprep.subr.bf16.mxu0 0
  %250 = vmatpush2.bf16.msra.mxu0 0
  %251 = vmatprep.subr.bf16.mxu0 0
  %252 = vmatpush2.bf16.msra.mxu0 0
  %253 = vmatprep.mubr.bf16.mxu0 0
  %254 = vmatmul.mubr.bf16.gmra.mxu0 %v67
  %v255 = vpop.f32.mrf.mxu0
  %v256 = vadd.f32 %v145, %v255
  %v257 = vpop.f32.mrf.mxu0
  %v258 = vadd.f32 %v149, %v257
  %v259 = vpop.f32.mrf.mxu0
  %v260 = vadd.f32 %v145, %v259
  %v261 = vpop.f32.mrf.mxu0
  %v262 = vadd.f32 %v149, %v261
  %263 = vdwg.mxu0
  %264 = vmatprep.subr.bf16.mxu0 0
  %265 = vmatpush1.bf16.msra.mxu0 0
  %266 = vmatprep.subr.bf16.mxu0 0
  %267 = vmatpush1.bf16.msra.mxu0 0
  %268 = vmatprep.subr.bf16.mxu0 0
  %269 = vmatpush1.bf16.msra.mxu0 0
  %270 = vmatprep.subr.bf16.mxu0 0
  %271 = vmatpush1.bf16.msra.mxu0 0
  %272 = vmatprep.subr.bf16.mxu0 0
  %273 = vmatpush1.bf16.msra.mxu0 %v208
  %274 = vmatprep.subr.bf16.mxu0 0
  %275 = vmatpush1.bf16.msra.mxu0 %v205
  %276 = vmatprep.subr.bf16.mxu0 0
  %277 = vmatpush1.bf16.msra.mxu0 %v202
  %278 = vmatprep.subr.bf16.mxu0 0
  %279 = vmatpush1.bf16.msra.mxu0 %v199
  %280 = vmatprep.subr.bf16.mxu0 0
  %281 = vmatpush2.bf16.msra.mxu0 0
  %282 = vmatprep.subr.bf16.mxu0 0
  %283 = vmatpush2.bf16.msra.mxu0 0
  %284 = vmatprep.subr.bf16.mxu0 0
  %285 = vmatpush2.bf16.msra.mxu0 0
  %286 = vmatprep.subr.bf16.mxu0 0
  %287 = vmatpush2.bf16.msra.mxu0 0
  %288 = vmatprep.subr.bf16.mxu0 0
  %289 = vmatpush2.bf16.msra.mxu0 0
  %290 = vmatprep.subr.bf16.mxu0 0
  %291 = vmatpush2.bf16.msra.mxu0 0
  %292 = vmatprep.subr.bf16.mxu0 0
  %293 = vmatpush2.bf16.msra.mxu0 0
  %294 = vmatprep.subr.bf16.mxu0 0
  %295 = vmatpush2.bf16.msra.mxu0 0
  %296 = vmatprep.mubr.bf16.mxu0 0
  %297 = vmatmul.mubr.bf16.gmra.mxu0 %v67
  %v298 = vpop.f32.mrf.mxu0
  %v299 = vadd.f32 %v153, %v298
  %v300 = vpop.f32.mrf.mxu0
  %v301 = vpop.f32.mrf.mxu0
  %v302 = vadd.f32 %v153, %v301
  %v303 = vpop.f32.mrf.mxu0
  %304 = vdwg.mxu0
  %305 = vst [vmem:[%s6] sm:$0xff] %v256
  %306 = vst [vmem:[%s6 + $0x8] sm:$0xff] %v258
  %307 = vst [vmem:[%s6 + $0x10] sm:$0xff] %v299
  %308 = vst [vmem:[%s6 + $0x18] sm:$0xff] %v260
  %309 = vst [vmem:[%s6 + $0x20] sm:$0xff] %v262
  %310 = vst [vmem:[%s6 + $0x28] sm:$0xff] %v302
  // Predicated region
  $region22: #{chimera_combook_forward.9} parent=0 // pred_check
    _
  $region23: #{chimera_combook_forward.9} parent=0 // pred_check_branch
    %312 = sbr.rel (0) target = $region25
  $region24: #{chimera_combook_forward.9} parent=0 // pred_region
    _
  $region25: #{chimera_combook_forward.9} parent=0 // pred_fallthru
    _
  // Predicated region
  $region26: #{chimera_combook_forward.9} parent=0 // pred_check
    _
  $region27: #{chimera_combook_forward.9} parent=0 // pred_check_branch
    %314 = sbr.rel (0) target = $region29
  $region28: #{chimera_combook_forward.9} parent=0 // pred_region
    _
  $region29: #{chimera_combook_forward.9} parent=0 // pred_fallthru
    _
  // Predicated region
  $region30: #{chimera_combook_forward.9} parent=0 // pred_check
    _
  $region31: #{chimera_combook_forward.9} parent=0 // pred_check_branch
    %316 = sbr.rel (0) target = $region33
  $region32: #{chimera_combook_forward.9} parent=0 // pred_region
    _
  $region33: #{chimera_combook_forward.9} parent=0 // pred_fallthru
    _
  // Predicated region
  $region34: #{chimera_combook_forward.9} parent=0 // pred_check
    _
  $region35: #{chimera_combook_forward.9} parent=0 // pred_check_branch
    %318 = sbr.rel (0) target = $region37
  $region36: #{chimera_combook_forward.9} parent=0 // pred_region
    _
  $region37: #{chimera_combook_forward.9} parent=0 // pred_fallthru
    _

// kernel: chimera_combook_forward.6
$region0: #{chimera_combook_forward.6}
  #allocation0 [shape = 'u32[]', space=smem, size = 0x4, offset = 0x4, fixed_abs, tag = 'smem constant byte address 0x4 - core index']
  #allocation1 [shape = 'u32[144,128]{1,0:T(1,128)}', space=vmem, size = 0x12000, scoped, tag = 'internal scratch']
  #allocation2 [shape = 'f32[8,2,128]{2,1,0:T(2,128)}', space=vmem, size = 0x2000, scoped, tag = 'scratch operand']
  #allocation3 [shape = 'f32[8,2,128]{2,1,0:T(2,128)}', space=vmem, size = 0x2000, scoped, tag = 'scratch operand']
  %s0 = inlined_call_operand.vmem [shape: f32[8,2,64], index: 0, kind: input, shape index: {}]
  %s1 = inlined_call_operand.vmem [shape: bf16[64,256], index: 1, kind: input, shape index: {}]
  %s2 = inlined_call_operand.vmem [shape: bf16[32,128], index: 2, kind: input, shape index: {}]
  %s3 = inlined_call_operand.vmem [shape: bf16[32,128], index: 3, kind: input, shape index: {}]
  %s4 = inlined_call_operand.vmem [shape: f32[1,256], index: 4, kind: input, shape index: {}]
  %s5 = inlined_call_operand.vmem [shape: f32[8,2,64], index: 5, kind: output, shape index: {0}]
  %s6 = inlined_call_operand.vmem [shape: f32[2,2,32], index: 6, kind: output, shape index: {1}]
  %s7 = inlined_call_operand.vmem [shape: f32[2,2,32], index: 7, kind: output, shape index: {2}]
  %8 = xla_tuple %s5, %s6, %s7
  %s9 = sld [smem:[#allocation0]]
  $region46: #{chimera_combook_forward.6} parent=0
    _
  %s11 = ssub.s32 1, %s9
  %s12 = scalar_select 0, %s11, %s9
  // Predicated region
  $region2: #{chimera_combook_forward.6} parent=0 // pred_check
    _
  $region3: #{chimera_combook_forward.6} parent=0 // pred_check_branch
    %14 = sbr.rel (0) target = $region5
  $region4: #{chimera_combook_forward.6} parent=0 // pred_region
    _
  $region5: #{chimera_combook_forward.6} parent=0 // pred_fallthru
    _
  // Predicated region
  $region6: #{chimera_combook_forward.6} parent=0 // pred_check
    _
  $region7: #{chimera_combook_forward.6} parent=0 // pred_check_branch
    %16 = sbr.rel (0) target = $region9
  $region8: #{chimera_combook_forward.6} parent=0 // pred_region
    _
  $region9: #{chimera_combook_forward.6} parent=0 // pred_fallthru
    _
  // Predicated region
  $region10: #{chimera_combook_forward.6} parent=0 // pred_check
    _
  $region11: #{chimera_combook_forward.6} parent=0 // pred_check_branch
    %18 = sbr.rel (0) target = $region13
  $region12: #{chimera_combook_forward.6} parent=0 // pred_region
    _
  $region13: #{chimera_combook_forward.6} parent=0 // pred_fallthru
    _
  // Predicated region
  $region14: #{chimera_combook_forward.6} parent=0 // pred_check
    _
  $region15: #{chimera_combook_forward.6} parent=0 // pred_check_branch
    %20 = sbr.rel (0) target = $region17
  $region16: #{chimera_combook_forward.6} parent=0 // pred_region
    _
  $region17: #{chimera_combook_forward.6} parent=0 // pred_fallthru
    _
  // Predicated region
  $region18: #{chimera_combook_forward.6} parent=0 // pred_check
    _
  $region19: #{chimera_combook_forward.6} parent=0 // pred_check_branch
    %22 = sbr.rel (0) target = $region21
  $region20: #{chimera_combook_forward.6} parent=0 // pred_region
    _
  $region21: #{chimera_combook_forward.6} parent=0 // pred_fallthru
    _
  %v24 = vld [vmem:[%s0] sm:$0x3]
  %v25 = vld [vmem:[%s0 + $0x2] sm:$0x3]
  %v26 = vld [vmem:[%s0 + $0x4] sm:$0x3]
  %v27 = vld [vmem:[%s0 + $0x6] sm:$0x3]
  %v28 = vld [vmem:[%s0 + $0x8] sm:$0x3]
  %v29 = vld [vmem:[%s0 + $0xa] sm:$0x3]
  %v30 = vld [vmem:[%s0 + $0xc] sm:$0x3]
  %v31 = vld [vmem:[%s0 + $0xe] sm:$0x3]
  %v40 = vcombine.low %v24, %v25
  %v41 = vcombine.low %v26, %v27
  %v43 = vunpack.c.l.s4 1983009808
  %v44 = vunpack.c.0.s8 %v43
  %v45 = vlaneseq
  %v46 = vshrl.u32 %v45, 7
  %v47 = vsub.s32 %v44, %v46
  %v48 = vrot.slane %v40, %v47
  %v50 = vunpack.c.l.s4 1983009808
  %v51 = vunpack.c.0.s8 %v50
  %v52 = vlaneseq
  %v53 = vshrl.u32 %v52, 7
  %v54 = vsub.s32 %v51, %v53
  %v55 = vrot.slane %v41, %v54
  %v56 = vcombine.low %v48, %v55
  %v57 = vcombine.low %v28, %v29
  %v58 = vcombine.low %v30, %v31
  %v60 = vunpack.c.l.s4 1983009808
  %v61 = vunpack.c.0.s8 %v60
  %v62 = vlaneseq
  %v63 = vshrl.u32 %v62, 7
  %v64 = vsub.s32 %v61, %v63
  %v65 = vrot.slane %v57, %v64
  %v67 = vunpack.c.l.s4 1983009808
  %v68 = vunpack.c.0.s8 %v67
  %v69 = vlaneseq
  %v70 = vshrl.u32 %v69, 7
  %v71 = vsub.s32 %v68, %v70
  %v72 = vrot.slane %v58, %v71
  %v73 = vcombine.low %v65, %v72
  %v76 = vpack.c.bf16 %v73, %v56
  %v77 = vld [vmem:[%s1] sm:$0xff]
  %v78 = vld [vmem:[%s1 + $0x8] sm:$0xff]
  %v79 = vld [vmem:[%s1 + $0x10] sm:$0xff]
  %v80 = vld [vmem:[%s1 + $0x18] sm:$0xff]
  %v81 = vld [vmem:[%s1 + $0x20] sm:$0xff]
  %v82 = vld [vmem:[%s1 + $0x28] sm:$0xff]
  %v83 = vld [vmem:[%s1 + $0x30] sm:$0xff]
  %v84 = vld [vmem:[%s1 + $0x38] sm:$0xff]
  %v85 = vld [vmem:[%s4] sm:$0x3]
  %v87 = vlaneseq
  %v88 = vshrl.u32 %v87, 7
  %v89 = vsub.s32 0, %v88
  %v90 = vrot.slane %v85, %v89
  %v91 = vlaneseq
  %v92 = vshrl.u32 %v91, 7
  %v93 = vsub.s32 1, %v92
  %v94 = vrot.slane %v85, %v93
  %v105 = vunpack.c.l.b16 %v77
  %v106 = vunpack.c.h.b16 %v77
  %v107 = vunpack.c.l.b16 %v78
  %v108 = vunpack.c.h.b16 %v78
  %v109 = vunpack.c.l.b16 %v79
  %v110 = vunpack.c.h.b16 %v79
  %v111 = vunpack.c.l.b16 %v80
  %v112 = vunpack.c.h.b16 %v80
  %v113 = vunpack.c.l.b16 %v81
  %v114 = vunpack.c.h.b16 %v81
  %v115 = vunpack.c.l.b16 %v82
  %v116 = vunpack.c.h.b16 %v82
  %v117 = vunpack.c.l.b16 %v83
  %v118 = vunpack.c.h.b16 %v83
  %v119 = vunpack.c.l.b16 %v84
  %v120 = vunpack.c.h.b16 %v84
  %v121 = vpack.c.b16 %v107, %v105
  %v122 = vpack.c.b16 %v108, %v106
  %v123 = vpack.c.b16 %v111, %v109
  %v124 = vpack.c.b16 %v112, %v110
  %v125 = vpack.c.b16 %v115, %v113
  %v126 = vpack.c.b16 %v116, %v114
  %v127 = vpack.c.b16 %v119, %v117
  %v128 = vpack.c.b16 %v120, %v118
  %vm137 = vcmask 523264
  %v139 = vsel %vm137, %v76, 0
  %141 = vmatprep.subr.bf16.mxu0 0
  %142 = vmatpush1.bf16.msra.mxu0 0
  %143 = vmatprep.subr.bf16.mxu0 0
  %144 = vmatpush1.bf16.msra.mxu0 0
  %145 = vmatprep.subr.bf16.mxu0 0
  %146 = vmatpush1.bf16.msra.mxu0 0
  %147 = vmatprep.subr.bf16.mxu0 0
  %148 = vmatpush1.bf16.msra.mxu0 0
  %149 = vmatprep.subr.bf16.mxu0 %v128
  %150 = vmatpush1.bf16.msra.mxu0 %v127
  %151 = vmatprep.subr.bf16.mxu0 %v126
  %152 = vmatpush1.bf16.msra.mxu0 %v125
  %153 = vmatprep.subr.bf16.mxu0 %v124
  %154 = vmatpush1.bf16.msra.mxu0 %v123
  %155 = vmatprep.subr.bf16.mxu0 %v122
  %156 = vmatpush1.bf16.msra.mxu0 %v121
  %157 = vmatprep.subr.bf16.mxu0 0
  %158 = vmatpush2.bf16.msra.mxu0 0
  %159 = vmatprep.subr.bf16.mxu0 0
  %160 = vmatpush2.bf16.msra.mxu0 0
  %161 = vmatprep.subr.bf16.mxu0 0
  %162 = vmatpush2.bf16.msra.mxu0 0
  %163 = vmatprep.subr.bf16.mxu0 0
  %164 = vmatpush2.bf16.msra.mxu0 0
  %165 = vmatprep.subr.bf16.mxu0 0
  %166 = vmatpush2.bf16.msra.mxu0 0
  %167 = vmatprep.subr.bf16.mxu0 0
  %168 = vmatpush2.bf16.msra.mxu0 0
  %169 = vmatprep.subr.bf16.mxu0 0
  %170 = vmatpush2.bf16.msra.mxu0 0
  %171 = vmatprep.subr.bf16.mxu0 0
  %172 = vmatpush2.bf16.msra.mxu0 0
  %173 = vmatprep.mubr.bf16.mxu0 0
  %174 = vmatmul.mubr.bf16.gmra.mxu0 %v139
  %v175 = vpop.f32.mrf.mxu0
  %v176 = vadd.f32 %v90, %v175
  %v177 = vpop.f32.mrf.mxu0
  %v178 = vadd.f32 %v94, %v177
  %v179 = vpop.f32.mrf.mxu0
  %v180 = vadd.f32 %v90, %v179
  %v181 = vpop.f32.mrf.mxu0
  %v182 = vadd.f32 %v94, %v181
  %183 = vdwg.mxu0
  %v186 = vcombine.high %v176, %v176
  %v188 = vunpack.c.l.s4 1983009808
  %v189 = vunpack.c.0.s8 %v188
  %v190 = vlaneseq
  %v191 = vshrl.u32 %v190, 7
  %v192 = vsub.s32 %v189, %v191
  %v193 = vrot.slane %v176, %v192
  %v195 = vunpack.c.l.s4 1983009808
  %v196 = vunpack.c.0.s8 %v195
  %v197 = vlaneseq
  %v198 = vshrl.u32 %v197, 7
  %v199 = vsub.s32 %v196, %v198
  %v200 = vrot.slane %v186, %v199
  %v201 = vcombine.high %v193, %v193
  %v202 = vcombine.high %v200, %v200
  %v203 = vcombine.high %v180, %v180
  %v205 = vunpack.c.l.s4 1983009808
  %v206 = vunpack.c.0.s8 %v205
  %v207 = vlaneseq
  %v208 = vshrl.u32 %v207, 7
  %v209 = vsub.s32 %v206, %v208
  %v210 = vrot.slane %v180, %v209
  %v212 = vunpack.c.l.s4 1983009808
  %v213 = vunpack.c.0.s8 %v212
  %v214 = vlaneseq
  %v215 = vshrl.u32 %v214, 7
  %v216 = vsub.s32 %v213, %v215
  %v217 = vrot.slane %v203, %v216
  %v218 = vcombine.high %v210, %v210
  %v219 = vcombine.high %v217, %v217
  %228 = vst [vmem:[#allocation2] sm:$0x3] %v193
  %229 = vst [vmem:[#allocation2 + $0x2] sm:$0x3] %v201
  %230 = vst [vmem:[#allocation2 + $0x4] sm:$0x3] %v200
  %231 = vst [vmem:[#allocation2 + $0x6] sm:$0x3] %v202
  %232 = vst [vmem:[#allocation2 + $0x8] sm:$0x3] %v210
  %233 = vst [vmem:[#allocation2 + $0xa] sm:$0x3] %v218
  %234 = vst [vmem:[#allocation2 + $0xc] sm:$0x3] %v217
  %235 = vst [vmem:[#allocation2 + $0xe] sm:$0x3] %v219
  %v238 = vcombine.high %v178, %v178
  %v240 = vunpack.c.l.s4 1983009808
  %v241 = vunpack.c.0.s8 %v240
  %v242 = vlaneseq
  %v243 = vshrl.u32 %v242, 7
  %v244 = vsub.s32 %v241, %v243
  %v245 = vrot.slane %v178, %v244
  %v247 = vunpack.c.l.s4 1983009808
  %v248 = vunpack.c.0.s8 %v247
  %v249 = vlaneseq
  %v250 = vshrl.u32 %v249, 7
  %v251 = vsub.s32 %v248, %v250
  %v252 = vrot.slane %v238, %v251
  %v253 = vcombine.high %v245, %v245
  %v254 = vcombine.high %v252, %v252
  %v255 = vcombine.high %v182, %v182
  %v257 = vunpack.c.l.s4 1983009808
  %v258 = vunpack.c.0.s8 %v257
  %v259 = vlaneseq
  %v260 = vshrl.u32 %v259, 7
  %v261 = vsub.s32 %v258, %v260
  %v262 = vrot.slane %v182, %v261
  %v264 = vunpack.c.l.s4 1983009808
  %v265 = vunpack.c.0.s8 %v264
  %v266 = vlaneseq
  %v267 = vshrl.u32 %v266, 7
  %v268 = vsub.s32 %v265, %v267
  %v269 = vrot.slane %v255, %v268
  %v270 = vcombine.high %v262, %v262
  %v271 = vcombine.high %v269, %v269
  %280 = vst [vmem:[#allocation3] sm:$0x3] %v245
  %281 = vst [vmem:[#allocation3 + $0x2] sm:$0x3] %v253
  %282 = vst [vmem:[#allocation3 + $0x4] sm:$0x3] %v252
  %283 = vst [vmem:[#allocation3 + $0x6] sm:$0x3] %v254
  %284 = vst [vmem:[#allocation3 + $0x8] sm:$0x3] %v262
  %285 = vst [vmem:[#allocation3 + $0xa] sm:$0x3] %v270
  %286 = vst [vmem:[#allocation3 + $0xc] sm:$0x3] %v269
  %287 = vst [vmem:[#allocation3 + $0xe] sm:$0x3] %v271
  %v288 = vld [vmem:[%s2] sm:$0xf]
  %v289 = vld [vmem:[%s2 + $0x4] sm:$0xf]
  %v290 = vld [vmem:[%s2 + $0x8] sm:$0xf]
  %v291 = vld [vmem:[%s2 + $0xc] sm:$0xf]
  %v292 = vld [vmem:[%s3] sm:$0xf]
  %v293 = vld [vmem:[%s3 + $0x4] sm:$0xf]
  %v294 = vld [vmem:[%s3 + $0x8] sm:$0xf]
  %v295 = vld [vmem:[%s3 + $0xc] sm:$0xf]
  %v296 = vld [vmem:[#allocation2] sm:$0x3]
  %v301 = vunpack.c.l.b16 %v288
  %v302 = vunpack.c.l.b16 %v289
  %v303 = vunpack.c.l.b16 %v290
  %v304 = vunpack.c.l.b16 %v291
  %v305 = vpack.c.b16 %v302, %v301
  %v306 = vpack.c.b16 %v304, %v303
  %vm309 = vcmask 261120
  %v311 = vsel %vm309, 0, 0
  %313 = vmatprep.subr.bf16.mxu0 0
  %314 = vmatpush1.bf16.msra.mxu0 0
  %315 = vmatprep.subr.bf16.mxu0 0
  %316 = vmatpush1.bf16.msra.mxu0 0
  %317 = vmatprep.subr.bf16.mxu0 0
  %318 = vmatpush1.bf16.msra.mxu0 0
  %319 = vmatprep.subr.bf16.mxu0 0
  %320 = vmatpush1.bf16.msra.mxu0 0
  %321 = vmatprep.subr.bf16.mxu0 0
  %322 = vmatpush1.bf16.msra.mxu0 0
  %323 = vmatprep.subr.bf16.mxu0 0
  %324 = vmatpush1.bf16.msra.mxu0 0
  %325 = vmatprep.subr.bf16.mxu0 0
  %326 = vmatpush1.bf16.msra.mxu0 %v306
  %327 = vmatprep.subr.bf16.mxu0 0
  %328 = vmatpush1.bf16.msra.mxu0 %v305
  %329 = vmatprep.subr.bf16.mxu0 0
  %330 = vmatpush2.bf16.msra.mxu0 0
  %331 = vmatprep.subr.bf16.mxu0 0
  %332 = vmatpush2.bf16.msra.mxu0 0
  %333 = vmatprep.subr.bf16.mxu0 0
  %334 = vmatpush2.bf16.msra.mxu0 0
  %335 = vmatprep.subr.bf16.mxu0 0
  %336 = vmatpush2.bf16.msra.mxu0 0
  %337 = vmatprep.subr.bf16.mxu0 0
  %338 = vmatpush2.bf16.msra.mxu0 0
  %339 = vmatprep.subr.bf16.mxu0 0
  %340 = vmatpush2.bf16.msra.mxu0 0
  %341 = vmatprep.subr.bf16.mxu0 0
  %342 = vmatpush2.bf16.msra.mxu0 0
  %343 = vmatprep.subr.bf16.mxu0 0
  %344 = vmatpush2.bf16.msra.mxu0 0
  %345 = vmatprep.mubr.bf16.mxu0 0
  %346 = vmatmul.mubr.bf16.gmra.mxu0 %v311
  %v347 = vpop.f32.mrf.mxu0
  %v348 = vadd.f32 0.0, %v347
  %v349 = vpop.f32.mrf.mxu0
  %v350 = vpop.f32.mrf.mxu0
  %v351 = vpop.f32.mrf.mxu0
  %352 = vdwg.mxu0
  %v353 = vadd.f32 %v296, %v348
  %s354 = scalar_lea.vmem [#allocation3], 14
  %v355 = vld [vmem:[%s354] sm:$0x3]
  %v360 = vunpack.c.l.b16 %v292
  %v361 = vunpack.c.l.b16 %v293
  %v362 = vunpack.c.l.b16 %v294
  %v363 = vunpack.c.l.b16 %v295
  %v364 = vpack.c.b16 %v361, %v360
  %v365 = vpack.c.b16 %v363, %v362
  %368 = vmatprep.subr.bf16.mxu0 0
  %369 = vmatpush1.bf16.msra.mxu0 0
  %370 = vmatprep.subr.bf16.mxu0 0
  %371 = vmatpush1.bf16.msra.mxu0 0
  %372 = vmatprep.subr.bf16.mxu0 0
  %373 = vmatpush1.bf16.msra.mxu0 0
  %374 = vmatprep.subr.bf16.mxu0 0
  %375 = vmatpush1.bf16.msra.mxu0 0
  %376 = vmatprep.subr.bf16.mxu0 0
  %377 = vmatpush1.bf16.msra.mxu0 0
  %378 = vmatprep.subr.bf16.mxu0 0
  %379 = vmatpush1.bf16.msra.mxu0 0
  %380 = vmatprep.subr.bf16.mxu0 0
  %381 = vmatpush1.bf16.msra.mxu0 %v365
  %382 = vmatprep.subr.bf16.mxu0 0
  %383 = vmatpush1.bf16.msra.mxu0 %v364
  %384 = vmatprep.subr.bf16.mxu0 0
  %385 = vmatpush2.bf16.msra.mxu0 0
  %386 = vmatprep.subr.bf16.mxu0 0
  %387 = vmatpush2.bf16.msra.mxu0 0
  %388 = vmatprep.subr.bf16.mxu0 0
  %389 = vmatpush2.bf16.msra.mxu0 0
  %390 = vmatprep.subr.bf16.mxu0 0
  %391 = vmatpush2.bf16.msra.mxu0 0
  %392 = vmatprep.subr.bf16.mxu0 0
  %393 = vmatpush2.bf16.msra.mxu0 0
  %394 = vmatprep.subr.bf16.mxu0 0
  %395 = vmatpush2.bf16.msra.mxu0 0
  %396 = vmatprep.subr.bf16.mxu0 0
  %397 = vmatpush2.bf16.msra.mxu0 0
  %398 = vmatprep.subr.bf16.mxu0 0
  %399 = vmatpush2.bf16.msra.mxu0 0
  %400 = vmatprep.mubr.bf16.mxu0 0
  %401 = vmatmul.mubr.bf16.gmra.mxu0 %v311
  %v402 = vpop.f32.mrf.mxu0
  %v403 = vadd.f32 0.0, %v402
  %v404 = vpop.f32.mrf.mxu0
  %v405 = vpop.f32.mrf.mxu0
  %v406 = vpop.f32.mrf.mxu0
  %407 = vdwg.mxu0
  %v408 = vadd.f32 %v355, %v403
  %v409 = vxor.u32 %v353, 2147483648
  %v410 = vmul.f32 %v409, 1.442695
  %v411 = vpow.pop %v410
  %v412 = vadd.f32 %v411, 1.0
  %v413 = vrcp.pop %v412
  %v414 = vmul.f32 1.0, %v413
  %v415 = vxor.u32 %v408, 2147483648
  %v416 = vmul.f32 %v415, 1.442695
  %v417 = vpow.pop %v416
  %v418 = vadd.f32 %v417, 1.0
  %v419 = vrcp.pop %v418
  %v420 = vmul.f32 1.0, %v419
  %v421 = vtanh.pop %v353
  %v422 = vtanh.pop %v408
  %v423 = vmul.f32 %v414, 0.0
  %425 = vrot.lane.b32.xlu0 %v421, 32
  %v426 = vpop.permute.xlu0 %425
  %v428 = vmul.f32 %v414, %v426
  %430 = vrot.lane.b32.xlu0 %v428, 32
  %v431 = vpop.permute.xlu0 %430
  %v433 = vadd.f32 %v423, %v431
  %v434 = vmul.f32 %v420, 0.0
  %436 = vrot.lane.b32.xlu0 %v422, 32
  %v437 = vpop.permute.xlu0 %436
  %v439 = vmul.f32 %v420, %v437
  %441 = vrot.lane.b32.xlu0 %v439, 32
  %v442 = vpop.permute.xlu0 %441
  %v444 = vadd.f32 %v434, %v442
  %v445 = vtanh.pop %v433
  %447 = vrot.lane.b32.xlu0 %v445, 32
  %v448 = vpop.permute.xlu0 %447
  %v450 = vmul.f32 %v414, %v448
  %v451 = vtanh.pop %v444
  %453 = vrot.lane.b32.xlu0 %v451, 32
  %v454 = vpop.permute.xlu0 %453
  %v456 = vmul.f32 %v420, %v454
  %458 = vrot.lane.b32.xlu0 %v450, 64
  %v459 = vpop.permute.xlu0 %458
  %vm461 = vcmask 254976
  %462 = vst.msk [vmem:[%s5] sm:$0x3] %vm461, %v459
  %464 = vrot.lane.b32.xlu0 %v456, 96
  %v465 = vpop.permute.xlu0 %464
  %s467 = scalar_lea.vmem %s5, 14
  %vm468 = vcmask 517376
  %469 = vst.msk [vmem:[%s467] sm:$0x3] %vm468, %v465
  %s470 = scalar_lea.vmem [#allocation2], 2
  %v471 = vld [vmem:[%s470] sm:$0x3]
  %v472 = vpack.c.bf16 %v450, %v450
  %474 = vrot.lane.b32.xlu0 %v472, 64
  %v475 = vpop.permute.xlu0 %474
  %v477 = vsel %vm309, %v475, 0
  %479 = vmatprep.subr.bf16.mxu0 0
  %480 = vmatpush1.bf16.msra.mxu0 0
  %481 = vmatprep.subr.bf16.mxu0 0
  %482 = vmatpush1.bf16.msra.mxu0 0
  %483 = vmatprep.subr.bf16.mxu0 0
  %484 = vmatpush1.bf16.msra.mxu0 0
  %485 = vmatprep.subr.bf16.mxu0 0
  %486 = vmatpush1.bf16.msra.mxu0 0
  %487 = vmatprep.subr.bf16.mxu0 0
  %488 = vmatpush1.bf16.msra.mxu0 0
  %489 = vmatprep.subr.bf16.mxu0 0
  %490 = vmatpush1.bf16.msra.mxu0 0
  %491 = vmatprep.subr.bf16.mxu0 0
  %492 = vmatpush1.bf16.msra.mxu0 %v306
  %493 = vmatprep.subr.bf16.mxu0 0
  %494 = vmatpush1.bf16.msra.mxu0 %v305
  %495 = vmatprep.subr.bf16.mxu0 0
  %496 = vmatpush2.bf16.msra.mxu0 0
  %497 = vmatprep.subr.bf16.mxu0 0
  %498 = vmatpush2.bf16.msra.mxu0 0
  %499 = vmatprep.subr.bf16.mxu0 0
  %500 = vmatpush2.bf16.msra.mxu0 0
  %501 = vmatprep.subr.bf16.mxu0 0
  %502 = vmatpush2.bf16.msra.mxu0 0
  %503 = vmatprep.subr.bf16.mxu0 0
  %504 = vmatpush2.bf16.msra.mxu0 0
  %505 = vmatprep.subr.bf16.mxu0 0
  %506 = vmatpush2.bf16.msra.mxu0 0
  %507 = vmatprep.subr.bf16.mxu0 0
  %508 = vmatpush2.bf16.msra.mxu0 0
  %509 = vmatprep.subr.bf16.mxu0 0
  %510 = vmatpush2.bf16.msra.mxu0 0
  %511 = vmatprep.mubr.bf16.mxu0 0
  %512 = vmatmul.mubr.bf16.gmra.mxu0 %v477
  %v513 = vpop.f32.mrf.mxu0
  %v514 = vadd.f32 0.0, %v513
  %v515 = vpop.f32.mrf.mxu0
  %v516 = vpop.f32.mrf.mxu0
  %v517 = vpop.f32.mrf.mxu0
  %518 = vdwg.mxu0
  %v519 = vadd.f32 %v471, %v514
  %s520 = scalar_lea.vmem [#allocation3], 12
  %v521 = vld [vmem:[%s520] sm:$0x3]
  %v522 = vpack.c.bf16 %v456, %v456
  %524 = vrot.lane.b32.xlu0 %v522, 64
  %v525 = vpop.permute.xlu0 %524
  %v527 = vsel %vm309, %v525, 0
  %529 = vmatprep.subr.bf16.mxu0 0
  %530 = vmatpush1.bf16.msra.mxu0 0
  %531 = vmatprep.subr.bf16.mxu0 0
  %532 = vmatpush1.bf16.msra.mxu0 0
  %533 = vmatprep.subr.bf16.mxu0 0
  %534 = vmatpush1.bf16.msra.mxu0 0
  %535 = vmatprep.subr.bf16.mxu0 0
  %536 = vmatpush1.bf16.msra.mxu0 0
  %537 = vmatprep.subr.bf16.mxu0 0
  %538 = vmatpush1.bf16.msra.mxu0 0
  %539 = vmatprep.subr.bf16.mxu0 0
  %540 = vmatpush1.bf16.msra.mxu0 0
  %541 = vmatprep.subr.bf16.mxu0 0
  %542 = vmatpush1.bf16.msra.mxu0 %v365
  %543 = vmatprep.subr.bf16.mxu0 0
  %544 = vmatpush1.bf16.msra.mxu0 %v364
  %545 = vmatprep.subr.bf16.mxu0 0
  %546 = vmatpush2.bf16.msra.mxu0 0
  %547 = vmatprep.subr.bf16.mxu0 0
  %548 = vmatpush2.bf16.msra.mxu0 0
  %549 = vmatprep.subr.bf16.mxu0 0
  %550 = vmatpush2.bf16.msra.mxu0 0
  %551 = vmatprep.subr.bf16.mxu0 0
  %552 = vmatpush2.bf16.msra.mxu0 0
  %553 = vmatprep.subr.bf16.mxu0 0
  %554 = vmatpush2.bf16.msra.mxu0 0
  %555 = vmatprep.subr.bf16.mxu0 0
  %556 = vmatpush2.bf16.msra.mxu0 0
  %557 = vmatprep.subr.bf16.mxu0 0
  %558 = vmatpush2.bf16.msra.mxu0 0
  %559 = vmatprep.subr.bf16.mxu0 0
  %560 = vmatpush2.bf16.msra.mxu0 0
  %561 = vmatprep.mubr.bf16.mxu0 0
  %562 = vmatmul.mubr.bf16.gmra.mxu0 %v527
  %v563 = vpop.f32.mrf.mxu0
  %v564 = vadd.f32 0.0, %v563
  %v565 = vpop.f32.mrf.mxu0
  %v566 = vpop.f32.mrf.mxu0
  %v567 = vpop.f32.mrf.mxu0
  %568 = vdwg.mxu0
  %v569 = vadd.f32 %v521, %v564
  %v570 = vxor.u32 %v519, 2147483648
  %v571 = vmul.f32 %v570, 1.442695
  %v572 = vpow.pop %v571
  %v573 = vadd.f32 %v572, 1.0
  %v574 = vrcp.pop %v573
  %v575 = vmul.f32 1.0, %v574
  %v576 = vxor.u32 %v569, 2147483648
  %v577 = vmul.f32 %v576, 1.442695
  %v578 = vpow.pop %v577
  %v579 = vadd.f32 %v578, 1.0
  %v580 = vrcp.pop %v579
  %v581 = vmul.f32 1.0, %v580
  %v582 = vtanh.pop %v519
  %v583 = vtanh.pop %v569
  %v584 = vmul.f32 %v575, %v433
  %586 = vrot.lane.b32.xlu0 %v582, 32
  %v587 = vpop.permute.xlu0 %586
  %v589 = vmul.f32 %v575, %v587
  %591 = vrot.lane.b32.xlu0 %v589, 32
  %v592 = vpop.permute.xlu0 %591
  %v594 = vadd.f32 %v584, %v592
  %v595 = vmul.f32 %v581, %v444
  %597 = vrot.lane.b32.xlu0 %v583, 32
  %v598 = vpop.permute.xlu0 %597
  %v600 = vmul.f32 %v581, %v598
  %602 = vrot.lane.b32.xlu0 %v600, 32
  %v603 = vpop.permute.xlu0 %602
  %v605 = vadd.f32 %v595, %v603
  %v606 = vtanh.pop %v594
  %608 = vrot.lane.b32.xlu0 %v606, 32
  %v609 = vpop.permute.xlu0 %608
  %v611 = vmul.f32 %v575, %v609
  %v612 = vtanh.pop %v605
  %614 = vrot.lane.b32.xlu0 %v612, 32
  %v615 = vpop.permute.xlu0 %614
  %v617 = vmul.f32 %v581, %v615
  %619 = vrot.lane.b32.xlu0 %v611, 64
  %v620 = vpop.permute.xlu0 %619
  %s622 = scalar_lea.vmem %s5, 2
  %623 = vst.msk [vmem:[%s622] sm:$0x3] %vm461, %v620
  %625 = vrot.lane.b32.xlu0 %v617, 96
  %v626 = vpop.permute.xlu0 %625
  %s628 = scalar_lea.vmem %s5, 12
  %629 = vst.msk [vmem:[%s628] sm:$0x3] %vm468, %v626
  %s630 = scalar_lea.vmem [#allocation2], 4
  %v631 = vld [vmem:[%s630] sm:$0x3]
  %v632 = vpack.c.bf16 %v611, %v611
  %634 = vrot.lane.b32.xlu0 %v632, 64
  %v635 = vpop.permute.xlu0 %634
  %v637 = vsel %vm309, %v635, 0
  %639 = vmatprep.subr.bf16.mxu0 0
  %640 = vmatpush1.bf16.msra.mxu0 0
  %641 = vmatprep.subr.bf16.mxu0 0
  %642 = vmatpush1.bf16.msra.mxu0 0
  %643 = vmatprep.subr.bf16.mxu0 0
  %644 = vmatpush1.bf16.msra.mxu0 0
  %645 = vmatprep.subr.bf16.mxu0 0
  %646 = vmatpush1.bf16.msra.mxu0 0
  %647 = vmatprep.subr.bf16.mxu0 0
  %648 = vmatpush1.bf16.msra.mxu0 0
  %649 = vmatprep.subr.bf16.mxu0 0
  %650 = vmatpush1.bf16.msra.mxu0 0
  %651 = vmatprep.subr.bf16.mxu0 0
  %652 = vmatpush1.bf16.msra.mxu0 %v306
  %653 = vmatprep.subr.bf16.mxu0 0
  %654 = vmatpush1.bf16.msra.mxu0 %v305
  %655 = vmatprep.subr.bf16.mxu0 0
  %656 = vmatpush2.bf16.msra.mxu0 0
  %657 = vmatprep.subr.bf16.mxu0 0
  %658 = vmatpush2.bf16.msra.mxu0 0
  %659 = vmatprep.subr.bf16.mxu0 0
  %660 = vmatpush2.bf16.msra.mxu0 0
  %661 = vmatprep.subr.bf16.mxu0 0
  %662 = vmatpush2.bf16.msra.mxu0 0
  %663 = vmatprep.subr.bf16.mxu0 0
  %664 = vmatpush2.bf16.msra.mxu0 0
  %665 = vmatprep.subr.bf16.mxu0 0
  %666 = vmatpush2.bf16.msra.mxu0 0
  %667 = vmatprep.subr.bf16.mxu0 0
  %668 = vmatpush2.bf16.msra.mxu0 0
  %669 = vmatprep.subr.bf16.mxu0 0
  %670 = vmatpush2.bf16.msra.mxu0 0
  %671 = vmatprep.mubr.bf16.mxu0 0
  %672 = vmatmul.mubr.bf16.gmra.mxu0 %v637
  %v673 = vpop.f32.mrf.mxu0
  %v674 = vadd.f32 0.0, %v673
  %v675 = vpop.f32.mrf.mxu0
  %v676 = vpop.f32.mrf.mxu0
  %v677 = vpop.f32.mrf.mxu0
  %678 = vdwg.mxu0
  %v679 = vadd.f32 %v631, %v674
  %s680 = scalar_lea.vmem [#allocation3], 10
  %v681 = vld [vmem:[%s680] sm:$0x3]
  %v682 = vpack.c.bf16 %v617, %v617
  %684 = vrot.lane.b32.xlu0 %v682, 64
  %v685 = vpop.permute.xlu0 %684
  %v687 = vsel %vm309, %v685, 0
  %689 = vmatprep.subr.bf16.mxu0 0
  %690 = vmatpush1.bf16.msra.mxu0 0
  %691 = vmatprep.subr.bf16.mxu0 0
  %692 = vmatpush1.bf16.msra.mxu0 0
  %693 = vmatprep.subr.bf16.mxu0 0
  %694 = vmatpush1.bf16.msra.mxu0 0
  %695 = vmatprep.subr.bf16.mxu0 0
  %696 = vmatpush1.bf16.msra.mxu0 0
  %697 = vmatprep.subr.bf16.mxu0 0
  %698 = vmatpush1.bf16.msra.mxu0 0
  %699 = vmatprep.subr.bf16.mxu0 0
  %700 = vmatpush1.bf16.msra.mxu0 0
  %701 = vmatprep.subr.bf16.mxu0 0
  %702 = vmatpush1.bf16.msra.mxu0 %v365
  %703 = vmatprep.subr.bf16.mxu0 0
  %704 = vmatpush1.bf16.msra.mxu0 %v364
  %705 = vmatprep.subr.bf16.mxu0 0
  %706 = vmatpush2.bf16.msra.mxu0 0
  %707 = vmatprep.subr.bf16.mxu0 0
  %708 = vmatpush2.bf16.msra.mxu0 0
  %709 = vmatprep.subr.bf16.mxu0 0
  %710 = vmatpush2.bf16.msra.mxu0 0
  %711 = vmatprep.subr.bf16.mxu0 0
  %712 = vmatpush2.bf16.msra.mxu0 0
  %713 = vmatprep.subr.bf16.mxu0 0
  %714 = vmatpush2.bf16.msra.mxu0 0
  %715 = vmatprep.subr.bf16.mxu0 0
  %716 = vmatpush2.bf16.msra.mxu0 0
  %717 = vmatprep.subr.bf16.mxu0 0
  %718 = vmatpush2.bf16.msra.mxu0 0
  %719 = vmatprep.subr.bf16.mxu0 0
  %720 = vmatpush2.bf16.msra.mxu0 0
  %721 = vmatprep.mubr.bf16.mxu0 0
  %722 = vmatmul.mubr.bf16.gmra.mxu0 %v687
  %v723 = vpop.f32.mrf.mxu0
  %v724 = vadd.f32 0.0, %v723
  %v725 = vpop.f32.mrf.mxu0
  %v726 = vpop.f32.mrf.mxu0
  %v727 = vpop.f32.mrf.mxu0
  %728 = vdwg.mxu0
  %v729 = vadd.f32 %v681, %v724
  %v730 = vxor.u32 %v679, 2147483648
  %v731 = vmul.f32 %v730, 1.442695
  %v732 = vpow.pop %v731
  %v733 = vadd.f32 %v732, 1.0
  %v734 = vrcp.pop %v733
  %v735 = vmul.f32 1.0, %v734
  %v736 = vxor.u32 %v729, 2147483648
  %v737 = vmul.f32 %v736, 1.442695
  %v738 = vpow.pop %v737
  %v739 = vadd.f32 %v738, 1.0
  %v740 = vrcp.pop %v739
  %v741 = vmul.f32 1.0, %v740
  %v742 = vtanh.pop %v679
  %v743 = vtanh.pop %v729
  %v744 = vmul.f32 %v735, %v594
  %746 = vrot.lane.b32.xlu0 %v742, 32
  %v747 = vpop.permute.xlu0 %746
  %v749 = vmul.f32 %v735, %v747
  %751 = vrot.lane.b32.xlu0 %v749, 32
  %v752 = vpop.permute.xlu0 %751
  %v754 = vadd.f32 %v744, %v752
  %v755 = vmul.f32 %v741, %v605
  %757 = vrot.lane.b32.xlu0 %v743, 32
  %v758 = vpop.permute.xlu0 %757
  %v760 = vmul.f32 %v741, %v758
  %762 = vrot.lane.b32.xlu0 %v760, 32
  %v763 = vpop.permute.xlu0 %762
  %v765 = vadd.f32 %v755, %v763
  %v766 = vtanh.pop %v754
  %768 = vrot.lane.b32.xlu0 %v766, 32
  %v769 = vpop.permute.xlu0 %768
  %v771 = vmul.f32 %v735, %v769
  %v772 = vtanh.pop %v765
  %774 = vrot.lane.b32.xlu0 %v772, 32
  %v775 = vpop.permute.xlu0 %774
  %v777 = vmul.f32 %v741, %v775
  %779 = vrot.lane.b32.xlu0 %v771, 64
  %v780 = vpop.permute.xlu0 %779
  %s782 = scalar_lea.vmem %s5, 4
  %783 = vst.msk [vmem:[%s782] sm:$0x3] %vm461, %v780
  %785 = vrot.lane.b32.xlu0 %v777, 96
  %v786 = vpop.permute.xlu0 %785
  %s788 = scalar_lea.vmem %s5, 10
  %789 = vst.msk [vmem:[%s788] sm:$0x3] %vm468, %v786
  %s790 = scalar_lea.vmem [#allocation2], 6
  %v791 = vld [vmem:[%s790] sm:$0x3]
  %v792 = vpack.c.bf16 %v771, %v771
  %794 = vrot.lane.b32.xlu0 %v792, 64
  %v795 = vpop.permute.xlu0 %794
  %v797 = vsel %vm309, %v795, 0
  %799 = vmatprep.subr.bf16.mxu0 0
  %800 = vmatpush1.bf16.msra.mxu0 0
  %801 = vmatprep.subr.bf16.mxu0 0
  %802 = vmatpush1.bf16.msra.mxu0 0
  %803 = vmatprep.subr.bf16.mxu0 0
  %804 = vmatpush1.bf16.msra.mxu0 0
  %805 = vmatprep.subr.bf16.mxu0 0
  %806 = vmatpush1.bf16.msra.mxu0 0
  %807 = vmatprep.subr.bf16.mxu0 0
  %808 = vmatpush1.bf16.msra.mxu0 0
  %809 = vmatprep.subr.bf16.mxu0 0
  %810 = vmatpush1.bf16.msra.mxu0 0
  %811 = vmatprep.subr.bf16.mxu0 0
  %812 = vmatpush1.bf16.msra.mxu0 %v306
  %813 = vmatprep.subr.bf16.mxu0 0
  %814 = vmatpush1.bf16.msra.mxu0 %v305
  %815 = vmatprep.subr.bf16.mxu0 0
  %816 = vmatpush2.bf16.msra.mxu0 0
  %817 = vmatprep.subr.bf16.mxu0 0
  %818 = vmatpush2.bf16.msra.mxu0 0
  %819 = vmatprep.subr.bf16.mxu0 0
  %820 = vmatpush2.bf16.msra.mxu0 0
  %821 = vmatprep.subr.bf16.mxu0 0
  %822 = vmatpush2.bf16.msra.mxu0 0
  %823 = vmatprep.subr.bf16.mxu0 0
  %824 = vmatpush2.bf16.msra.mxu0 0
  %825 = vmatprep.subr.bf16.mxu0 0
  %826 = vmatpush2.bf16.msra.mxu0 0
  %827 = vmatprep.subr.bf16.mxu0 0
  %828 = vmatpush2.bf16.msra.mxu0 0
  %829 = vmatprep.subr.bf16.mxu0 0
  %830 = vmatpush2.bf16.msra.mxu0 0
  %831 = vmatprep.mubr.bf16.mxu0 0
  %832 = vmatmul.mubr.bf16.gmra.mxu0 %v797
  %v833 = vpop.f32.mrf.mxu0
  %v834 = vadd.f32 0.0, %v833
  %v835 = vpop.f32.mrf.mxu0
  %v836 = vpop.f32.mrf.mxu0
  %v837 = vpop.f32.mrf.mxu0
  %838 = vdwg.mxu0
  %v839 = vadd.f32 %v791, %v834
  %s840 = scalar_lea.vmem [#allocation3], 8
  %v841 = vld [vmem:[%s840] sm:$0x3]
  %v842 = vpack.c.bf16 %v777, %v777
  %844 = vrot.lane.b32.xlu0 %v842, 64
  %v845 = vpop.permute.xlu0 %844
  %v847 = vsel %vm309, %v845, 0
  %849 = vmatprep.subr.bf16.mxu0 0
  %850 = vmatpush1.bf16.msra.mxu0 0
  %851 = vmatprep.subr.bf16.mxu0 0
  %852 = vmatpush1.bf16.msra.mxu0 0
  %853 = vmatprep.subr.bf16.mxu0 0
  %854 = vmatpush1.bf16.msra.mxu0 0
  %855 = vmatprep.subr.bf16.mxu0 0
  %856 = vmatpush1.bf16.msra.mxu0 0
  %857 = vmatprep.subr.bf16.mxu0 0
  %858 = vmatpush1.bf16.msra.mxu0 0
  %859 = vmatprep.subr.bf16.mxu0 0
  %860 = vmatpush1.bf16.msra.mxu0 0
  %861 = vmatprep.subr.bf16.mxu0 0
  %862 = vmatpush1.bf16.msra.mxu0 %v365
  %863 = vmatprep.subr.bf16.mxu0 0
  %864 = vmatpush1.bf16.msra.mxu0 %v364
  %865 = vmatprep.subr.bf16.mxu0 0
  %866 = vmatpush2.bf16.msra.mxu0 0
  %867 = vmatprep.subr.bf16.mxu0 0
  %868 = vmatpush2.bf16.msra.mxu0 0
  %869 = vmatprep.subr.bf16.mxu0 0
  %870 = vmatpush2.bf16.msra.mxu0 0
  %871 = vmatprep.subr.bf16.mxu0 0
  %872 = vmatpush2.bf16.msra.mxu0 0
  %873 = vmatprep.subr.bf16.mxu0 0
  %874 = vmatpush2.bf16.msra.mxu0 0
  %875 = vmatprep.subr.bf16.mxu0 0
  %876 = vmatpush2.bf16.msra.mxu0 0
  %877 = vmatprep.subr.bf16.mxu0 0
  %878 = vmatpush2.bf16.msra.mxu0 0
  %879 = vmatprep.subr.bf16.mxu0 0
  %880 = vmatpush2.bf16.msra.mxu0 0
  %881 = vmatprep.mubr.bf16.mxu0 0
  %882 = vmatmul.mubr.bf16.gmra.mxu0 %v847
  %v883 = vpop.f32.mrf.mxu0
  %v884 = vadd.f32 0.0, %v883
  %v885 = vpop.f32.mrf.mxu0
  %v886 = vpop.f32.mrf.mxu0
  %v887 = vpop.f32.mrf.mxu0
  %888 = vdwg.mxu0
  %v889 = vadd.f32 %v841, %v884
  %v890 = vxor.u32 %v839, 2147483648
  %v891 = vmul.f32 %v890, 1.442695
  %v892 = vpow.pop %v891
  %v893 = vadd.f32 %v892, 1.0
  %v894 = vrcp.pop %v893
  %v895 = vmul.f32 1.0, %v894
  %v896 = vxor.u32 %v889, 2147483648
  %v897 = vmul.f32 %v896, 1.442695
  %v898 = vpow.pop %v897
  %v899 = vadd.f32 %v898, 1.0
  %v900 = vrcp.pop %v899
  %v901 = vmul.f32 1.0, %v900
  %v902 = vtanh.pop %v839
  %v903 = vtanh.pop %v889
  %v904 = vmul.f32 %v895, %v754
  %906 = vrot.lane.b32.xlu0 %v902, 32
  %v907 = vpop.permute.xlu0 %906
  %v909 = vmul.f32 %v895, %v907
  %911 = vrot.lane.b32.xlu0 %v909, 32
  %v912 = vpop.permute.xlu0 %911
  %v914 = vadd.f32 %v904, %v912
  %v915 = vmul.f32 %v901, %v765
  %917 = vrot.lane.b32.xlu0 %v903, 32
  %v918 = vpop.permute.xlu0 %917
  %v920 = vmul.f32 %v901, %v918
  %922 = vrot.lane.b32.xlu0 %v920, 32
  %v923 = vpop.permute.xlu0 %922
  %v925 = vadd.f32 %v915, %v923
  %v926 = vtanh.pop %v914
  %928 = vrot.lane.b32.xlu0 %v926, 32
  %v929 = vpop.permute.xlu0 %928
  %v931 = vmul.f32 %v895, %v929
  %v932 = vtanh.pop %v925
  %934 = vrot.lane.b32.xlu0 %v932, 32
  %v935 = vpop.permute.xlu0 %934
  %v937 = vmul.f32 %v901, %v935
  %939 = vrot.lane.b32.xlu0 %v931, 64
  %v940 = vpop.permute.xlu0 %939
  %s942 = scalar_lea.vmem %s5, 6
  %943 = vst.msk [vmem:[%s942] sm:$0x3] %vm461, %v940
  %945 = vrot.lane.b32.xlu0 %v937, 96
  %v946 = vpop.permute.xlu0 %945
  %s948 = scalar_lea.vmem %s5, 8
  %949 = vst.msk [vmem:[%s948] sm:$0x3] %vm468, %v946
  %s950 = scalar_lea.vmem [#allocation2], 8
  %v951 = vld [vmem:[%s950] sm:$0x3]
  %v952 = vpack.c.bf16 %v931, %v931
  %954 = vrot.lane.b32.xlu0 %v952, 64
  %v955 = vpop.permute.xlu0 %954
  %v957 = vsel %vm309, %v955, 0
  %959 = vmatprep.subr.bf16.mxu0 0
  %960 = vmatpush1.bf16.msra.mxu0 0
  %961 = vmatprep.subr.bf16.mxu0 0
  %962 = vmatpush1.bf16.msra.mxu0 0
  %963 = vmatprep.subr.bf16.mxu0 0
  %964 = vmatpush1.bf16.msra.mxu0 0
  %965 = vmatprep.subr.bf16.mxu0 0
  %966 = vmatpush1.bf16.msra.mxu0 0
  %967 = vmatprep.subr.bf16.mxu0 0
  %968 = vmatpush1.bf16.msra.mxu0 0
  %969 = vmatprep.subr.bf16.mxu0 0
  %970 = vmatpush1.bf16.msra.mxu0 0
  %971 = vmatprep.subr.bf16.mxu0 0
  %972 = vmatpush1.bf16.msra.mxu0 %v306
  %973 = vmatprep.subr.bf16.mxu0 0
  %974 = vmatpush1.bf16.msra.mxu0 %v305
  %975 = vmatprep.subr.bf16.mxu0 0
  %976 = vmatpush2.bf16.msra.mxu0 0
  %977 = vmatprep.subr.bf16.mxu0 0
  %978 = vmatpush2.bf16.msra.mxu0 0
  %979 = vmatprep.subr.bf16.mxu0 0
  %980 = vmatpush2.bf16.msra.mxu0 0
  %981 = vmatprep.subr.bf16.mxu0 0
  %982 = vmatpush2.bf16.msra.mxu0 0
  %983 = vmatprep.subr.bf16.mxu0 0
  %984 = vmatpush2.bf16.msra.mxu0 0
  %985 = vmatprep.subr.bf16.mxu0 0
  %986 = vmatpush2.bf16.msra.mxu0 0
  %987 = vmatprep.subr.bf16.mxu0 0
  %988 = vmatpush2.bf16.msra.mxu0 0
  %989 = vmatprep.subr.bf16.mxu0 0
  %990 = vmatpush2.bf16.msra.mxu0 0
  %991 = vmatprep.mubr.bf16.mxu0 0
  %992 = vmatmul.mubr.bf16.gmra.mxu0 %v957
  %v993 = vpop.f32.mrf.mxu0
  %v994 = vadd.f32 0.0, %v993
  %v995 = vpop.f32.mrf.mxu0
  %v996 = vpop.f32.mrf.mxu0
  %v997 = vpop.f32.mrf.mxu0
  %998 = vdwg.mxu0
  %v999 = vadd.f32 %v951, %v994
  %s1000 = scalar_lea.vmem [#allocation3], 6
  %v1001 = vld [vmem:[%s1000] sm:$0x3]
  %v1002 = vpack.c.bf16 %v937, %v937
  %1004 = vrot.lane.b32.xlu0 %v1002, 64
  %v1005 = vpop.permute.xlu0 %1004
  %v1007 = vsel %vm309, %v1005, 0
  %1009 = vmatprep.subr.bf16.mxu0 0
  %1010 = vmatpush1.bf16.msra.mxu0 0
  %1011 = vmatprep.subr.bf16.mxu0 0
  %1012 = vmatpush1.bf16.msra.mxu0 0
  %1013 = vmatprep.subr.bf16.mxu0 0
  %1014 = vmatpush1.bf16.msra.mxu0 0
  %1015 = vmatprep.subr.bf16.mxu0 0
  %1016 = vmatpush1.bf16.msra.mxu0 0
  %1017 = vmatprep.subr.bf16.mxu0 0
  %1018 = vmatpush1.bf16.msra.mxu0 0
  %1019 = vmatprep.subr.bf16.mxu0 0
  %1020 = vmatpush1.bf16.msra.mxu0 0
  %1021 = vmatprep.subr.bf16.mxu0 0
  %1022 = vmatpush1.bf16.msra.mxu0 %v365
  %1023 = vmatprep.subr.bf16.mxu0 0
  %1024 = vmatpush1.bf16.msra.mxu0 %v364
  %1025 = vmatprep.subr.bf16.mxu0 0
  %1026 = vmatpush2.bf16.msra.mxu0 0
  %1027 = vmatprep.subr.bf16.mxu0 0
  %1028 = vmatpush2.bf16.msra.mxu0 0
  %1029 = vmatprep.subr.bf16.mxu0 0
  %1030 = vmatpush2.bf16.msra.mxu0 0
  %1031 = vmatprep.subr.bf16.mxu0 0
  %1032 = vmatpush2.bf16.msra.mxu0 0
  %1033 = vmatprep.subr.bf16.mxu0 0
  %1034 = vmatpush2.bf16.msra.mxu0 0
  %1035 = vmatprep.subr.bf16.mxu0 0
  %1036 = vmatpush2.bf16.msra.mxu0 0
  %1037 = vmatprep.subr.bf16.mxu0 0
  %1038 = vmatpush2.bf16.msra.mxu0 0
  %1039 = vmatprep.subr.bf16.mxu0 0
  %1040 = vmatpush2.bf16.msra.mxu0 0
  %1041 = vmatprep.mubr.bf16.mxu0 0
  %1042 = vmatmul.mubr.bf16.gmra.mxu0 %v1007
  %v1043 = vpop.f32.mrf.mxu0
  %v1044 = vadd.f32 0.0, %v1043
  %v1045 = vpop.f32.mrf.mxu0
  %v1046 = vpop.f32.mrf.mxu0
  %v1047 = vpop.f32.mrf.mxu0
  %1048 = vdwg.mxu0
  %v1049 = vadd.f32 %v1001, %v1044
  %v1050 = vxor.u32 %v999, 2147483648
  %v1051 = vmul.f32 %v1050, 1.442695
  %v1052 = vpow.pop %v1051
  %v1053 = vadd.f32 %v1052, 1.0
  %v1054 = vrcp.pop %v1053
  %v1055 = vmul.f32 1.0, %v1054
  %v1056 = vxor.u32 %v1049, 2147483648
  %v1057 = vmul.f32 %v1056, 1.442695
  %v1058 = vpow.pop %v1057
  %v1059 = vadd.f32 %v1058, 1.0
  %v1060 = vrcp.pop %v1059
  %v1061 = vmul.f32 1.0, %v1060
  %v1062 = vtanh.pop %v999
  %v1063 = vtanh.pop %v1049
  %v1064 = vmul.f32 %v1055, %v914
  %1066 = vrot.lane.b32.xlu0 %v1062, 32
  %v1067 = vpop.permute.xlu0 %1066
  %v1069 = vmul.f32 %v1055, %v1067
  %1071 = vrot.lane.b32.xlu0 %v1069, 32
  %v1072 = vpop.permute.xlu0 %1071
  %v1074 = vadd.f32 %v1064, %v1072
  %v1075 = vmul.f32 %v1061, %v925
  %1077 = vrot.lane.b32.xlu0 %v1063, 32
  %v1078 = vpop.permute.xlu0 %1077
  %v1080 = vmul.f32 %v1061, %v1078
  %1082 = vrot.lane.b32.xlu0 %v1080, 32
  %v1083 = vpop.permute.xlu0 %1082
  %v1085 = vadd.f32 %v1075, %v1083
  %v1086 = vtanh.pop %v1074
  %1088 = vrot.lane.b32.xlu0 %v1086, 32
  %v1089 = vpop.permute.xlu0 %1088
  %v1091 = vmul.f32 %v1055, %v1089
  %v1092 = vtanh.pop %v1085
  %1094 = vrot.lane.b32.xlu0 %v1092, 32
  %v1095 = vpop.permute.xlu0 %1094
  %v1097 = vmul.f32 %v1061, %v1095
  %1099 = vrot.lane.b32.xlu0 %v1091, 64
  %v1100 = vpop.permute.xlu0 %1099
  %1102 = vst.msk [vmem:[%s948] sm:$0x3] %vm461, %v1100
  %1104 = vrot.lane.b32.xlu0 %v1097, 96
  %v1105 = vpop.permute.xlu0 %1104
  %1107 = vst.msk [vmem:[%s942] sm:$0x3] %vm468, %v1105
  %s1108 = scalar_lea.vmem [#allocation2], 10
  %v1109 = vld [vmem:[%s1108] sm:$0x3]
  %v1110 = vpack.c.bf16 %v1091, %v1091
  %1112 = vrot.lane.b32.xlu0 %v1110, 64
  %v1113 = vpop.permute.xlu0 %1112
  %v1115 = vsel %vm309, %v1113, 0
  %1117 = vmatprep.subr.bf16.mxu0 0
  %1118 = vmatpush1.bf16.msra.mxu0 0
  %1119 = vmatprep.subr.bf16.mxu0 0
  %1120 = vmatpush1.bf16.msra.mxu0 0
  %1121 = vmatprep.subr.bf16.mxu0 0
  %1122 = vmatpush1.bf16.msra.mxu0 0
  %1123 = vmatprep.subr.bf16.mxu0 0
  %1124 = vmatpush1.bf16.msra.mxu0 0
  %1125 = vmatprep.subr.bf16.mxu0 0
  %1126 = vmatpush1.bf16.msra.mxu0 0
  %1127 = vmatprep.subr.bf16.mxu0 0
  %1128 = vmatpush1.bf16.msra.mxu0 0
  %1129 = vmatprep.subr.bf16.mxu0 0
  %1130 = vmatpush1.bf16.msra.mxu0 %v306
  %1131 = vmatprep.subr.bf16.mxu0 0
  %1132 = vmatpush1.bf16.msra.mxu0 %v305
  %1133 = vmatprep.subr.bf16.mxu0 0
  %1134 = vmatpush2.bf16.msra.mxu0 0
  %1135 = vmatprep.subr.bf16.mxu0 0
  %1136 = vmatpush2.bf16.msra.mxu0 0
  %1137 = vmatprep.subr.bf16.mxu0 0
  %1138 = vmatpush2.bf16.msra.mxu0 0
  %1139 = vmatprep.subr.bf16.mxu0 0
  %1140 = vmatpush2.bf16.msra.mxu0 0
  %1141 = vmatprep.subr.bf16.mxu0 0
  %1142 = vmatpush2.bf16.msra.mxu0 0
  %1143 = vmatprep.subr.bf16.mxu0 0
  %1144 = vmatpush2.bf16.msra.mxu0 0
  %1145 = vmatprep.subr.bf16.mxu0 0
  %1146 = vmatpush2.bf16.msra.mxu0 0
  %1147 = vmatprep.subr.bf16.mxu0 0
  %1148 = vmatpush2.bf16.msra.mxu0 0
  %1149 = vmatprep.mubr.bf16.mxu0 0
  %1150 = vmatmul.mubr.bf16.gmra.mxu0 %v1115
  %v1151 = vpop.f32.mrf.mxu0
  %v1152 = vadd.f32 0.0, %v1151
  %v1153 = vpop.f32.mrf.mxu0
  %v1154 = vpop.f32.mrf.mxu0
  %v1155 = vpop.f32.mrf.mxu0
  %1156 = vdwg.mxu0
  %v1157 = vadd.f32 %v1109, %v1152
  %s1158 = scalar_lea.vmem [#allocation3], 4
  %v1159 = vld [vmem:[%s1158] sm:$0x3]
  %v1160 = vpack.c.bf16 %v1097, %v1097
  %1162 = vrot.lane.b32.xlu0 %v1160, 64
  %v1163 = vpop.permute.xlu0 %1162
  %v1165 = vsel %vm309, %v1163, 0
  %1167 = vmatprep.subr.bf16.mxu0 0
  %1168 = vmatpush1.bf16.msra.mxu0 0
  %1169 = vmatprep.subr.bf16.mxu0 0
  %1170 = vmatpush1.bf16.msra.mxu0 0
  %1171 = vmatprep.subr.bf16.mxu0 0
  %1172 = vmatpush1.bf16.msra.mxu0 0
  %1173 = vmatprep.subr.bf16.mxu0 0
  %1174 = vmatpush1.bf16.msra.mxu0 0
  %1175 = vmatprep.subr.bf16.mxu0 0
  %1176 = vmatpush1.bf16.msra.mxu0 0
  %1177 = vmatprep.subr.bf16.mxu0 0
  %1178 = vmatpush1.bf16.msra.mxu0 0
  %1179 = vmatprep.subr.bf16.mxu0 0
  %1180 = vmatpush1.bf16.msra.mxu0 %v365
  %1181 = vmatprep.subr.bf16.mxu0 0
  %1182 = vmatpush1.bf16.msra.mxu0 %v364
  %1183 = vmatprep.subr.bf16.mxu0 0
  %1184 = vmatpush2.bf16.msra.mxu0 0
  %1185 = vmatprep.subr.bf16.mxu0 0
  %1186 = vmatpush2.bf16.msra.mxu0 0
  %1187 = vmatprep.subr.bf16.mxu0 0
  %1188 = vmatpush2.bf16.msra.mxu0 0
  %1189 = vmatprep.subr.bf16.mxu0 0
  %1190 = vmatpush2.bf16.msra.mxu0 0
  %1191 = vmatprep.subr.bf16.mxu0 0
  %1192 = vmatpush2.bf16.msra.mxu0 0
  %1193 = vmatprep.subr.bf16.mxu0 0
  %1194 = vmatpush2.bf16.msra.mxu0 0
  %1195 = vmatprep.subr.bf16.mxu0 0
  %1196 = vmatpush2.bf16.msra.mxu0 0
  %1197 = vmatprep.subr.bf16.mxu0 0
  %1198 = vmatpush2.bf16.msra.mxu0 0
  %1199 = vmatprep.mubr.bf16.mxu0 0
  %1200 = vmatmul.mubr.bf16.gmra.mxu0 %v1165
  %v1201 = vpop.f32.mrf.mxu0
  %v1202 = vadd.f32 0.0, %v1201
  %v1203 = vpop.f32.mrf.mxu0
  %v1204 = vpop.f32.mrf.mxu0
  %v1205 = vpop.f32.mrf.mxu0
  %1206 = vdwg.mxu0
  %v1207 = vadd.f32 %v1159, %v1202
  %v1208 = vxor.u32 %v1157, 2147483648
  %v1209 = vmul.f32 %v1208, 1.442695
  %v1210 = vpow.pop %v1209
  %v1211 = vadd.f32 %v1210, 1.0
  %v1212 = vrcp.pop %v1211
  %v1213 = vmul.f32 1.0, %v1212
  %v1214 = vxor.u32 %v1207, 2147483648
  %v1215 = vmul.f32 %v1214, 1.442695
  %v1216 = vpow.pop %v1215
  %v1217 = vadd.f32 %v1216, 1.0
  %v1218 = vrcp.pop %v1217
  %v1219 = vmul.f32 1.0, %v1218
  %v1220 = vtanh.pop %v1157
  %v1221 = vtanh.pop %v1207
  %v1222 = vmul.f32 %v1213, %v1074
  %1224 = vrot.lane.b32.xlu0 %v1220, 32
  %v1225 = vpop.permute.xlu0 %1224
  %v1227 = vmul.f32 %v1213, %v1225
  %1229 = vrot.lane.b32.xlu0 %v1227, 32
  %v1230 = vpop.permute.xlu0 %1229
  %v1232 = vadd.f32 %v1222, %v1230
  %v1233 = vmul.f32 %v1219, %v1085
  %1235 = vrot.lane.b32.xlu0 %v1221, 32
  %v1236 = vpop.permute.xlu0 %1235
  %v1238 = vmul.f32 %v1219, %v1236
  %1240 = vrot.lane.b32.xlu0 %v1238, 32
  %v1241 = vpop.permute.xlu0 %1240
  %v1243 = vadd.f32 %v1233, %v1241
  %v1244 = vtanh.pop %v1232
  %1246 = vrot.lane.b32.xlu0 %v1244, 32
  %v1247 = vpop.permute.xlu0 %1246
  %v1249 = vmul.f32 %v1213, %v1247
  %v1250 = vtanh.pop %v1243
  %1252 = vrot.lane.b32.xlu0 %v1250, 32
  %v1253 = vpop.permute.xlu0 %1252
  %v1255 = vmul.f32 %v1219, %v1253
  %1257 = vrot.lane.b32.xlu0 %v1249, 64
  %v1258 = vpop.permute.xlu0 %1257
  %1260 = vst.msk [vmem:[%s788] sm:$0x3] %vm461, %v1258
  %1262 = vrot.lane.b32.xlu0 %v1255, 96
  %v1263 = vpop.permute.xlu0 %1262
  %1265 = vst.msk [vmem:[%s782] sm:$0x3] %vm468, %v1263
  %s1266 = scalar_lea.vmem [#allocation2], 12
  %v1267 = vld [vmem:[%s1266] sm:$0x3]
  %v1268 = vpack.c.bf16 %v1249, %v1249
  %1270 = vrot.lane.b32.xlu0 %v1268, 64
  %v1271 = vpop.permute.xlu0 %1270
  %v1273 = vsel %vm309, %v1271, 0
  %1275 = vmatprep.subr.bf16.mxu0 0
  %1276 = vmatpush1.bf16.msra.mxu0 0
  %1277 = vmatprep.subr.bf16.mxu0 0
  %1278 = vmatpush1.bf16.msra.mxu0 0
  %1279 = vmatprep.subr.bf16.mxu0 0
  %1280 = vmatpush1.bf16.msra.mxu0 0
  %1281 = vmatprep.subr.bf16.mxu0 0
  %1282 = vmatpush1.bf16.msra.mxu0 0
  %1283 = vmatprep.subr.bf16.mxu0 0
  %1284 = vmatpush1.bf16.msra.mxu0 0
  %1285 = vmatprep.subr.bf16.mxu0 0
  %1286 = vmatpush1.bf16.msra.mxu0 0
  %1287 = vmatprep.subr.bf16.mxu0 0
  %1288 = vmatpush1.bf16.msra.mxu0 %v306
  %1289 = vmatprep.subr.bf16.mxu0 0
  %1290 = vmatpush1.bf16.msra.mxu0 %v305
  %1291 = vmatprep.subr.bf16.mxu0 0
  %1292 = vmatpush2.bf16.msra.mxu0 0
  %1293 = vmatprep.subr.bf16.mxu0 0
  %1294 = vmatpush2.bf16.msra.mxu0 0
  %1295 = vmatprep.subr.bf16.mxu0 0
  %1296 = vmatpush2.bf16.msra.mxu0 0
  %1297 = vmatprep.subr.bf16.mxu0 0
  %1298 = vmatpush2.bf16.msra.mxu0 0
  %1299 = vmatprep.subr.bf16.mxu0 0
  %1300 = vmatpush2.bf16.msra.mxu0 0
  %1301 = vmatprep.subr.bf16.mxu0 0
  %1302 = vmatpush2.bf16.msra.mxu0 0
  %1303 = vmatprep.subr.bf16.mxu0 0
  %1304 = vmatpush2.bf16.msra.mxu0 0
  %1305 = vmatprep.subr.bf16.mxu0 0
  %1306 = vmatpush2.bf16.msra.mxu0 0
  %1307 = vmatprep.mubr.bf16.mxu0 0
  %1308 = vmatmul.mubr.bf16.gmra.mxu0 %v1273
  %v1309 = vpop.f32.mrf.mxu0
  %v1310 = vadd.f32 0.0, %v1309
  %v1311 = vpop.f32.mrf.mxu0
  %v1312 = vpop.f32.mrf.mxu0
  %v1313 = vpop.f32.mrf.mxu0
  %1314 = vdwg.mxu0
  %v1315 = vadd.f32 %v1267, %v1310
  %s1316 = scalar_lea.vmem [#allocation3], 2
  %v1317 = vld [vmem:[%s1316] sm:$0x3]
  %v1318 = vpack.c.bf16 %v1255, %v1255
  %1320 = vrot.lane.b32.xlu0 %v1318, 64
  %v1321 = vpop.permute.xlu0 %1320
  %v1323 = vsel %vm309, %v1321, 0
  %1325 = vmatprep.subr.bf16.mxu0 0
  %1326 = vmatpush1.bf16.msra.mxu0 0
  %1327 = vmatprep.subr.bf16.mxu0 0
  %1328 = vmatpush1.bf16.msra.mxu0 0
  %1329 = vmatprep.subr.bf16.mxu0 0
  %1330 = vmatpush1.bf16.msra.mxu0 0
  %1331 = vmatprep.subr.bf16.mxu0 0
  %1332 = vmatpush1.bf16.msra.mxu0 0
  %1333 = vmatprep.subr.bf16.mxu0 0
  %1334 = vmatpush1.bf16.msra.mxu0 0
  %1335 = vmatprep.subr.bf16.mxu0 0
  %1336 = vmatpush1.bf16.msra.mxu0 0
  %1337 = vmatprep.subr.bf16.mxu0 0
  %1338 = vmatpush1.bf16.msra.mxu0 %v365
  %1339 = vmatprep.subr.bf16.mxu0 0
  %1340 = vmatpush1.bf16.msra.mxu0 %v364
  %1341 = vmatprep.subr.bf16.mxu0 0
  %1342 = vmatpush2.bf16.msra.mxu0 0
  %1343 = vmatprep.subr.bf16.mxu0 0
  %1344 = vmatpush2.bf16.msra.mxu0 0
  %1345 = vmatprep.subr.bf16.mxu0 0
  %1346 = vmatpush2.bf16.msra.mxu0 0
  %1347 = vmatprep.subr.bf16.mxu0 0
  %1348 = vmatpush2.bf16.msra.mxu0 0
  %1349 = vmatprep.subr.bf16.mxu0 0
  %1350 = vmatpush2.bf16.msra.mxu0 0
  %1351 = vmatprep.subr.bf16.mxu0 0
  %1352 = vmatpush2.bf16.msra.mxu0 0
  %1353 = vmatprep.subr.bf16.mxu0 0
  %1354 = vmatpush2.bf16.msra.mxu0 0
  %1355 = vmatprep.subr.bf16.mxu0 0
  %1356 = vmatpush2.bf16.msra.mxu0 0
  %1357 = vmatprep.mubr.bf16.mxu0 0
  %1358 = vmatmul.mubr.bf16.gmra.mxu0 %v1323
  %v1359 = vpop.f32.mrf.mxu0
  %v1360 = vadd.f32 0.0, %v1359
  %v1361 = vpop.f32.mrf.mxu0
  %v1362 = vpop.f32.mrf.mxu0
  %v1363 = vpop.f32.mrf.mxu0
  %1364 = vdwg.mxu0
  %v1365 = vadd.f32 %v1317, %v1360
  %v1366 = vxor.u32 %v1315, 2147483648
  %v1367 = vmul.f32 %v1366, 1.442695
  %v1368 = vpow.pop %v1367
  %v1369 = vadd.f32 %v1368, 1.0
  %v1370 = vrcp.pop %v1369
  %v1371 = vmul.f32 1.0, %v1370
  %v1372 = vxor.u32 %v1365, 2147483648
  %v1373 = vmul.f32 %v1372, 1.442695
  %v1374 = vpow.pop %v1373
  %v1375 = vadd.f32 %v1374, 1.0
  %v1376 = vrcp.pop %v1375
  %v1377 = vmul.f32 1.0, %v1376
  %v1378 = vtanh.pop %v1315
  %v1379 = vtanh.pop %v1365
  %v1380 = vmul.f32 %v1371, %v1232
  %1382 = vrot.lane.b32.xlu0 %v1378, 32
  %v1383 = vpop.permute.xlu0 %1382
  %v1385 = vmul.f32 %v1371, %v1383
  %1387 = vrot.lane.b32.xlu0 %v1385, 32
  %v1388 = vpop.permute.xlu0 %1387
  %v1390 = vadd.f32 %v1380, %v1388
  %v1391 = vmul.f32 %v1377, %v1243
  %1393 = vrot.lane.b32.xlu0 %v1379, 32
  %v1394 = vpop.permute.xlu0 %1393
  %v1396 = vmul.f32 %v1377, %v1394
  %1398 = vrot.lane.b32.xlu0 %v1396, 32
  %v1399 = vpop.permute.xlu0 %1398
  %v1401 = vadd.f32 %v1391, %v1399
  %v1402 = vtanh.pop %v1390
  %1404 = vrot.lane.b32.xlu0 %v1402, 32
  %v1405 = vpop.permute.xlu0 %1404
  %v1407 = vmul.f32 %v1371, %v1405
  %v1408 = vtanh.pop %v1401
  %1410 = vrot.lane.b32.xlu0 %v1408, 32
  %v1411 = vpop.permute.xlu0 %1410
  %v1413 = vmul.f32 %v1377, %v1411
  %1415 = vrot.lane.b32.xlu0 %v1407, 64
  %v1416 = vpop.permute.xlu0 %1415
  %1418 = vst.msk [vmem:[%s628] sm:$0x3] %vm461, %v1416
  %1420 = vrot.lane.b32.xlu0 %v1413, 96
  %v1421 = vpop.permute.xlu0 %1420
  %1423 = vst.msk [vmem:[%s622] sm:$0x3] %vm468, %v1421
  %s1424 = scalar_lea.vmem [#allocation2], 14
  %v1425 = vld [vmem:[%s1424] sm:$0x3]
  %v1426 = vpack.c.bf16 %v1407, %v1407
  %1428 = vrot.lane.b32.xlu0 %v1426, 64
  %v1429 = vpop.permute.xlu0 %1428
  %v1431 = vsel %vm309, %v1429, 0
  %1433 = vmatprep.subr.bf16.mxu0 0
  %1434 = vmatpush1.bf16.msra.mxu0 0
  %1435 = vmatprep.subr.bf16.mxu0 0
  %1436 = vmatpush1.bf16.msra.mxu0 0
  %1437 = vmatprep.subr.bf16.mxu0 0
  %1438 = vmatpush1.bf16.msra.mxu0 0
  %1439 = vmatprep.subr.bf16.mxu0 0
  %1440 = vmatpush1.bf16.msra.mxu0 0
  %1441 = vmatprep.subr.bf16.mxu0 0
  %1442 = vmatpush1.bf16.msra.mxu0 0
  %1443 = vmatprep.subr.bf16.mxu0 0
  %1444 = vmatpush1.bf16.msra.mxu0 0
  %1445 = vmatprep.subr.bf16.mxu0 0
  %1446 = vmatpush1.bf16.msra.mxu0 %v306
  %1447 = vmatprep.subr.bf16.mxu0 0
  %1448 = vmatpush1.bf16.msra.mxu0 %v305
  %1449 = vmatprep.subr.bf16.mxu0 0
  %1450 = vmatpush2.bf16.msra.mxu0 0
  %1451 = vmatprep.subr.bf16.mxu0 0
  %1452 = vmatpush2.bf16.msra.mxu0 0
  %1453 = vmatprep.subr.bf16.mxu0 0
  %1454 = vmatpush2.bf16.msra.mxu0 0
  %1455 = vmatprep.subr.bf16.mxu0 0
  %1456 = vmatpush2.bf16.msra.mxu0 0
  %1457 = vmatprep.subr.bf16.mxu0 0
  %1458 = vmatpush2.bf16.msra.mxu0 0
  %1459 = vmatprep.subr.bf16.mxu0 0
  %1460 = vmatpush2.bf16.msra.mxu0 0
  %1461 = vmatprep.subr.bf16.mxu0 0
  %1462 = vmatpush2.bf16.msra.mxu0 0
  %1463 = vmatprep.subr.bf16.mxu0 0
  %1464 = vmatpush2.bf16.msra.mxu0 0
  %1465 = vmatprep.mubr.bf16.mxu0 0
  %1466 = vmatmul.mubr.bf16.gmra.mxu0 %v1431
  %v1467 = vpop.f32.mrf.mxu0
  %v1468 = vadd.f32 0.0, %v1467
  %v1469 = vpop.f32.mrf.mxu0
  %v1470 = vpop.f32.mrf.mxu0
  %v1471 = vpop.f32.mrf.mxu0
  %1472 = vdwg.mxu0
  %v1473 = vadd.f32 %v1425, %v1468
  %v1474 = vld [vmem:[#allocation3] sm:$0x3]
  %v1475 = vpack.c.bf16 %v1413, %v1413
  %1477 = vrot.lane.b32.xlu0 %v1475, 64
  %v1478 = vpop.permute.xlu0 %1477
  %v1480 = vsel %vm309, %v1478, 0
  %1482 = vmatprep.subr.bf16.mxu0 0
  %1483 = vmatpush1.bf16.msra.mxu0 0
  %1484 = vmatprep.subr.bf16.mxu0 0
  %1485 = vmatpush1.bf16.msra.mxu0 0
  %1486 = vmatprep.subr.bf16.mxu0 0
  %1487 = vmatpush1.bf16.msra.mxu0 0
  %1488 = vmatprep.subr.bf16.mxu0 0
  %1489 = vmatpush1.bf16.msra.mxu0 0
  %1490 = vmatprep.subr.bf16.mxu0 0
  %1491 = vmatpush1.bf16.msra.mxu0 0
  %1492 = vmatprep.subr.bf16.mxu0 0
  %1493 = vmatpush1.bf16.msra.mxu0 0
  %1494 = vmatprep.subr.bf16.mxu0 0
  %1495 = vmatpush1.bf16.msra.mxu0 %v365
  %1496 = vmatprep.subr.bf16.mxu0 0
  %1497 = vmatpush1.bf16.msra.mxu0 %v364
  %1498 = vmatprep.subr.bf16.mxu0 0
  %1499 = vmatpush2.bf16.msra.mxu0 0
  %1500 = vmatprep.subr.bf16.mxu0 0
  %1501 = vmatpush2.bf16.msra.mxu0 0
  %1502 = vmatprep.subr.bf16.mxu0 0
  %1503 = vmatpush2.bf16.msra.mxu0 0
  %1504 = vmatprep.subr.bf16.mxu0 0
  %1505 = vmatpush2.bf16.msra.mxu0 0
  %1506 = vmatprep.subr.bf16.mxu0 0
  %1507 = vmatpush2.bf16.msra.mxu0 0
  %1508 = vmatprep.subr.bf16.mxu0 0
  %1509 = vmatpush2.bf16.msra.mxu0 0
  %1510 = vmatprep.subr.bf16.mxu0 0
  %1511 = vmatpush2.bf16.msra.mxu0 0
  %1512 = vmatprep.subr.bf16.mxu0 0
  %1513 = vmatpush2.bf16.msra.mxu0 0
  %1514 = vmatprep.mubr.bf16.mxu0 0
  %1515 = vmatmul.mubr.bf16.gmra.mxu0 %v1480
  %v1516 = vpop.f32.mrf.mxu0
  %v1517 = vadd.f32 0.0, %v1516
  %v1518 = vpop.f32.mrf.mxu0
  %v1519 = vpop.f32.mrf.mxu0
  %v1520 = vpop.f32.mrf.mxu0
  %1521 = vdwg.mxu0
  %v1522 = vadd.f32 %v1474, %v1517
  %v1523 = vxor.u32 %v1473, 2147483648
  %v1524 = vmul.f32 %v1523, 1.442695
  %v1525 = vpow.pop %v1524
  %v1526 = vadd.f32 %v1525, 1.0
  %v1527 = vrcp.pop %v1526
  %v1528 = vmul.f32 1.0, %v1527
  %v1529 = vxor.u32 %v1522, 2147483648
  %v1530 = vmul.f32 %v1529, 1.442695
  %v1531 = vpow.pop %v1530
  %v1532 = vadd.f32 %v1531, 1.0
  %v1533 = vrcp.pop %v1532
  %v1534 = vmul.f32 1.0, %v1533
  %v1535 = vtanh.pop %v1473
  %v1536 = vtanh.pop %v1522
  %v1537 = vmul.f32 %v1528, %v1390
  %1539 = vrot.lane.b32.xlu0 %v1535, 32
  %v1540 = vpop.permute.xlu0 %1539
  %v1542 = vmul.f32 %v1528, %v1540
  %1544 = vrot.lane.b32.xlu0 %v1542, 32
  %v1545 = vpop.permute.xlu0 %1544
  %v1547 = vadd.f32 %v1537, %v1545
  %v1548 = vmul.f32 %v1534, %v1401
  %1550 = vrot.lane.b32.xlu0 %v1536, 32
  %v1551 = vpop.permute.xlu0 %1550
  %v1553 = vmul.f32 %v1534, %v1551
  %1555 = vrot.lane.b32.xlu0 %v1553, 32
  %v1556 = vpop.permute.xlu0 %1555
  %v1558 = vadd.f32 %v1548, %v1556
  %v1559 = vtanh.pop %v1547
  %1561 = vrot.lane.b32.xlu0 %v1559, 32
  %v1562 = vpop.permute.xlu0 %1561
  %v1564 = vmul.f32 %v1528, %v1562
  %v1565 = vtanh.pop %v1558
  %1567 = vrot.lane.b32.xlu0 %v1565, 32
  %v1568 = vpop.permute.xlu0 %1567
  %v1570 = vmul.f32 %v1534, %v1568
  %1572 = vrot.lane.b32.xlu0 %v1564, 64
  %v1573 = vpop.permute.xlu0 %1572
  %1575 = vst.msk [vmem:[%s467] sm:$0x3] %vm461, %v1573
  %1577 = vrot.lane.b32.xlu0 %v1570, 96
  %v1578 = vpop.permute.xlu0 %1577
  %1580 = vst.msk [vmem:[%s5] sm:$0x3] %vm468, %v1578
  %1581 = vst.msk [vmem:[%s6] sm:$0x3] %vm461, %v1573
  %1582 = vrot.lane.b32.xlu0 %v1570, 64
  %v1583 = vpop.permute.xlu0 %1582
  %s1585 = scalar_lea.vmem %s6, 2
  %1586 = vst.msk [vmem:[%s1585] sm:$0x3] %vm461, %v1583
  %1588 = vrot.lane.b32.xlu0 %v1547, 96
  %v1589 = vpop.permute.xlu0 %1588
  %1591 = vst.msk [vmem:[%s7] sm:$0x3] %vm461, %v1589
  %1593 = vrot.lane.b32.xlu0 %v1558, 96
  %v1594 = vpop.permute.xlu0 %1593
  %s1596 = scalar_lea.vmem %s7, 2
  %1597 = vst.msk [vmem:[%s1596] sm:$0x3] %vm461, %v1594
  // Predicated region
  $region22: #{chimera_combook_forward.6} parent=0 // pred_check
    _
  $region23: #{chimera_combook_forward.6} parent=0 // pred_check_branch
    %1599 = sbr.rel (0) target = $region25
  $region24: #{chimera_combook_forward.6} parent=0 // pred_region
    _
  $region25: #{chimera_combook_forward.6} parent=0 // pred_fallthru
    _
  // Predicated region
  $region26: #{chimera_combook_forward.6} parent=0 // pred_check
    _
  $region27: #{chimera_combook_forward.6} parent=0 // pred_check_branch
    %1601 = sbr.rel (0) target = $region29
  $region28: #{chimera_combook_forward.6} parent=0 // pred_region
    _
  $region29: #{chimera_combook_forward.6} parent=0 // pred_fallthru
    _
  // Predicated region
  $region30: #{chimera_combook_forward.6} parent=0 // pred_check
    _
  $region31: #{chimera_combook_forward.6} parent=0 // pred_check_branch
    %1603 = sbr.rel (0) target = $region33
  $region32: #{chimera_combook_forward.6} parent=0 // pred_region
    _
  $region33: #{chimera_combook_forward.6} parent=0 // pred_fallthru
    _
  // Predicated region
  $region34: #{chimera_combook_forward.6} parent=0 // pred_check
    _
  $region35: #{chimera_combook_forward.6} parent=0 // pred_check_branch
    %1605 = sbr.rel (0) target = $region37
  $region36: #{chimera_combook_forward.6} parent=0 // pred_region
    _
  $region37: #{chimera_combook_forward.6} parent=0 // pred_fallthru
    _
  // Predicated region
  $region38: #{chimera_combook_forward.6} parent=0 // pred_check
    _
  $region39: #{chimera_combook_forward.6} parent=0 // pred_check_branch
    %1607 = sbr.rel (0) target = $region41
  $region40: #{chimera_combook_forward.6} parent=0 // pred_region
    _
  $region41: #{chimera_combook_forward.6} parent=0 // pred_fallthru
    _
  // Predicated region
  $region42: #{chimera_combook_forward.6} parent=0 // pred_check
    _
  $region43: #{chimera_combook_forward.6} parent=0 // pred_check_branch
    %1609 = sbr.rel (0) target = $region45
  $region44: #{chimera_combook_forward.6} parent=0 // pred_region
    _
  $region45: #{chimera_combook_forward.6} parent=0 // pred_fallthru
    _

// kernel: chimera_combook_forward.5
$region0: #{chimera_combook_forward.5}
  #allocation0 [shape = 'u32[]', space=smem, size = 0x4, offset = 0x4, fixed_abs, tag = 'smem constant byte address 0x4 - core index']
  #allocation1 [shape = 'u32[144,128]{1,0:T(1,128)}', space=vmem, size = 0x12000, scoped, tag = 'internal scratch']
  #allocation2 [shape = 'f32[8,2,128]{2,1,0:T(2,128)}', space=vmem, size = 0x2000, scoped, tag = 'scratch operand']
  #allocation3 [shape = 'f32[8,2,128]{2,1,0:T(2,128)}', space=vmem, size = 0x2000, scoped, tag = 'scratch operand']
  %s0 = inlined_call_operand.vmem [shape: f32[8,2,16], index: 0, kind: input, shape index: {}]
  %s1 = inlined_call_operand.hbm [shape: bf16[16,256], index: 1, kind: input, shape index: {}]
  %s2 = inlined_call_operand.hbm [shape: bf16[32,128], index: 2, kind: input, shape index: {}]
  %s3 = inlined_call_operand.hbm [shape: bf16[32,128], index: 3, kind: input, shape index: {}]
  %s4 = inlined_call_operand.hbm [shape: f32[1,256], index: 4, kind: input, shape index: {}]
  %s5 = inlined_call_operand.vmem [shape: f32[8,2,64], index: 5, kind: output, shape index: {0}]
  %s6 = inlined_call_operand.vmem [shape: f32[2,2,32], index: 6, kind: output, shape index: {1}]
  %s7 = inlined_call_operand.vmem [shape: f32[2,2,32], index: 7, kind: output, shape index: {2}]
  %8 = xla_tuple %s5, %s6, %s7
  %s9 = sld [smem:[#allocation0]]
  $region62: #{chimera_combook_forward.5} parent=0
    _
  %s11 = ssub.s32 1, %s9
  %s12 = scalar_select 0, %s11, %s9
  $region1: #{chimera_combook_forward.5} parent=0
    #allocation4 [shape = 'u8[8192]{0}', space=vmem, size = 0x2000, scoped, tag = 'input window, operand 1, single buffered']
    #allocation5 [shape = 's32[1]{0}', space=sflag, size = 0x4, scoped, tag = 'scoped memory for chimera_combook_forward.5']
    #allocation6 [shape = 'u8[8192]{0}', space=vmem, size = 0x2000, scoped, tag = 'input window, operand 2, single buffered']
    #allocation7 [shape = 's32[1]{0}', space=sflag, size = 0x4, scoped, tag = 'scoped memory for chimera_combook_forward.5']
    #allocation8 [shape = 'u8[8192]{0}', space=vmem, size = 0x2000, scoped, tag = 'input window, operand 3, single buffered']
    #allocation9 [shape = 'u8[1024]{0}', space=vmem, size = 0x400, scoped, tag = 'input window, operand 4, single buffered']
    #allocation10 [shape = 's32[1]{0}', space=sflag, size = 0x4, scoped, tag = 'scoped memory for chimera_combook_forward.5']
    %13 = vsyncpa [#allocation5], 0
    %14 = vsyncpa [#allocation7], 0
    %15 = vsyncpa [#allocation10], 0
    // Predicated region
    $region2: #{chimera_combook_forward.5} parent=1 // pred_check
      _
    $region3: #{chimera_combook_forward.5} parent=1 // pred_check_branch
      %17 = sbr.rel (0) target = $region5
    $region4: #{chimera_combook_forward.5} parent=1 // pred_region
      _
    $region5: #{chimera_combook_forward.5} parent=1 // pred_fallthru
      _
    // Predicated region
    $region6: #{chimera_combook_forward.5} parent=1 // pred_check
      _
    $region7: #{chimera_combook_forward.5} parent=1 // pred_check_branch
      %19 = sbr.rel (0) target = $region9
    $region8: #{chimera_combook_forward.5} parent=1 // pred_region
      %s21 = ssub.s32 256, 256
      %22 = vsyncadd [#allocation5], %s21
      %s23 = sshll.u32 [#allocation4], 4
      %s24 = int_to_ptr.vmem [resolvable:$true] %s23
      %29 = dma.hbm_to_vmem [thread:$0]  %s1, 256, %s24, [#allocation5], 128, 128, 8
    $region9: #{chimera_combook_forward.5} parent=1 // pred_fallthru
      _
    // Predicated region
    $region10: #{chimera_combook_forward.5} parent=1 // pred_check
      _
    $region11: #{chimera_combook_forward.5} parent=1 // pred_check_branch
      %31 = sbr.rel (0) target = $region13
    $region12: #{chimera_combook_forward.5} parent=1 // pred_region
      %s33 = ssub.s32 256, 256
      %34 = vsyncadd [#allocation7], %s33
      %s35 = sshll.u32 [#allocation6], 4
      %s36 = int_to_ptr.vmem [resolvable:$true] %s35
      %41 = dma.hbm_to_vmem [thread:$0]  %s2, 256, %s36, [#allocation7], 64, 64, 4
    $region13: #{chimera_combook_forward.5} parent=1 // pred_fallthru
      _
    // Predicated region
    $region14: #{chimera_combook_forward.5} parent=1 // pred_check
      _
    $region15: #{chimera_combook_forward.5} parent=1 // pred_check_branch
      %43 = sbr.rel (0) target = $region17
    $region16: #{chimera_combook_forward.5} parent=1 // pred_region
      %s45 = ssub.s32 256, 256
      %46 = vsyncadd [#allocation7], %s45
      %s47 = sshll.u32 [#allocation8], 4
      %s48 = int_to_ptr.vmem [resolvable:$true] %s47
      %53 = dma.hbm_to_vmem [thread:$0]  %s3, 256, %s48, [#allocation7], 64, 64, 4
    $region17: #{chimera_combook_forward.5} parent=1 // pred_fallthru
      _
    // Predicated region
    $region18: #{chimera_combook_forward.5} parent=1 // pred_check
      _
    $region19: #{chimera_combook_forward.5} parent=1 // pred_check_branch
      %55 = sbr.rel (0) target = $region21
    $region20: #{chimera_combook_forward.5} parent=1 // pred_region
      %s57 = ssub.s32 32, 32
      %58 = vsyncadd [#allocation10], %s57
      %s60 = sshll.u32 [#allocation9], 4
      %s61 = int_to_ptr.vmem [resolvable:$true] %s60
      %63 = dma.hbm_to_vmem [thread:$0]  %s4, 32, %s61, [#allocation10]
    $region21: #{chimera_combook_forward.5} parent=1 // pred_fallthru
      _
    // Predicated region
    $region22: #{chimera_combook_forward.5} parent=1 // pred_check
      _
    $region23: #{chimera_combook_forward.5} parent=1 // pred_check_branch
      %65 = sbr.rel (0) target = $region25
    $region24: #{chimera_combook_forward.5} parent=1 // pred_region
      %66 = dma.done [#allocation5], 256
    $region25: #{chimera_combook_forward.5} parent=1 // pred_fallthru
      _
    // Predicated region
    $region26: #{chimera_combook_forward.5} parent=1 // pred_check
      _
    $region27: #{chimera_combook_forward.5} parent=1 // pred_check_branch
      %68 = sbr.rel (0) target = $region29
    $region28: #{chimera_combook_forward.5} parent=1 // pred_region
      %69 = dma.done [#allocation7], 256
    $region29: #{chimera_combook_forward.5} parent=1 // pred_fallthru
      _
    // Predicated region
    $region30: #{chimera_combook_forward.5} parent=1 // pred_check
      _
    $region31: #{chimera_combook_forward.5} parent=1 // pred_check_branch
      %71 = sbr.rel (0) target = $region33
    $region32: #{chimera_combook_forward.5} parent=1 // pred_region
      %72 = dma.done [#allocation7], 256
    $region33: #{chimera_combook_forward.5} parent=1 // pred_fallthru
      _
    // Predicated region
    $region34: #{chimera_combook_forward.5} parent=1 // pred_check
      _
    $region35: #{chimera_combook_forward.5} parent=1 // pred_check_branch
      %74 = sbr.rel (0) target = $region37
    $region36: #{chimera_combook_forward.5} parent=1 // pred_region
      %75 = dma.done [#allocation10], 32
    $region37: #{chimera_combook_forward.5} parent=1 // pred_fallthru
      _
    %v77 = vld [vmem:[%s0] sm:$0x3]
    %v78 = vld [vmem:[%s0 + $0x2] sm:$0x3]
    %v79 = vld [vmem:[%s0 + $0x4] sm:$0x3]
    %v80 = vld [vmem:[%s0 + $0x6] sm:$0x3]
    %v81 = vld [vmem:[%s0 + $0x8] sm:$0x3]
    %v82 = vld [vmem:[%s0 + $0xa] sm:$0x3]
    %v83 = vld [vmem:[%s0 + $0xc] sm:$0x3]
    %v84 = vld [vmem:[%s0 + $0xe] sm:$0x3]
    %v93 = vcombine.low %v77, %v78
    %v94 = vcombine.low %v79, %v80
    %v96 = vunpack.c.l.s4 1983009808
    %v97 = vunpack.c.0.s8 %v96
    %v98 = vlaneseq
    %v99 = vshrl.u32 %v98, 7
    %v100 = vsub.s32 %v97, %v99
    %v101 = vrot.slane %v93, %v100
    %v103 = vunpack.c.l.s4 1983009808
    %v104 = vunpack.c.0.s8 %v103
    %v105 = vlaneseq
    %v106 = vshrl.u32 %v105, 7
    %v107 = vsub.s32 %v104, %v106
    %v108 = vrot.slane %v94, %v107
    %v109 = vcombine.low %v101, %v108
    %v110 = vcombine.low %v81, %v82
    %v111 = vcombine.low %v83, %v84
    %v113 = vunpack.c.l.s4 1983009808
    %v114 = vunpack.c.0.s8 %v113
    %v115 = vlaneseq
    %v116 = vshrl.u32 %v115, 7
    %v117 = vsub.s32 %v114, %v116
    %v118 = vrot.slane %v110, %v117
    %v120 = vunpack.c.l.s4 1983009808
    %v121 = vunpack.c.0.s8 %v120
    %v122 = vlaneseq
    %v123 = vshrl.u32 %v122, 7
    %v124 = vsub.s32 %v121, %v123
    %v125 = vrot.slane %v111, %v124
    %v126 = vcombine.low %v118, %v125
    %v129 = vpack.c.bf16 %v126, %v109
    %v130 = vld [vmem:[#allocation4] sm:$0xff]
    %v131 = vld [vmem:[#allocation4 + $0x8] sm:$0xff]
    %v132 = vld [vmem:[#allocation9] sm:$0x3]
    %v134 = vlaneseq
    %v135 = vshrl.u32 %v134, 7
    %v136 = vsub.s32 0, %v135
    %v137 = vrot.slane %v132, %v136
    %v138 = vlaneseq
    %v139 = vshrl.u32 %v138, 7
    %v140 = vsub.s32 1, %v139
    %v141 = vrot.slane %v132, %v140
    %v146 = vunpack.c.l.b16 %v130
    %v147 = vunpack.c.h.b16 %v130
    %v148 = vunpack.c.l.b16 %v131
    %v149 = vunpack.c.h.b16 %v131
    %v150 = vpack.c.b16 %v148, %v146
    %v151 = vpack.c.b16 %v149, %v147
    %vm154 = vcmask 130048
    %v156 = vsel %vm154, %v129, 0
    %158 = vmatprep.subr.bf16.mxu0 0
    %159 = vmatpush1.bf16.msra.mxu0 0
    %160 = vmatprep.subr.bf16.mxu0 0
    %161 = vmatpush1.bf16.msra.mxu0 0
    %162 = vmatprep.subr.bf16.mxu0 0
    %163 = vmatpush1.bf16.msra.mxu0 0
    %164 = vmatprep.subr.bf16.mxu0 0
    %165 = vmatpush1.bf16.msra.mxu0 0
    %166 = vmatprep.subr.bf16.mxu0 0
    %167 = vmatpush1.bf16.msra.mxu0 0
    %168 = vmatprep.subr.bf16.mxu0 0
    %169 = vmatpush1.bf16.msra.mxu0 0
    %170 = vmatprep.subr.bf16.mxu0 0
    %171 = vmatpush1.bf16.msra.mxu0 0
    %172 = vmatprep.subr.bf16.mxu0 %v151
    %173 = vmatpush1.bf16.msra.mxu0 %v150
    %174 = vmatprep.subr.bf16.mxu0 0
    %175 = vmatpush2.bf16.msra.mxu0 0
    %176 = vmatprep.subr.bf16.mxu0 0
    %177 = vmatpush2.bf16.msra.mxu0 0
    %178 = vmatprep.subr.bf16.mxu0 0
    %179 = vmatpush2.bf16.msra.mxu0 0
    %180 = vmatprep.subr.bf16.mxu0 0
    %181 = vmatpush2.bf16.msra.mxu0 0
    %182 = vmatprep.subr.bf16.mxu0 0
    %183 = vmatpush2.bf16.msra.mxu0 0
    %184 = vmatprep.subr.bf16.mxu0 0
    %185 = vmatpush2.bf16.msra.mxu0 0
    %186 = vmatprep.subr.bf16.mxu0 0
    %187 = vmatpush2.bf16.msra.mxu0 0
    %188 = vmatprep.subr.bf16.mxu0 0
    %189 = vmatpush2.bf16.msra.mxu0 0
    %190 = vmatprep.mubr.bf16.mxu0 0
    %191 = vmatmul.mubr.bf16.gmra.mxu0 %v156
    %v192 = vpop.f32.mrf.mxu0
    %v193 = vadd.f32 %v137, %v192
    %v194 = vpop.f32.mrf.mxu0
    %v195 = vadd.f32 %v141, %v194
    %v196 = vpop.f32.mrf.mxu0
    %v197 = vadd.f32 %v137, %v196
    %v198 = vpop.f32.mrf.mxu0
    %v199 = vadd.f32 %v141, %v198
    %200 = vdwg.mxu0
    %v203 = vcombine.high %v193, %v193
    %v205 = vunpack.c.l.s4 1983009808
    %v206 = vunpack.c.0.s8 %v205
    %v207 = vlaneseq
    %v208 = vshrl.u32 %v207, 7
    %v209 = vsub.s32 %v206, %v208
    %v210 = vrot.slane %v193, %v209
    %v212 = vunpack.c.l.s4 1983009808
    %v213 = vunpack.c.0.s8 %v212
    %v214 = vlaneseq
    %v215 = vshrl.u32 %v214, 7
    %v216 = vsub.s32 %v213, %v215
    %v217 = vrot.slane %v203, %v216
    %v218 = vcombine.high %v210, %v210
    %v219 = vcombine.high %v217, %v217
    %v220 = vcombine.high %v197, %v197
    %v222 = vunpack.c.l.s4 1983009808
    %v223 = vunpack.c.0.s8 %v222
    %v224 = vlaneseq
    %v225 = vshrl.u32 %v224, 7
    %v226 = vsub.s32 %v223, %v225
    %v227 = vrot.slane %v197, %v226
    %v229 = vunpack.c.l.s4 1983009808
    %v230 = vunpack.c.0.s8 %v229
    %v231 = vlaneseq
    %v232 = vshrl.u32 %v231, 7
    %v233 = vsub.s32 %v230, %v232
    %v234 = vrot.slane %v220, %v233
    %v235 = vcombine.high %v227, %v227
    %v236 = vcombine.high %v234, %v234
    %245 = vst [vmem:[#allocation2] sm:$0x3] %v210
    %246 = vst [vmem:[#allocation2 + $0x2] sm:$0x3] %v218
    %247 = vst [vmem:[#allocation2 + $0x4] sm:$0x3] %v217
    %248 = vst [vmem:[#allocation2 + $0x6] sm:$0x3] %v219
    %249 = vst [vmem:[#allocation2 + $0x8] sm:$0x3] %v227
    %250 = vst [vmem:[#allocation2 + $0xa] sm:$0x3] %v235
    %251 = vst [vmem:[#allocation2 + $0xc] sm:$0x3] %v234
    %252 = vst [vmem:[#allocation2 + $0xe] sm:$0x3] %v236
    %v255 = vcombine.high %v195, %v195
    %v257 = vunpack.c.l.s4 1983009808
    %v258 = vunpack.c.0.s8 %v257
    %v259 = vlaneseq
    %v260 = vshrl.u32 %v259, 7
    %v261 = vsub.s32 %v258, %v260
    %v262 = vrot.slane %v195, %v261
    %v264 = vunpack.c.l.s4 1983009808
    %v265 = vunpack.c.0.s8 %v264
    %v266 = vlaneseq
    %v267 = vshrl.u32 %v266, 7
    %v268 = vsub.s32 %v265, %v267
    %v269 = vrot.slane %v255, %v268
    %v270 = vcombine.high %v262, %v262
    %v271 = vcombine.high %v269, %v269
    %v272 = vcombine.high %v199, %v199
    %v274 = vunpack.c.l.s4 1983009808
    %v275 = vunpack.c.0.s8 %v274
    %v276 = vlaneseq
    %v277 = vshrl.u32 %v276, 7
    %v278 = vsub.s32 %v275, %v277
    %v279 = vrot.slane %v199, %v278
    %v281 = vunpack.c.l.s4 1983009808
    %v282 = vunpack.c.0.s8 %v281
    %v283 = vlaneseq
    %v284 = vshrl.u32 %v283, 7
    %v285 = vsub.s32 %v282, %v284
    %v286 = vrot.slane %v272, %v285
    %v287 = vcombine.high %v279, %v279
    %v288 = vcombine.high %v286, %v286
    %297 = vst [vmem:[#allocation3] sm:$0x3] %v262
    %298 = vst [vmem:[#allocation3 + $0x2] sm:$0x3] %v270
    %299 = vst [vmem:[#allocation3 + $0x4] sm:$0x3] %v269
    %300 = vst [vmem:[#allocation3 + $0x6] sm:$0x3] %v271
    %301 = vst [vmem:[#allocation3 + $0x8] sm:$0x3] %v279
    %302 = vst [vmem:[#allocation3 + $0xa] sm:$0x3] %v287
    %303 = vst [vmem:[#allocation3 + $0xc] sm:$0x3] %v286
    %304 = vst [vmem:[#allocation3 + $0xe] sm:$0x3] %v288
    %v305 = vld [vmem:[#allocation6] sm:$0xf]
    %v306 = vld [vmem:[#allocation6 + $0x4] sm:$0xf]
    %v307 = vld [vmem:[#allocation6 + $0x8] sm:$0xf]
    %v308 = vld [vmem:[#allocation6 + $0xc] sm:$0xf]
    %v309 = vld [vmem:[#allocation8] sm:$0xf]
    %v310 = vld [vmem:[#allocation8 + $0x4] sm:$0xf]
    %v311 = vld [vmem:[#allocation8 + $0x8] sm:$0xf]
    %v312 = vld [vmem:[#allocation8 + $0xc] sm:$0xf]
    %v313 = vld [vmem:[#allocation2] sm:$0x3]
    %v318 = vunpack.c.l.b16 %v305
    %v319 = vunpack.c.l.b16 %v306
    %v320 = vunpack.c.l.b16 %v307
    %v321 = vunpack.c.l.b16 %v308
    %v322 = vpack.c.b16 %v319, %v318
    %v323 = vpack.c.b16 %v321, %v320
    %vm326 = vcmask 261120
    %v328 = vsel %vm326, 0, 0
    %330 = vmatprep.subr.bf16.mxu0 0
    %331 = vmatpush1.bf16.msra.mxu0 0
    %332 = vmatprep.subr.bf16.mxu0 0
    %333 = vmatpush1.bf16.msra.mxu0 0
    %334 = vmatprep.subr.bf16.mxu0 0
    %335 = vmatpush1.bf16.msra.mxu0 0
    %336 = vmatprep.subr.bf16.mxu0 0
    %337 = vmatpush1.bf16.msra.mxu0 0
    %338 = vmatprep.subr.bf16.mxu0 0
    %339 = vmatpush1.bf16.msra.mxu0 0
    %340 = vmatprep.subr.bf16.mxu0 0
    %341 = vmatpush1.bf16.msra.mxu0 0
    %342 = vmatprep.subr.bf16.mxu0 0
    %343 = vmatpush1.bf16.msra.mxu0 %v323
    %344 = vmatprep.subr.bf16.mxu0 0
    %345 = vmatpush1.bf16.msra.mxu0 %v322
    %346 = vmatprep.subr.bf16.mxu0 0
    %347 = vmatpush2.bf16.msra.mxu0 0
    %348 = vmatprep.subr.bf16.mxu0 0
    %349 = vmatpush2.bf16.msra.mxu0 0
    %350 = vmatprep.subr.bf16.mxu0 0
    %351 = vmatpush2.bf16.msra.mxu0 0
    %352 = vmatprep.subr.bf16.mxu0 0
    %353 = vmatpush2.bf16.msra.mxu0 0
    %354 = vmatprep.subr.bf16.mxu0 0
    %355 = vmatpush2.bf16.msra.mxu0 0
    %356 = vmatprep.subr.bf16.mxu0 0
    %357 = vmatpush2.bf16.msra.mxu0 0
    %358 = vmatprep.subr.bf16.mxu0 0
    %359 = vmatpush2.bf16.msra.mxu0 0
    %360 = vmatprep.subr.bf16.mxu0 0
    %361 = vmatpush2.bf16.msra.mxu0 0
    %362 = vmatprep.mubr.bf16.mxu0 0
    %363 = vmatmul.mubr.bf16.gmra.mxu0 %v328
    %v364 = vpop.f32.mrf.mxu0
    %v365 = vadd.f32 0.0, %v364
    %v366 = vpop.f32.mrf.mxu0
    %v367 = vpop.f32.mrf.mxu0
    %v368 = vpop.f32.mrf.mxu0
    %369 = vdwg.mxu0
    %v370 = vadd.f32 %v313, %v365
    %s371 = scalar_lea.vmem [#allocation3], 14
    %v372 = vld [vmem:[%s371] sm:$0x3]
    %v377 = vunpack.c.l.b16 %v309
    %v378 = vunpack.c.l.b16 %v310
    %v379 = vunpack.c.l.b16 %v311
    %v380 = vunpack.c.l.b16 %v312
    %v381 = vpack.c.b16 %v378, %v377
    %v382 = vpack.c.b16 %v380, %v379
    %385 = vmatprep.subr.bf16.mxu0 0
    %386 = vmatpush1.bf16.msra.mxu0 0
    %387 = vmatprep.subr.bf16.mxu0 0
    %388 = vmatpush1.bf16.msra.mxu0 0
    %389 = vmatprep.subr.bf16.mxu0 0
    %390 = vmatpush1.bf16.msra.mxu0 0
    %391 = vmatprep.subr.bf16.mxu0 0
    %392 = vmatpush1.bf16.msra.mxu0 0
    %393 = vmatprep.subr.bf16.mxu0 0
    %394 = vmatpush1.bf16.msra.mxu0 0
    %395 = vmatprep.subr.bf16.mxu0 0
    %396 = vmatpush1.bf16.msra.mxu0 0
    %397 = vmatprep.subr.bf16.mxu0 0
    %398 = vmatpush1.bf16.msra.mxu0 %v382
    %399 = vmatprep.subr.bf16.mxu0 0
    %400 = vmatpush1.bf16.msra.mxu0 %v381
    %401 = vmatprep.subr.bf16.mxu0 0
    %402 = vmatpush2.bf16.msra.mxu0 0
    %403 = vmatprep.subr.bf16.mxu0 0
    %404 = vmatpush2.bf16.msra.mxu0 0
    %405 = vmatprep.subr.bf16.mxu0 0
    %406 = vmatpush2.bf16.msra.mxu0 0
    %407 = vmatprep.subr.bf16.mxu0 0
    %408 = vmatpush2.bf16.msra.mxu0 0
    %409 = vmatprep.subr.bf16.mxu0 0
    %410 = vmatpush2.bf16.msra.mxu0 0
    %411 = vmatprep.subr.bf16.mxu0 0
    %412 = vmatpush2.bf16.msra.mxu0 0
    %413 = vmatprep.subr.bf16.mxu0 0
    %414 = vmatpush2.bf16.msra.mxu0 0
    %415 = vmatprep.subr.bf16.mxu0 0
    %416 = vmatpush2.bf16.msra.mxu0 0
    %417 = vmatprep.mubr.bf16.mxu0 0
    %418 = vmatmul.mubr.bf16.gmra.mxu0 %v328
    %v419 = vpop.f32.mrf.mxu0
    %v420 = vadd.f32 0.0, %v419
    %v421 = vpop.f32.mrf.mxu0
    %v422 = vpop.f32.mrf.mxu0
    %v423 = vpop.f32.mrf.mxu0
    %424 = vdwg.mxu0
    %v425 = vadd.f32 %v372, %v420
    %v426 = vxor.u32 %v370, 2147483648
    %v427 = vmul.f32 %v426, 1.442695
    %v428 = vpow.pop %v427
    %v429 = vadd.f32 %v428, 1.0
    %v430 = vrcp.pop %v429
    %v431 = vmul.f32 1.0, %v430
    %v432 = vxor.u32 %v425, 2147483648
    %v433 = vmul.f32 %v432, 1.442695
    %v434 = vpow.pop %v433
    %v435 = vadd.f32 %v434, 1.0
    %v436 = vrcp.pop %v435
    %v437 = vmul.f32 1.0, %v436
    %v438 = vtanh.pop %v370
    %v439 = vtanh.pop %v425
    %v440 = vmul.f32 %v431, 0.0
    %442 = vrot.lane.b32.xlu0 %v438, 32
    %v443 = vpop.permute.xlu0 %442
    %v445 = vmul.f32 %v431, %v443
    %447 = vrot.lane.b32.xlu0 %v445, 32
    %v448 = vpop.permute.xlu0 %447
    %v450 = vadd.f32 %v440, %v448
    %v451 = vmul.f32 %v437, 0.0
    %453 = vrot.lane.b32.xlu0 %v439, 32
    %v454 = vpop.permute.xlu0 %453
    %v456 = vmul.f32 %v437, %v454
    %458 = vrot.lane.b32.xlu0 %v456, 32
    %v459 = vpop.permute.xlu0 %458
    %v461 = vadd.f32 %v451, %v459
    %v462 = vtanh.pop %v450
    %464 = vrot.lane.b32.xlu0 %v462, 32
    %v465 = vpop.permute.xlu0 %464
    %v467 = vmul.f32 %v431, %v465
    %v468 = vtanh.pop %v461
    %470 = vrot.lane.b32.xlu0 %v468, 32
    %v471 = vpop.permute.xlu0 %470
    %v473 = vmul.f32 %v437, %v471
    %475 = vrot.lane.b32.xlu0 %v467, 64
    %v476 = vpop.permute.xlu0 %475
    %vm478 = vcmask 254976
    %479 = vst.msk [vmem:[%s5] sm:$0x3] %vm478, %v476
    %481 = vrot.lane.b32.xlu0 %v473, 96
    %v482 = vpop.permute.xlu0 %481
    %s484 = scalar_lea.vmem %s5, 14
    %vm485 = vcmask 517376
    %486 = vst.msk [vmem:[%s484] sm:$0x3] %vm485, %v482
    %s487 = scalar_lea.vmem [#allocation2], 2
    %v488 = vld [vmem:[%s487] sm:$0x3]
    %v489 = vpack.c.bf16 %v467, %v467
    %491 = vrot.lane.b32.xlu0 %v489, 64
    %v492 = vpop.permute.xlu0 %491
    %v494 = vsel %vm326, %v492, 0
    %496 = vmatprep.subr.bf16.mxu0 0
    %497 = vmatpush1.bf16.msra.mxu0 0
    %498 = vmatprep.subr.bf16.mxu0 0
    %499 = vmatpush1.bf16.msra.mxu0 0
    %500 = vmatprep.subr.bf16.mxu0 0
    %501 = vmatpush1.bf16.msra.mxu0 0
    %502 = vmatprep.subr.bf16.mxu0 0
    %503 = vmatpush1.bf16.msra.mxu0 0
    %504 = vmatprep.subr.bf16.mxu0 0
    %505 = vmatpush1.bf16.msra.mxu0 0
    %506 = vmatprep.subr.bf16.mxu0 0
    %507 = vmatpush1.bf16.msra.mxu0 0
    %508 = vmatprep.subr.bf16.mxu0 0
    %509 = vmatpush1.bf16.msra.mxu0 %v323
    %510 = vmatprep.subr.bf16.mxu0 0
    %511 = vmatpush1.bf16.msra.mxu0 %v322
    %512 = vmatprep.subr.bf16.mxu0 0
    %513 = vmatpush2.bf16.msra.mxu0 0
    %514 = vmatprep.subr.bf16.mxu0 0
    %515 = vmatpush2.bf16.msra.mxu0 0
    %516 = vmatprep.subr.bf16.mxu0 0
    %517 = vmatpush2.bf16.msra.mxu0 0
    %518 = vmatprep.subr.bf16.mxu0 0
    %519 = vmatpush2.bf16.msra.mxu0 0
    %520 = vmatprep.subr.bf16.mxu0 0
    %521 = vmatpush2.bf16.msra.mxu0 0
    %522 = vmatprep.subr.bf16.mxu0 0
    %523 = vmatpush2.bf16.msra.mxu0 0
    %524 = vmatprep.subr.bf16.mxu0 0
    %525 = vmatpush2.bf16.msra.mxu0 0
    %526 = vmatprep.subr.bf16.mxu0 0
    %527 = vmatpush2.bf16.msra.mxu0 0
    %528 = vmatprep.mubr.bf16.mxu0 0
    %529 = vmatmul.mubr.bf16.gmra.mxu0 %v494
    %v530 = vpop.f32.mrf.mxu0
    %v531 = vadd.f32 0.0, %v530
    %v532 = vpop.f32.mrf.mxu0
    %v533 = vpop.f32.mrf.mxu0
    %v534 = vpop.f32.mrf.mxu0
    %535 = vdwg.mxu0
    %v536 = vadd.f32 %v488, %v531
    %s537 = scalar_lea.vmem [#allocation3], 12
    %v538 = vld [vmem:[%s537] sm:$0x3]
    %v539 = vpack.c.bf16 %v473, %v473
    %541 = vrot.lane.b32.xlu0 %v539, 64
    %v542 = vpop.permute.xlu0 %541
    %v544 = vsel %vm326, %v542, 0
    %546 = vmatprep.subr.bf16.mxu0 0
    %547 = vmatpush1.bf16.msra.mxu0 0
    %548 = vmatprep.subr.bf16.mxu0 0
    %549 = vmatpush1.bf16.msra.mxu0 0
    %550 = vmatprep.subr.bf16.mxu0 0
    %551 = vmatpush1.bf16.msra.mxu0 0
    %552 = vmatprep.subr.bf16.mxu0 0
    %553 = vmatpush1.bf16.msra.mxu0 0
    %554 = vmatprep.subr.bf16.mxu0 0
    %555 = vmatpush1.bf16.msra.mxu0 0
    %556 = vmatprep.subr.bf16.mxu0 0
    %557 = vmatpush1.bf16.msra.mxu0 0
    %558 = vmatprep.subr.bf16.mxu0 0
    %559 = vmatpush1.bf16.msra.mxu0 %v382
    %560 = vmatprep.subr.bf16.mxu0 0
    %561 = vmatpush1.bf16.msra.mxu0 %v381
    %562 = vmatprep.subr.bf16.mxu0 0
    %563 = vmatpush2.bf16.msra.mxu0 0
    %564 = vmatprep.subr.bf16.mxu0 0
    %565 = vmatpush2.bf16.msra.mxu0 0
    %566 = vmatprep.subr.bf16.mxu0 0
    %567 = vmatpush2.bf16.msra.mxu0 0
    %568 = vmatprep.subr.bf16.mxu0 0
    %569 = vmatpush2.bf16.msra.mxu0 0
    %570 = vmatprep.subr.bf16.mxu0 0
    %571 = vmatpush2.bf16.msra.mxu0 0
    %572 = vmatprep.subr.bf16.mxu0 0
    %573 = vmatpush2.bf16.msra.mxu0 0
    %574 = vmatprep.subr.bf16.mxu0 0
    %575 = vmatpush2.bf16.msra.mxu0 0
    %576 = vmatprep.subr.bf16.mxu0 0
    %577 = vmatpush2.bf16.msra.mxu0 0
    %578 = vmatprep.mubr.bf16.mxu0 0
    %579 = vmatmul.mubr.bf16.gmra.mxu0 %v544
    %v580 = vpop.f32.mrf.mxu0
    %v581 = vadd.f32 0.0, %v580
    %v582 = vpop.f32.mrf.mxu0
    %v583 = vpop.f32.mrf.mxu0
    %v584 = vpop.f32.mrf.mxu0
    %585 = vdwg.mxu0
    %v586 = vadd.f32 %v538, %v581
    %v587 = vxor.u32 %v536, 2147483648
    %v588 = vmul.f32 %v587, 1.442695
    %v589 = vpow.pop %v588
    %v590 = vadd.f32 %v589, 1.0
    %v591 = vrcp.pop %v590
    %v592 = vmul.f32 1.0, %v591
    %v593 = vxor.u32 %v586, 2147483648
    %v594 = vmul.f32 %v593, 1.442695
    %v595 = vpow.pop %v594
    %v596 = vadd.f32 %v595, 1.0
    %v597 = vrcp.pop %v596
    %v598 = vmul.f32 1.0, %v597
    %v599 = vtanh.pop %v536
    %v600 = vtanh.pop %v586
    %v601 = vmul.f32 %v592, %v450
    %603 = vrot.lane.b32.xlu0 %v599, 32
    %v604 = vpop.permute.xlu0 %603
    %v606 = vmul.f32 %v592, %v604
    %608 = vrot.lane.b32.xlu0 %v606, 32
    %v609 = vpop.permute.xlu0 %608
    %v611 = vadd.f32 %v601, %v609
    %v612 = vmul.f32 %v598, %v461
    %614 = vrot.lane.b32.xlu0 %v600, 32
    %v615 = vpop.permute.xlu0 %614
    %v617 = vmul.f32 %v598, %v615
    %619 = vrot.lane.b32.xlu0 %v617, 32
    %v620 = vpop.permute.xlu0 %619
    %v622 = vadd.f32 %v612, %v620
    %v623 = vtanh.pop %v611
    %625 = vrot.lane.b32.xlu0 %v623, 32
    %v626 = vpop.permute.xlu0 %625
    %v628 = vmul.f32 %v592, %v626
    %v629 = vtanh.pop %v622
    %631 = vrot.lane.b32.xlu0 %v629, 32
    %v632 = vpop.permute.xlu0 %631
    %v634 = vmul.f32 %v598, %v632
    %636 = vrot.lane.b32.xlu0 %v628, 64
    %v637 = vpop.permute.xlu0 %636
    %s639 = scalar_lea.vmem %s5, 2
    %640 = vst.msk [vmem:[%s639] sm:$0x3] %vm478, %v637
    %642 = vrot.lane.b32.xlu0 %v634, 96
    %v643 = vpop.permute.xlu0 %642
    %s645 = scalar_lea.vmem %s5, 12
    %646 = vst.msk [vmem:[%s645] sm:$0x3] %vm485, %v643
    %s647 = scalar_lea.vmem [#allocation2], 4
    %v648 = vld [vmem:[%s647] sm:$0x3]
    %v649 = vpack.c.bf16 %v628, %v628
    %651 = vrot.lane.b32.xlu0 %v649, 64
    %v652 = vpop.permute.xlu0 %651
    %v654 = vsel %vm326, %v652, 0
    %656 = vmatprep.subr.bf16.mxu0 0
    %657 = vmatpush1.bf16.msra.mxu0 0
    %658 = vmatprep.subr.bf16.mxu0 0
    %659 = vmatpush1.bf16.msra.mxu0 0
    %660 = vmatprep.subr.bf16.mxu0 0
    %661 = vmatpush1.bf16.msra.mxu0 0
    %662 = vmatprep.subr.bf16.mxu0 0
    %663 = vmatpush1.bf16.msra.mxu0 0
    %664 = vmatprep.subr.bf16.mxu0 0
    %665 = vmatpush1.bf16.msra.mxu0 0
    %666 = vmatprep.subr.bf16.mxu0 0
    %667 = vmatpush1.bf16.msra.mxu0 0
    %668 = vmatprep.subr.bf16.mxu0 0
    %669 = vmatpush1.bf16.msra.mxu0 %v323
    %670 = vmatprep.subr.bf16.mxu0 0
    %671 = vmatpush1.bf16.msra.mxu0 %v322
    %672 = vmatprep.subr.bf16.mxu0 0
    %673 = vmatpush2.bf16.msra.mxu0 0
    %674 = vmatprep.subr.bf16.mxu0 0
    %675 = vmatpush2.bf16.msra.mxu0 0
    %676 = vmatprep.subr.bf16.mxu0 0
    %677 = vmatpush2.bf16.msra.mxu0 0
    %678 = vmatprep.subr.bf16.mxu0 0
    %679 = vmatpush2.bf16.msra.mxu0 0
    %680 = vmatprep.subr.bf16.mxu0 0
    %681 = vmatpush2.bf16.msra.mxu0 0
    %682 = vmatprep.subr.bf16.mxu0 0
    %683 = vmatpush2.bf16.msra.mxu0 0
    %684 = vmatprep.subr.bf16.mxu0 0
    %685 = vmatpush2.bf16.msra.mxu0 0
    %686 = vmatprep.subr.bf16.mxu0 0
    %687 = vmatpush2.bf16.msra.mxu0 0
    %688 = vmatprep.mubr.bf16.mxu0 0
    %689 = vmatmul.mubr.bf16.gmra.mxu0 %v654
    %v690 = vpop.f32.mrf.mxu0
    %v691 = vadd.f32 0.0, %v690
    %v692 = vpop.f32.mrf.mxu0
    %v693 = vpop.f32.mrf.mxu0
    %v694 = vpop.f32.mrf.mxu0
    %695 = vdwg.mxu0
    %v696 = vadd.f32 %v648, %v691
    %s697 = scalar_lea.vmem [#allocation3], 10
    %v698 = vld [vmem:[%s697] sm:$0x3]
    %v699 = vpack.c.bf16 %v634, %v634
    %701 = vrot.lane.b32.xlu0 %v699, 64
    %v702 = vpop.permute.xlu0 %701
    %v704 = vsel %vm326, %v702, 0
    %706 = vmatprep.subr.bf16.mxu0 0
    %707 = vmatpush1.bf16.msra.mxu0 0
    %708 = vmatprep.subr.bf16.mxu0 0
    %709 = vmatpush1.bf16.msra.mxu0 0
    %710 = vmatprep.subr.bf16.mxu0 0
    %711 = vmatpush1.bf16.msra.mxu0 0
    %712 = vmatprep.subr.bf16.mxu0 0
    %713 = vmatpush1.bf16.msra.mxu0 0
    %714 = vmatprep.subr.bf16.mxu0 0
    %715 = vmatpush1.bf16.msra.mxu0 0
    %716 = vmatprep.subr.bf16.mxu0 0
    %717 = vmatpush1.bf16.msra.mxu0 0
    %718 = vmatprep.subr.bf16.mxu0 0
    %719 = vmatpush1.bf16.msra.mxu0 %v382
    %720 = vmatprep.subr.bf16.mxu0 0
    %721 = vmatpush1.bf16.msra.mxu0 %v381
    %722 = vmatprep.subr.bf16.mxu0 0
    %723 = vmatpush2.bf16.msra.mxu0 0
    %724 = vmatprep.subr.bf16.mxu0 0
    %725 = vmatpush2.bf16.msra.mxu0 0
    %726 = vmatprep.subr.bf16.mxu0 0
    %727 = vmatpush2.bf16.msra.mxu0 0
    %728 = vmatprep.subr.bf16.mxu0 0
    %729 = vmatpush2.bf16.msra.mxu0 0
    %730 = vmatprep.subr.bf16.mxu0 0
    %731 = vmatpush2.bf16.msra.mxu0 0
    %732 = vmatprep.subr.bf16.mxu0 0
    %733 = vmatpush2.bf16.msra.mxu0 0
    %734 = vmatprep.subr.bf16.mxu0 0
    %735 = vmatpush2.bf16.msra.mxu0 0
    %736 = vmatprep.subr.bf16.mxu0 0
    %737 = vmatpush2.bf16.msra.mxu0 0
    %738 = vmatprep.mubr.bf16.mxu0 0
    %739 = vmatmul.mubr.bf16.gmra.mxu0 %v704
    %v740 = vpop.f32.mrf.mxu0
    %v741 = vadd.f32 0.0, %v740
    %v742 = vpop.f32.mrf.mxu0
    %v743 = vpop.f32.mrf.mxu0
    %v744 = vpop.f32.mrf.mxu0
    %745 = vdwg.mxu0
    %v746 = vadd.f32 %v698, %v741
    %v747 = vxor.u32 %v696, 2147483648
    %v748 = vmul.f32 %v747, 1.442695
    %v749 = vpow.pop %v748
    %v750 = vadd.f32 %v749, 1.0
    %v751 = vrcp.pop %v750
    %v752 = vmul.f32 1.0, %v751
    %v753 = vxor.u32 %v746, 2147483648
    %v754 = vmul.f32 %v753, 1.442695
    %v755 = vpow.pop %v754
    %v756 = vadd.f32 %v755, 1.0
    %v757 = vrcp.pop %v756
    %v758 = vmul.f32 1.0, %v757
    %v759 = vtanh.pop %v696
    %v760 = vtanh.pop %v746
    %v761 = vmul.f32 %v752, %v611
    %763 = vrot.lane.b32.xlu0 %v759, 32
    %v764 = vpop.permute.xlu0 %763
    %v766 = vmul.f32 %v752, %v764
    %768 = vrot.lane.b32.xlu0 %v766, 32
    %v769 = vpop.permute.xlu0 %768
    %v771 = vadd.f32 %v761, %v769
    %v772 = vmul.f32 %v758, %v622
    %774 = vrot.lane.b32.xlu0 %v760, 32
    %v775 = vpop.permute.xlu0 %774
    %v777 = vmul.f32 %v758, %v775
    %779 = vrot.lane.b32.xlu0 %v777, 32
    %v780 = vpop.permute.xlu0 %779
    %v782 = vadd.f32 %v772, %v780
    %v783 = vtanh.pop %v771
    %785 = vrot.lane.b32.xlu0 %v783, 32
    %v786 = vpop.permute.xlu0 %785
    %v788 = vmul.f32 %v752, %v786
    %v789 = vtanh.pop %v782
    %791 = vrot.lane.b32.xlu0 %v789, 32
    %v792 = vpop.permute.xlu0 %791
    %v794 = vmul.f32 %v758, %v792
    %796 = vrot.lane.b32.xlu0 %v788, 64
    %v797 = vpop.permute.xlu0 %796
    %s799 = scalar_lea.vmem %s5, 4
    %800 = vst.msk [vmem:[%s799] sm:$0x3] %vm478, %v797
    %802 = vrot.lane.b32.xlu0 %v794, 96
    %v803 = vpop.permute.xlu0 %802
    %s805 = scalar_lea.vmem %s5, 10
    %806 = vst.msk [vmem:[%s805] sm:$0x3] %vm485, %v803
    %s807 = scalar_lea.vmem [#allocation2], 6
    %v808 = vld [vmem:[%s807] sm:$0x3]
    %v809 = vpack.c.bf16 %v788, %v788
    %811 = vrot.lane.b32.xlu0 %v809, 64
    %v812 = vpop.permute.xlu0 %811
    %v814 = vsel %vm326, %v812, 0
    %816 = vmatprep.subr.bf16.mxu0 0
    %817 = vmatpush1.bf16.msra.mxu0 0
    %818 = vmatprep.subr.bf16.mxu0 0
    %819 = vmatpush1.bf16.msra.mxu0 0
    %820 = vmatprep.subr.bf16.mxu0 0
    %821 = vmatpush1.bf16.msra.mxu0 0
    %822 = vmatprep.subr.bf16.mxu0 0
    %823 = vmatpush1.bf16.msra.mxu0 0
    %824 = vmatprep.subr.bf16.mxu0 0
    %825 = vmatpush1.bf16.msra.mxu0 0
    %826 = vmatprep.subr.bf16.mxu0 0
    %827 = vmatpush1.bf16.msra.mxu0 0
    %828 = vmatprep.subr.bf16.mxu0 0
    %829 = vmatpush1.bf16.msra.mxu0 %v323
    %830 = vmatprep.subr.bf16.mxu0 0
    %831 = vmatpush1.bf16.msra.mxu0 %v322
    %832 = vmatprep.subr.bf16.mxu0 0
    %833 = vmatpush2.bf16.msra.mxu0 0
    %834 = vmatprep.subr.bf16.mxu0 0
    %835 = vmatpush2.bf16.msra.mxu0 0
    %836 = vmatprep.subr.bf16.mxu0 0
    %837 = vmatpush2.bf16.msra.mxu0 0
    %838 = vmatprep.subr.bf16.mxu0 0
    %839 = vmatpush2.bf16.msra.mxu0 0
    %840 = vmatprep.subr.bf16.mxu0 0
    %841 = vmatpush2.bf16.msra.mxu0 0
    %842 = vmatprep.subr.bf16.mxu0 0
    %843 = vmatpush2.bf16.msra.mxu0 0
    %844 = vmatprep.subr.bf16.mxu0 0
    %845 = vmatpush2.bf16.msra.mxu0 0
    %846 = vmatprep.subr.bf16.mxu0 0
    %847 = vmatpush2.bf16.msra.mxu0 0
    %848 = vmatprep.mubr.bf16.mxu0 0
    %849 = vmatmul.mubr.bf16.gmra.mxu0 %v814
    %v850 = vpop.f32.mrf.mxu0
    %v851 = vadd.f32 0.0, %v850
    %v852 = vpop.f32.mrf.mxu0
    %v853 = vpop.f32.mrf.mxu0
    %v854 = vpop.f32.mrf.mxu0
    %855 = vdwg.mxu0
    %v856 = vadd.f32 %v808, %v851
    %s857 = scalar_lea.vmem [#allocation3], 8
    %v858 = vld [vmem:[%s857] sm:$0x3]
    %v859 = vpack.c.bf16 %v794, %v794
    %861 = vrot.lane.b32.xlu0 %v859, 64
    %v862 = vpop.permute.xlu0 %861
    %v864 = vsel %vm326, %v862, 0
    %866 = vmatprep.subr.bf16.mxu0 0
    %867 = vmatpush1.bf16.msra.mxu0 0
    %868 = vmatprep.subr.bf16.mxu0 0
    %869 = vmatpush1.bf16.msra.mxu0 0
    %870 = vmatprep.subr.bf16.mxu0 0
    %871 = vmatpush1.bf16.msra.mxu0 0
    %872 = vmatprep.subr.bf16.mxu0 0
    %873 = vmatpush1.bf16.msra.mxu0 0
    %874 = vmatprep.subr.bf16.mxu0 0
    %875 = vmatpush1.bf16.msra.mxu0 0
    %876 = vmatprep.subr.bf16.mxu0 0
    %877 = vmatpush1.bf16.msra.mxu0 0
    %878 = vmatprep.subr.bf16.mxu0 0
    %879 = vmatpush1.bf16.msra.mxu0 %v382
    %880 = vmatprep.subr.bf16.mxu0 0
    %881 = vmatpush1.bf16.msra.mxu0 %v381
    %882 = vmatprep.subr.bf16.mxu0 0
    %883 = vmatpush2.bf16.msra.mxu0 0
    %884 = vmatprep.subr.bf16.mxu0 0
    %885 = vmatpush2.bf16.msra.mxu0 0
    %886 = vmatprep.subr.bf16.mxu0 0
    %887 = vmatpush2.bf16.msra.mxu0 0
    %888 = vmatprep.subr.bf16.mxu0 0
    %889 = vmatpush2.bf16.msra.mxu0 0
    %890 = vmatprep.subr.bf16.mxu0 0
    %891 = vmatpush2.bf16.msra.mxu0 0
    %892 = vmatprep.subr.bf16.mxu0 0
    %893 = vmatpush2.bf16.msra.mxu0 0
    %894 = vmatprep.subr.bf16.mxu0 0
    %895 = vmatpush2.bf16.msra.mxu0 0
    %896 = vmatprep.subr.bf16.mxu0 0
    %897 = vmatpush2.bf16.msra.mxu0 0
    %898 = vmatprep.mubr.bf16.mxu0 0
    %899 = vmatmul.mubr.bf16.gmra.mxu0 %v864
    %v900 = vpop.f32.mrf.mxu0
    %v901 = vadd.f32 0.0, %v900
    %v902 = vpop.f32.mrf.mxu0
    %v903 = vpop.f32.mrf.mxu0
    %v904 = vpop.f32.mrf.mxu0
    %905 = vdwg.mxu0
    %v906 = vadd.f32 %v858, %v901
    %v907 = vxor.u32 %v856, 2147483648
    %v908 = vmul.f32 %v907, 1.442695
    %v909 = vpow.pop %v908
    %v910 = vadd.f32 %v909, 1.0
    %v911 = vrcp.pop %v910
    %v912 = vmul.f32 1.0, %v911
    %v913 = vxor.u32 %v906, 2147483648
    %v914 = vmul.f32 %v913, 1.442695
    %v915 = vpow.pop %v914
    %v916 = vadd.f32 %v915, 1.0
    %v917 = vrcp.pop %v916
    %v918 = vmul.f32 1.0, %v917
    %v919 = vtanh.pop %v856
    %v920 = vtanh.pop %v906
    %v921 = vmul.f32 %v912, %v771
    %923 = vrot.lane.b32.xlu0 %v919, 32
    %v924 = vpop.permute.xlu0 %923
    %v926 = vmul.f32 %v912, %v924
    %928 = vrot.lane.b32.xlu0 %v926, 32
    %v929 = vpop.permute.xlu0 %928
    %v931 = vadd.f32 %v921, %v929
    %v932 = vmul.f32 %v918, %v782
    %934 = vrot.lane.b32.xlu0 %v920, 32
    %v935 = vpop.permute.xlu0 %934
    %v937 = vmul.f32 %v918, %v935
    %939 = vrot.lane.b32.xlu0 %v937, 32
    %v940 = vpop.permute.xlu0 %939
    %v942 = vadd.f32 %v932, %v940
    %v943 = vtanh.pop %v931
    %945 = vrot.lane.b32.xlu0 %v943, 32
    %v946 = vpop.permute.xlu0 %945
    %v948 = vmul.f32 %v912, %v946
    %v949 = vtanh.pop %v942
    %951 = vrot.lane.b32.xlu0 %v949, 32
    %v952 = vpop.permute.xlu0 %951
    %v954 = vmul.f32 %v918, %v952
    %956 = vrot.lane.b32.xlu0 %v948, 64
    %v957 = vpop.permute.xlu0 %956
    %s959 = scalar_lea.vmem %s5, 6
    %960 = vst.msk [vmem:[%s959] sm:$0x3] %vm478, %v957
    %962 = vrot.lane.b32.xlu0 %v954, 96
    %v963 = vpop.permute.xlu0 %962
    %s965 = scalar_lea.vmem %s5, 8
    %966 = vst.msk [vmem:[%s965] sm:$0x3] %vm485, %v963
    %s967 = scalar_lea.vmem [#allocation2], 8
    %v968 = vld [vmem:[%s967] sm:$0x3]
    %v969 = vpack.c.bf16 %v948, %v948
    %971 = vrot.lane.b32.xlu0 %v969, 64
    %v972 = vpop.permute.xlu0 %971
    %v974 = vsel %vm326, %v972, 0
    %976 = vmatprep.subr.bf16.mxu0 0
    %977 = vmatpush1.bf16.msra.mxu0 0
    %978 = vmatprep.subr.bf16.mxu0 0
    %979 = vmatpush1.bf16.msra.mxu0 0
    %980 = vmatprep.subr.bf16.mxu0 0
    %981 = vmatpush1.bf16.msra.mxu0 0
    %982 = vmatprep.subr.bf16.mxu0 0
    %983 = vmatpush1.bf16.msra.mxu0 0
    %984 = vmatprep.subr.bf16.mxu0 0
    %985 = vmatpush1.bf16.msra.mxu0 0
    %986 = vmatprep.subr.bf16.mxu0 0
    %987 = vmatpush1.bf16.msra.mxu0 0
    %988 = vmatprep.subr.bf16.mxu0 0
    %989 = vmatpush1.bf16.msra.mxu0 %v323
    %990 = vmatprep.subr.bf16.mxu0 0
    %991 = vmatpush1.bf16.msra.mxu0 %v322
    %992 = vmatprep.subr.bf16.mxu0 0
    %993 = vmatpush2.bf16.msra.mxu0 0
    %994 = vmatprep.subr.bf16.mxu0 0
    %995 = vmatpush2.bf16.msra.mxu0 0
    %996 = vmatprep.subr.bf16.mxu0 0
    %997 = vmatpush2.bf16.msra.mxu0 0
    %998 = vmatprep.subr.bf16.mxu0 0
    %999 = vmatpush2.bf16.msra.mxu0 0
    %1000 = vmatprep.subr.bf16.mxu0 0
    %1001 = vmatpush2.bf16.msra.mxu0 0
    %1002 = vmatprep.subr.bf16.mxu0 0
    %1003 = vmatpush2.bf16.msra.mxu0 0
    %1004 = vmatprep.subr.bf16.mxu0 0
    %1005 = vmatpush2.bf16.msra.mxu0 0
    %1006 = vmatprep.subr.bf16.mxu0 0
    %1007 = vmatpush2.bf16.msra.mxu0 0
    %1008 = vmatprep.mubr.bf16.mxu0 0
    %1009 = vmatmul.mubr.bf16.gmra.mxu0 %v974
    %v1010 = vpop.f32.mrf.mxu0
    %v1011 = vadd.f32 0.0, %v1010
    %v1012 = vpop.f32.mrf.mxu0
    %v1013 = vpop.f32.mrf.mxu0
    %v1014 = vpop.f32.mrf.mxu0
    %1015 = vdwg.mxu0
    %v1016 = vadd.f32 %v968, %v1011
    %s1017 = scalar_lea.vmem [#allocation3], 6
    %v1018 = vld [vmem:[%s1017] sm:$0x3]
    %v1019 = vpack.c.bf16 %v954, %v954
    %1021 = vrot.lane.b32.xlu0 %v1019, 64
    %v1022 = vpop.permute.xlu0 %1021
    %v1024 = vsel %vm326, %v1022, 0
    %1026 = vmatprep.subr.bf16.mxu0 0
    %1027 = vmatpush1.bf16.msra.mxu0 0
    %1028 = vmatprep.subr.bf16.mxu0 0
    %1029 = vmatpush1.bf16.msra.mxu0 0
    %1030 = vmatprep.subr.bf16.mxu0 0
    %1031 = vmatpush1.bf16.msra.mxu0 0
    %1032 = vmatprep.subr.bf16.mxu0 0
    %1033 = vmatpush1.bf16.msra.mxu0 0
    %1034 = vmatprep.subr.bf16.mxu0 0
    %1035 = vmatpush1.bf16.msra.mxu0 0
    %1036 = vmatprep.subr.bf16.mxu0 0
    %1037 = vmatpush1.bf16.msra.mxu0 0
    %1038 = vmatprep.subr.bf16.mxu0 0
    %1039 = vmatpush1.bf16.msra.mxu0 %v382
    %1040 = vmatprep.subr.bf16.mxu0 0
    %1041 = vmatpush1.bf16.msra.mxu0 %v381
    %1042 = vmatprep.subr.bf16.mxu0 0
    %1043 = vmatpush2.bf16.msra.mxu0 0
    %1044 = vmatprep.subr.bf16.mxu0 0
    %1045 = vmatpush2.bf16.msra.mxu0 0
    %1046 = vmatprep.subr.bf16.mxu0 0
    %1047 = vmatpush2.bf16.msra.mxu0 0
    %1048 = vmatprep.subr.bf16.mxu0 0
    %1049 = vmatpush2.bf16.msra.mxu0 0
    %1050 = vmatprep.subr.bf16.mxu0 0
    %1051 = vmatpush2.bf16.msra.mxu0 0
    %1052 = vmatprep.subr.bf16.mxu0 0
    %1053 = vmatpush2.bf16.msra.mxu0 0
    %1054 = vmatprep.subr.bf16.mxu0 0
    %1055 = vmatpush2.bf16.msra.mxu0 0
    %1056 = vmatprep.subr.bf16.mxu0 0
    %1057 = vmatpush2.bf16.msra.mxu0 0
    %1058 = vmatprep.mubr.bf16.mxu0 0
    %1059 = vmatmul.mubr.bf16.gmra.mxu0 %v1024
    %v1060 = vpop.f32.mrf.mxu0
    %v1061 = vadd.f32 0.0, %v1060
    %v1062 = vpop.f32.mrf.mxu0
    %v1063 = vpop.f32.mrf.mxu0
    %v1064 = vpop.f32.mrf.mxu0
    %1065 = vdwg.mxu0
    %v1066 = vadd.f32 %v1018, %v1061
    %v1067 = vxor.u32 %v1016, 2147483648
    %v1068 = vmul.f32 %v1067, 1.442695
    %v1069 = vpow.pop %v1068
    %v1070 = vadd.f32 %v1069, 1.0
    %v1071 = vrcp.pop %v1070
    %v1072 = vmul.f32 1.0, %v1071
    %v1073 = vxor.u32 %v1066, 2147483648
    %v1074 = vmul.f32 %v1073, 1.442695
    %v1075 = vpow.pop %v1074
    %v1076 = vadd.f32 %v1075, 1.0
    %v1077 = vrcp.pop %v1076
    %v1078 = vmul.f32 1.0, %v1077
    %v1079 = vtanh.pop %v1016
    %v1080 = vtanh.pop %v1066
    %v1081 = vmul.f32 %v1072, %v931
    %1083 = vrot.lane.b32.xlu0 %v1079, 32
    %v1084 = vpop.permute.xlu0 %1083
    %v1086 = vmul.f32 %v1072, %v1084
    %1088 = vrot.lane.b32.xlu0 %v1086, 32
    %v1089 = vpop.permute.xlu0 %1088
    %v1091 = vadd.f32 %v1081, %v1089
    %v1092 = vmul.f32 %v1078, %v942
    %1094 = vrot.lane.b32.xlu0 %v1080, 32
    %v1095 = vpop.permute.xlu0 %1094
    %v1097 = vmul.f32 %v1078, %v1095
    %1099 = vrot.lane.b32.xlu0 %v1097, 32
    %v1100 = vpop.permute.xlu0 %1099
    %v1102 = vadd.f32 %v1092, %v1100
    %v1103 = vtanh.pop %v1091
    %1105 = vrot.lane.b32.xlu0 %v1103, 32
    %v1106 = vpop.permute.xlu0 %1105
    %v1108 = vmul.f32 %v1072, %v1106
    %v1109 = vtanh.pop %v1102
    %1111 = vrot.lane.b32.xlu0 %v1109, 32
    %v1112 = vpop.permute.xlu0 %1111
    %v1114 = vmul.f32 %v1078, %v1112
    %1116 = vrot.lane.b32.xlu0 %v1108, 64
    %v1117 = vpop.permute.xlu0 %1116
    %1119 = vst.msk [vmem:[%s965] sm:$0x3] %vm478, %v1117
    %1121 = vrot.lane.b32.xlu0 %v1114, 96
    %v1122 = vpop.permute.xlu0 %1121
    %1124 = vst.msk [vmem:[%s959] sm:$0x3] %vm485, %v1122
    %s1125 = scalar_lea.vmem [#allocation2], 10
    %v1126 = vld [vmem:[%s1125] sm:$0x3]
    %v1127 = vpack.c.bf16 %v1108, %v1108
    %1129 = vrot.lane.b32.xlu0 %v1127, 64
    %v1130 = vpop.permute.xlu0 %1129
    %v1132 = vsel %vm326, %v1130, 0
    %1134 = vmatprep.subr.bf16.mxu0 0
    %1135 = vmatpush1.bf16.msra.mxu0 0
    %1136 = vmatprep.subr.bf16.mxu0 0
    %1137 = vmatpush1.bf16.msra.mxu0 0
    %1138 = vmatprep.subr.bf16.mxu0 0
    %1139 = vmatpush1.bf16.msra.mxu0 0
    %1140 = vmatprep.subr.bf16.mxu0 0
    %1141 = vmatpush1.bf16.msra.mxu0 0
    %1142 = vmatprep.subr.bf16.mxu0 0
    %1143 = vmatpush1.bf16.msra.mxu0 0
    %1144 = vmatprep.subr.bf16.mxu0 0
    %1145 = vmatpush1.bf16.msra.mxu0 0
    %1146 = vmatprep.subr.bf16.mxu0 0
    %1147 = vmatpush1.bf16.msra.mxu0 %v323
    %1148 = vmatprep.subr.bf16.mxu0 0
    %1149 = vmatpush1.bf16.msra.mxu0 %v322
    %1150 = vmatprep.subr.bf16.mxu0 0
    %1151 = vmatpush2.bf16.msra.mxu0 0
    %1152 = vmatprep.subr.bf16.mxu0 0
    %1153 = vmatpush2.bf16.msra.mxu0 0
    %1154 = vmatprep.subr.bf16.mxu0 0
    %1155 = vmatpush2.bf16.msra.mxu0 0
    %1156 = vmatprep.subr.bf16.mxu0 0
    %1157 = vmatpush2.bf16.msra.mxu0 0
    %1158 = vmatprep.subr.bf16.mxu0 0
    %1159 = vmatpush2.bf16.msra.mxu0 0
    %1160 = vmatprep.subr.bf16.mxu0 0
    %1161 = vmatpush2.bf16.msra.mxu0 0
    %1162 = vmatprep.subr.bf16.mxu0 0
    %1163 = vmatpush2.bf16.msra.mxu0 0
    %1164 = vmatprep.subr.bf16.mxu0 0
    %1165 = vmatpush2.bf16.msra.mxu0 0
    %1166 = vmatprep.mubr.bf16.mxu0 0
    %1167 = vmatmul.mubr.bf16.gmra.mxu0 %v1132
    %v1168 = vpop.f32.mrf.mxu0
    %v1169 = vadd.f32 0.0, %v1168
    %v1170 = vpop.f32.mrf.mxu0
    %v1171 = vpop.f32.mrf.mxu0
    %v1172 = vpop.f32.mrf.mxu0
    %1173 = vdwg.mxu0
    %v1174 = vadd.f32 %v1126, %v1169
    %s1175 = scalar_lea.vmem [#allocation3], 4
    %v1176 = vld [vmem:[%s1175] sm:$0x3]
    %v1177 = vpack.c.bf16 %v1114, %v1114
    %1179 = vrot.lane.b32.xlu0 %v1177, 64
    %v1180 = vpop.permute.xlu0 %1179
    %v1182 = vsel %vm326, %v1180, 0
    %1184 = vmatprep.subr.bf16.mxu0 0
    %1185 = vmatpush1.bf16.msra.mxu0 0
    %1186 = vmatprep.subr.bf16.mxu0 0
    %1187 = vmatpush1.bf16.msra.mxu0 0
    %1188 = vmatprep.subr.bf16.mxu0 0
    %1189 = vmatpush1.bf16.msra.mxu0 0
    %1190 = vmatprep.subr.bf16.mxu0 0
    %1191 = vmatpush1.bf16.msra.mxu0 0
    %1192 = vmatprep.subr.bf16.mxu0 0
    %1193 = vmatpush1.bf16.msra.mxu0 0
    %1194 = vmatprep.subr.bf16.mxu0 0
    %1195 = vmatpush1.bf16.msra.mxu0 0
    %1196 = vmatprep.subr.bf16.mxu0 0
    %1197 = vmatpush1.bf16.msra.mxu0 %v382
    %1198 = vmatprep.subr.bf16.mxu0 0
    %1199 = vmatpush1.bf16.msra.mxu0 %v381
    %1200 = vmatprep.subr.bf16.mxu0 0
    %1201 = vmatpush2.bf16.msra.mxu0 0
    %1202 = vmatprep.subr.bf16.mxu0 0
    %1203 = vmatpush2.bf16.msra.mxu0 0
    %1204 = vmatprep.subr.bf16.mxu0 0
    %1205 = vmatpush2.bf16.msra.mxu0 0
    %1206 = vmatprep.subr.bf16.mxu0 0
    %1207 = vmatpush2.bf16.msra.mxu0 0
    %1208 = vmatprep.subr.bf16.mxu0 0
    %1209 = vmatpush2.bf16.msra.mxu0 0
    %1210 = vmatprep.subr.bf16.mxu0 0
    %1211 = vmatpush2.bf16.msra.mxu0 0
    %1212 = vmatprep.subr.bf16.mxu0 0
    %1213 = vmatpush2.bf16.msra.mxu0 0
    %1214 = vmatprep.subr.bf16.mxu0 0
    %1215 = vmatpush2.bf16.msra.mxu0 0
    %1216 = vmatprep.mubr.bf16.mxu0 0
    %1217 = vmatmul.mubr.bf16.gmra.mxu0 %v1182
    %v1218 = vpop.f32.mrf.mxu0
    %v1219 = vadd.f32 0.0, %v1218
    %v1220 = vpop.f32.mrf.mxu0
    %v1221 = vpop.f32.mrf.mxu0
    %v1222 = vpop.f32.mrf.mxu0
    %1223 = vdwg.mxu0
    %v1224 = vadd.f32 %v1176, %v1219
    %v1225 = vxor.u32 %v1174, 2147483648
    %v1226 = vmul.f32 %v1225, 1.442695
    %v1227 = vpow.pop %v1226
    %v1228 = vadd.f32 %v1227, 1.0
    %v1229 = vrcp.pop %v1228
    %v1230 = vmul.f32 1.0, %v1229
    %v1231 = vxor.u32 %v1224, 2147483648
    %v1232 = vmul.f32 %v1231, 1.442695
    %v1233 = vpow.pop %v1232
    %v1234 = vadd.f32 %v1233, 1.0
    %v1235 = vrcp.pop %v1234
    %v1236 = vmul.f32 1.0, %v1235
    %v1237 = vtanh.pop %v1174
    %v1238 = vtanh.pop %v1224
    %v1239 = vmul.f32 %v1230, %v1091
    %1241 = vrot.lane.b32.xlu0 %v1237, 32
    %v1242 = vpop.permute.xlu0 %1241
    %v1244 = vmul.f32 %v1230, %v1242
    %1246 = vrot.lane.b32.xlu0 %v1244, 32
    %v1247 = vpop.permute.xlu0 %1246
    %v1249 = vadd.f32 %v1239, %v1247
    %v1250 = vmul.f32 %v1236, %v1102
    %1252 = vrot.lane.b32.xlu0 %v1238, 32
    %v1253 = vpop.permute.xlu0 %1252
    %v1255 = vmul.f32 %v1236, %v1253
    %1257 = vrot.lane.b32.xlu0 %v1255, 32
    %v1258 = vpop.permute.xlu0 %1257
    %v1260 = vadd.f32 %v1250, %v1258
    %v1261 = vtanh.pop %v1249
    %1263 = vrot.lane.b32.xlu0 %v1261, 32
    %v1264 = vpop.permute.xlu0 %1263
    %v1266 = vmul.f32 %v1230, %v1264
    %v1267 = vtanh.pop %v1260
    %1269 = vrot.lane.b32.xlu0 %v1267, 32
    %v1270 = vpop.permute.xlu0 %1269
    %v1272 = vmul.f32 %v1236, %v1270
    %1274 = vrot.lane.b32.xlu0 %v1266, 64
    %v1275 = vpop.permute.xlu0 %1274
    %1277 = vst.msk [vmem:[%s805] sm:$0x3] %vm478, %v1275
    %1279 = vrot.lane.b32.xlu0 %v1272, 96
    %v1280 = vpop.permute.xlu0 %1279
    %1282 = vst.msk [vmem:[%s799] sm:$0x3] %vm485, %v1280
    %s1283 = scalar_lea.vmem [#allocation2], 12
    %v1284 = vld [vmem:[%s1283] sm:$0x3]
    %v1285 = vpack.c.bf16 %v1266, %v1266
    %1287 = vrot.lane.b32.xlu0 %v1285, 64
    %v1288 = vpop.permute.xlu0 %1287
    %v1290 = vsel %vm326, %v1288, 0
    %1292 = vmatprep.subr.bf16.mxu0 0
    %1293 = vmatpush1.bf16.msra.mxu0 0
    %1294 = vmatprep.subr.bf16.mxu0 0
    %1295 = vmatpush1.bf16.msra.mxu0 0
    %1296 = vmatprep.subr.bf16.mxu0 0
    %1297 = vmatpush1.bf16.msra.mxu0 0
    %1298 = vmatprep.subr.bf16.mxu0 0
    %1299 = vmatpush1.bf16.msra.mxu0 0
    %1300 = vmatprep.subr.bf16.mxu0 0
    %1301 = vmatpush1.bf16.msra.mxu0 0
    %1302 = vmatprep.subr.bf16.mxu0 0
    %1303 = vmatpush1.bf16.msra.mxu0 0
    %1304 = vmatprep.subr.bf16.mxu0 0
    %1305 = vmatpush1.bf16.msra.mxu0 %v323
    %1306 = vmatprep.subr.bf16.mxu0 0
    %1307 = vmatpush1.bf16.msra.mxu0 %v322
    %1308 = vmatprep.subr.bf16.mxu0 0
    %1309 = vmatpush2.bf16.msra.mxu0 0
    %1310 = vmatprep.subr.bf16.mxu0 0
    %1311 = vmatpush2.bf16.msra.mxu0 0
    %1312 = vmatprep.subr.bf16.mxu0 0
    %1313 = vmatpush2.bf16.msra.mxu0 0
    %1314 = vmatprep.subr.bf16.mxu0 0
    %1315 = vmatpush2.bf16.msra.mxu0 0
    %1316 = vmatprep.subr.bf16.mxu0 0
    %1317 = vmatpush2.bf16.msra.mxu0 0
    %1318 = vmatprep.subr.bf16.mxu0 0
    %1319 = vmatpush2.bf16.msra.mxu0 0
    %1320 = vmatprep.subr.bf16.mxu0 0
    %1321 = vmatpush2.bf16.msra.mxu0 0
    %1322 = vmatprep.subr.bf16.mxu0 0
    %1323 = vmatpush2.bf16.msra.mxu0 0
    %1324 = vmatprep.mubr.bf16.mxu0 0
    %1325 = vmatmul.mubr.bf16.gmra.mxu0 %v1290
    %v1326 = vpop.f32.mrf.mxu0
    %v1327 = vadd.f32 0.0, %v1326
    %v1328 = vpop.f32.mrf.mxu0
    %v1329 = vpop.f32.mrf.mxu0
    %v1330 = vpop.f32.mrf.mxu0
    %1331 = vdwg.mxu0
    %v1332 = vadd.f32 %v1284, %v1327
    %s1333 = scalar_lea.vmem [#allocation3], 2
    %v1334 = vld [vmem:[%s1333] sm:$0x3]
    %v1335 = vpack.c.bf16 %v1272, %v1272
    %1337 = vrot.lane.b32.xlu0 %v1335, 64
    %v1338 = vpop.permute.xlu0 %1337
    %v1340 = vsel %vm326, %v1338, 0
    %1342 = vmatprep.subr.bf16.mxu0 0
    %1343 = vmatpush1.bf16.msra.mxu0 0
    %1344 = vmatprep.subr.bf16.mxu0 0
    %1345 = vmatpush1.bf16.msra.mxu0 0
    %1346 = vmatprep.subr.bf16.mxu0 0
    %1347 = vmatpush1.bf16.msra.mxu0 0
    %1348 = vmatprep.subr.bf16.mxu0 0
    %1349 = vmatpush1.bf16.msra.mxu0 0
    %1350 = vmatprep.subr.bf16.mxu0 0
    %1351 = vmatpush1.bf16.msra.mxu0 0
    %1352 = vmatprep.subr.bf16.mxu0 0
    %1353 = vmatpush1.bf16.msra.mxu0 0
    %1354 = vmatprep.subr.bf16.mxu0 0
    %1355 = vmatpush1.bf16.msra.mxu0 %v382
    %1356 = vmatprep.subr.bf16.mxu0 0
    %1357 = vmatpush1.bf16.msra.mxu0 %v381
    %1358 = vmatprep.subr.bf16.mxu0 0
    %1359 = vmatpush2.bf16.msra.mxu0 0
    %1360 = vmatprep.subr.bf16.mxu0 0
    %1361 = vmatpush2.bf16.msra.mxu0 0
    %1362 = vmatprep.subr.bf16.mxu0 0
    %1363 = vmatpush2.bf16.msra.mxu0 0
    %1364 = vmatprep.subr.bf16.mxu0 0
    %1365 = vmatpush2.bf16.msra.mxu0 0
    %1366 = vmatprep.subr.bf16.mxu0 0
    %1367 = vmatpush2.bf16.msra.mxu0 0
    %1368 = vmatprep.subr.bf16.mxu0 0
    %1369 = vmatpush2.bf16.msra.mxu0 0
    %1370 = vmatprep.subr.bf16.mxu0 0
    %1371 = vmatpush2.bf16.msra.mxu0 0
    %1372 = vmatprep.subr.bf16.mxu0 0
    %1373 = vmatpush2.bf16.msra.mxu0 0
    %1374 = vmatprep.mubr.bf16.mxu0 0
    %1375 = vmatmul.mubr.bf16.gmra.mxu0 %v1340
    %v1376 = vpop.f32.mrf.mxu0
    %v1377 = vadd.f32 0.0, %v1376
    %v1378 = vpop.f32.mrf.mxu0
    %v1379 = vpop.f32.mrf.mxu0
    %v1380 = vpop.f32.mrf.mxu0
    %1381 = vdwg.mxu0
    %v1382 = vadd.f32 %v1334, %v1377
    %v1383 = vxor.u32 %v1332, 2147483648
    %v1384 = vmul.f32 %v1383, 1.442695
    %v1385 = vpow.pop %v1384
    %v1386 = vadd.f32 %v1385, 1.0
    %v1387 = vrcp.pop %v1386
    %v1388 = vmul.f32 1.0, %v1387
    %v1389 = vxor.u32 %v1382, 2147483648
    %v1390 = vmul.f32 %v1389, 1.442695
    %v1391 = vpow.pop %v1390
    %v1392 = vadd.f32 %v1391, 1.0
    %v1393 = vrcp.pop %v1392
    %v1394 = vmul.f32 1.0, %v1393
    %v1395 = vtanh.pop %v1332
    %v1396 = vtanh.pop %v1382
    %v1397 = vmul.f32 %v1388, %v1249
    %1399 = vrot.lane.b32.xlu0 %v1395, 32
    %v1400 = vpop.permute.xlu0 %1399
    %v1402 = vmul.f32 %v1388, %v1400
    %1404 = vrot.lane.b32.xlu0 %v1402, 32
    %v1405 = vpop.permute.xlu0 %1404
    %v1407 = vadd.f32 %v1397, %v1405
    %v1408 = vmul.f32 %v1394, %v1260
    %1410 = vrot.lane.b32.xlu0 %v1396, 32
    %v1411 = vpop.permute.xlu0 %1410
    %v1413 = vmul.f32 %v1394, %v1411
    %1415 = vrot.lane.b32.xlu0 %v1413, 32
    %v1416 = vpop.permute.xlu0 %1415
    %v1418 = vadd.f32 %v1408, %v1416
    %v1419 = vtanh.pop %v1407
    %1421 = vrot.lane.b32.xlu0 %v1419, 32
    %v1422 = vpop.permute.xlu0 %1421
    %v1424 = vmul.f32 %v1388, %v1422
    %v1425 = vtanh.pop %v1418
    %1427 = vrot.lane.b32.xlu0 %v1425, 32
    %v1428 = vpop.permute.xlu0 %1427
    %v1430 = vmul.f32 %v1394, %v1428
    %1432 = vrot.lane.b32.xlu0 %v1424, 64
    %v1433 = vpop.permute.xlu0 %1432
    %1435 = vst.msk [vmem:[%s645] sm:$0x3] %vm478, %v1433
    %1437 = vrot.lane.b32.xlu0 %v1430, 96
    %v1438 = vpop.permute.xlu0 %1437
    %1440 = vst.msk [vmem:[%s639] sm:$0x3] %vm485, %v1438
    %s1441 = scalar_lea.vmem [#allocation2], 14
    %v1442 = vld [vmem:[%s1441] sm:$0x3]
    %v1443 = vpack.c.bf16 %v1424, %v1424
    %1445 = vrot.lane.b32.xlu0 %v1443, 64
    %v1446 = vpop.permute.xlu0 %1445
    %v1448 = vsel %vm326, %v1446, 0
    %1450 = vmatprep.subr.bf16.mxu0 0
    %1451 = vmatpush1.bf16.msra.mxu0 0
    %1452 = vmatprep.subr.bf16.mxu0 0
    %1453 = vmatpush1.bf16.msra.mxu0 0
    %1454 = vmatprep.subr.bf16.mxu0 0
    %1455 = vmatpush1.bf16.msra.mxu0 0
    %1456 = vmatprep.subr.bf16.mxu0 0
    %1457 = vmatpush1.bf16.msra.mxu0 0
    %1458 = vmatprep.subr.bf16.mxu0 0
    %1459 = vmatpush1.bf16.msra.mxu0 0
    %1460 = vmatprep.subr.bf16.mxu0 0
    %1461 = vmatpush1.bf16.msra.mxu0 0
    %1462 = vmatprep.subr.bf16.mxu0 0
    %1463 = vmatpush1.bf16.msra.mxu0 %v323
    %1464 = vmatprep.subr.bf16.mxu0 0
    %1465 = vmatpush1.bf16.msra.mxu0 %v322
    %1466 = vmatprep.subr.bf16.mxu0 0
    %1467 = vmatpush2.bf16.msra.mxu0 0
    %1468 = vmatprep.subr.bf16.mxu0 0
    %1469 = vmatpush2.bf16.msra.mxu0 0
    %1470 = vmatprep.subr.bf16.mxu0 0
    %1471 = vmatpush2.bf16.msra.mxu0 0
    %1472 = vmatprep.subr.bf16.mxu0 0
    %1473 = vmatpush2.bf16.msra.mxu0 0
    %1474 = vmatprep.subr.bf16.mxu0 0
    %1475 = vmatpush2.bf16.msra.mxu0 0
    %1476 = vmatprep.subr.bf16.mxu0 0
    %1477 = vmatpush2.bf16.msra.mxu0 0
    %1478 = vmatprep.subr.bf16.mxu0 0
    %1479 = vmatpush2.bf16.msra.mxu0 0
    %1480 = vmatprep.subr.bf16.mxu0 0
    %1481 = vmatpush2.bf16.msra.mxu0 0
    %1482 = vmatprep.mubr.bf16.mxu0 0
    %1483 = vmatmul.mubr.bf16.gmra.mxu0 %v1448
    %v1484 = vpop.f32.mrf.mxu0
    %v1485 = vadd.f32 0.0, %v1484
    %v1486 = vpop.f32.mrf.mxu0
    %v1487 = vpop.f32.mrf.mxu0
    %v1488 = vpop.f32.mrf.mxu0
    %1489 = vdwg.mxu0
    %v1490 = vadd.f32 %v1442, %v1485
    %v1491 = vld [vmem:[#allocation3] sm:$0x3]
    %v1492 = vpack.c.bf16 %v1430, %v1430
    %1494 = vrot.lane.b32.xlu0 %v1492, 64
    %v1495 = vpop.permute.xlu0 %1494
    %v1497 = vsel %vm326, %v1495, 0
    %1499 = vmatprep.subr.bf16.mxu0 0
    %1500 = vmatpush1.bf16.msra.mxu0 0
    %1501 = vmatprep.subr.bf16.mxu0 0
    %1502 = vmatpush1.bf16.msra.mxu0 0
    %1503 = vmatprep.subr.bf16.mxu0 0
    %1504 = vmatpush1.bf16.msra.mxu0 0
    %1505 = vmatprep.subr.bf16.mxu0 0
    %1506 = vmatpush1.bf16.msra.mxu0 0
    %1507 = vmatprep.subr.bf16.mxu0 0
    %1508 = vmatpush1.bf16.msra.mxu0 0
    %1509 = vmatprep.subr.bf16.mxu0 0
    %1510 = vmatpush1.bf16.msra.mxu0 0
    %1511 = vmatprep.subr.bf16.mxu0 0
    %1512 = vmatpush1.bf16.msra.mxu0 %v382
    %1513 = vmatprep.subr.bf16.mxu0 0
    %1514 = vmatpush1.bf16.msra.mxu0 %v381
    %1515 = vmatprep.subr.bf16.mxu0 0
    %1516 = vmatpush2.bf16.msra.mxu0 0
    %1517 = vmatprep.subr.bf16.mxu0 0
    %1518 = vmatpush2.bf16.msra.mxu0 0
    %1519 = vmatprep.subr.bf16.mxu0 0
    %1520 = vmatpush2.bf16.msra.mxu0 0
    %1521 = vmatprep.subr.bf16.mxu0 0
    %1522 = vmatpush2.bf16.msra.mxu0 0
    %1523 = vmatprep.subr.bf16.mxu0 0
    %1524 = vmatpush2.bf16.msra.mxu0 0
    %1525 = vmatprep.subr.bf16.mxu0 0
    %1526 = vmatpush2.bf16.msra.mxu0 0
    %1527 = vmatprep.subr.bf16.mxu0 0
    %1528 = vmatpush2.bf16.msra.mxu0 0
    %1529 = vmatprep.subr.bf16.mxu0 0
    %1530 = vmatpush2.bf16.msra.mxu0 0
    %1531 = vmatprep.mubr.bf16.mxu0 0
    %1532 = vmatmul.mubr.bf16.gmra.mxu0 %v1497
    %v1533 = vpop.f32.mrf.mxu0
    %v1534 = vadd.f32 0.0, %v1533
    %v1535 = vpop.f32.mrf.mxu0
    %v1536 = vpop.f32.mrf.mxu0
    %v1537 = vpop.f32.mrf.mxu0
    %1538 = vdwg.mxu0
    %v1539 = vadd.f32 %v1491, %v1534
    %v1540 = vxor.u32 %v1490, 2147483648
    %v1541 = vmul.f32 %v1540, 1.442695
    %v1542 = vpow.pop %v1541
    %v1543 = vadd.f32 %v1542, 1.0
    %v1544 = vrcp.pop %v1543
    %v1545 = vmul.f32 1.0, %v1544
    %v1546 = vxor.u32 %v1539, 2147483648
    %v1547 = vmul.f32 %v1546, 1.442695
    %v1548 = vpow.pop %v1547
    %v1549 = vadd.f32 %v1548, 1.0
    %v1550 = vrcp.pop %v1549
    %v1551 = vmul.f32 1.0, %v1550
    %v1552 = vtanh.pop %v1490
    %v1553 = vtanh.pop %v1539
    %v1554 = vmul.f32 %v1545, %v1407
    %1556 = vrot.lane.b32.xlu0 %v1552, 32
    %v1557 = vpop.permute.xlu0 %1556
    %v1559 = vmul.f32 %v1545, %v1557
    %1561 = vrot.lane.b32.xlu0 %v1559, 32
    %v1562 = vpop.permute.xlu0 %1561
    %v1564 = vadd.f32 %v1554, %v1562
    %v1565 = vmul.f32 %v1551, %v1418
    %1567 = vrot.lane.b32.xlu0 %v1553, 32
    %v1568 = vpop.permute.xlu0 %1567
    %v1570 = vmul.f32 %v1551, %v1568
    %1572 = vrot.lane.b32.xlu0 %v1570, 32
    %v1573 = vpop.permute.xlu0 %1572
    %v1575 = vadd.f32 %v1565, %v1573
    %v1576 = vtanh.pop %v1564
    %1578 = vrot.lane.b32.xlu0 %v1576, 32
    %v1579 = vpop.permute.xlu0 %1578
    %v1581 = vmul.f32 %v1545, %v1579
    %v1582 = vtanh.pop %v1575
    %1584 = vrot.lane.b32.xlu0 %v1582, 32
    %v1585 = vpop.permute.xlu0 %1584
    %v1587 = vmul.f32 %v1551, %v1585
    %1589 = vrot.lane.b32.xlu0 %v1581, 64
    %v1590 = vpop.permute.xlu0 %1589
    %1592 = vst.msk [vmem:[%s484] sm:$0x3] %vm478, %v1590
    %1594 = vrot.lane.b32.xlu0 %v1587, 96
    %v1595 = vpop.permute.xlu0 %1594
    %1597 = vst.msk [vmem:[%s5] sm:$0x3] %vm485, %v1595
    %1598 = vst.msk [vmem:[%s6] sm:$0x3] %vm478, %v1590
    %1599 = vrot.lane.b32.xlu0 %v1587, 64
    %v1600 = vpop.permute.xlu0 %1599
    %s1602 = scalar_lea.vmem %s6, 2
    %1603 = vst.msk [vmem:[%s1602] sm:$0x3] %vm478, %v1600
    %1605 = vrot.lane.b32.xlu0 %v1564, 96
    %v1606 = vpop.permute.xlu0 %1605
    %1608 = vst.msk [vmem:[%s7] sm:$0x3] %vm478, %v1606
    %1610 = vrot.lane.b32.xlu0 %v1575, 96
    %v1611 = vpop.permute.xlu0 %1610
    %s1613 = scalar_lea.vmem %s7, 2
    %1614 = vst.msk [vmem:[%s1613] sm:$0x3] %vm478, %v1611
    // Predicated region
    $region38: #{chimera_combook_forward.5} parent=1 // pred_check
      _
    $region39: #{chimera_combook_forward.5} parent=1 // pred_check_branch
      %1616 = sbr.rel (0) target = $region41
    $region40: #{chimera_combook_forward.5} parent=1 // pred_region
      _
    $region41: #{chimera_combook_forward.5} parent=1 // pred_fallthru
      _
    // Predicated region
    $region42: #{chimera_combook_forward.5} parent=1 // pred_check
      _
    $region43: #{chimera_combook_forward.5} parent=1 // pred_check_branch
      %1618 = sbr.rel (0) target = $region45
    $region44: #{chimera_combook_forward.5} parent=1 // pred_region
      _
    $region45: #{chimera_combook_forward.5} parent=1 // pred_fallthru
      _
    // Predicated region
    $region46: #{chimera_combook_forward.5} parent=1 // pred_check
      _
    $region47: #{chimera_combook_forward.5} parent=1 // pred_check_branch
      %1620 = sbr.rel (0) target = $region49
    $region48: #{chimera_combook_forward.5} parent=1 // pred_region
      _
    $region49: #{chimera_combook_forward.5} parent=1 // pred_fallthru
      _
    // Predicated region
    $region50: #{chimera_combook_forward.5} parent=1 // pred_check
      _
    $region51: #{chimera_combook_forward.5} parent=1 // pred_check_branch
      %1622 = sbr.rel (0) target = $region53
    $region52: #{chimera_combook_forward.5} parent=1 // pred_region
      _
    $region53: #{chimera_combook_forward.5} parent=1 // pred_fallthru
      _
    // Predicated region
    $region54: #{chimera_combook_forward.5} parent=1 // pred_check
      _
    $region55: #{chimera_combook_forward.5} parent=1 // pred_check_branch
      %1624 = sbr.rel (0) target = $region57
    $region56: #{chimera_combook_forward.5} parent=1 // pred_region
      _
    $region57: #{chimera_combook_forward.5} parent=1 // pred_fallthru
      _
    // Predicated region
    $region58: #{chimera_combook_forward.5} parent=1 // pred_check
      _
    $region59: #{chimera_combook_forward.5} parent=1 // pred_check_branch
      %1626 = sbr.rel (0) target = $region61
    $region60: #{chimera_combook_forward.5} parent=1 // pred_region
      _
    $region61: #{chimera_combook_forward.5} parent=1 // pred_fallthru
      _
    %1627 = vsyncpa [#allocation5], 1
    %1628 = vsyncpa [#allocation7], 1
    %1629 = vsyncpa [#allocation10], 1

</llo_original>
